<compile_context>
chip_gen: v6e
topology: v6e:2x2x1
jax: 0.10.0
libtpu: 0.0.40
codegen_flags: <defaults>
</compile_context>

<pallas_src>
import functools

import jax
import jax.numpy as jnp
from jax.experimental import pallas as pl
from jax.experimental.pallas import tpu as pltpu

H = 128            # hidden_size
L = 8              # max_length
V = 16             # output_size (vocab)

NC = 10 * H        # columns of the fused MXU weight slab: [comb | lstm gates | out]
C1 = H             # column offset of the LSTM gate block (8H wide)
C2 = 9 * H         # column offset of the output block (128 wide, first V real)
NEG = -1e30        # padding mask value (bias slab stays f32 -> never -inf)


# ------------------------------- kernel --------------------------------------

def attn_decoder_kernel(tok_ref,            # (T, TB, 1) i32  token ids
                        emb_ref,            # (V, H)     f32  embedding table
                        h0c0_ref,           # (4, TB, H) f32  initial [h_f,h_b,c_f,c_b]
                        enc_ref,            # (L, TB, 2H) f32 encoder outputs (L-major)
                        wa_ref,             # (2H, 128)  f32  padded attention weight
                        ba_ref,             # (1, 128)   f32  padded attention bias
                        w_ref,              # (3H, NC)   bf16 fused MXU weights
                        b_ref,              # (1, NC)    f32  fused biases
                        logp_ref,           # (T, TB, 128) f32 out: log_softmax (V real)
                        attn_ref,           # (T, TB, 128) f32 out: attn weights (L real)
                        state_ref):         # (TB, 4H)   f32  out: final [h_f|h_b|c_f|c_b]
    T = tok_ref.shape[0]
    TB = tok_ref.shape[1]

    def step(t, carry):
        h_f, h_b, c_f, c_b = carry

        # ---- embedding lookup: (TB,V) one-hot @ (V,H) f32 MXU dot ----
        toks = tok_ref[t]                                            # (TB, 1) i32
        onehot = (jax.lax.broadcasted_iota(jnp.int32, (TB, V), 1) == toks
                  ).astype(jnp.float32)                              # (TB, V)
        emb = jnp.dot(onehot, emb_ref[...],
                      preferred_element_type=jnp.float32)            # (TB, H)
        # TODO(synk): nn.Dropout(p=0.1) omitted — identity in eval mode.

        # ---- attention: softmax over 128-lane padded logits (first L real) ----
        cat1 = jnp.concatenate([emb, h_f], axis=1)                   # (TB, 2H)
        a_logits = (jnp.dot(cat1, wa_ref[...],
                            preferred_element_type=jnp.float32)
                    + ba_ref[...])                                   # (TB, 128)
        ma = jnp.max(a_logits, axis=1, keepdims=True)
        ea = jnp.exp(a_logits - ma)
        attn_w = ea * pl.reciprocal(jnp.sum(ea, axis=1, keepdims=True),
                                    approx=True)                     # (TB, 128)
        # attn_applied[b, :] = sum_k attn_w[b, k] * enc[k, b, :]
        attn_applied = attn_w[:, 0:1] * enc_ref[0]                   # (TB, 2H)
        for k in range(1, L):
            attn_applied = attn_applied + attn_w[:, k:k + 1] * enc_ref[k]

        # ---- attn_combine + ReLU: one (TB,3H)@(3H,H) bf16 MXU dot ----
        cat2 = jnp.concatenate([emb, attn_applied], axis=1)          # (TB, 3H)
        x = (jnp.dot(cat2.astype(jnp.bfloat16), w_ref[:, 0:H],
                     preferred_element_type=jnp.float32)
             + b_ref[:, 0:H])
        x = jnp.maximum(x, 0.0)                                      # (TB, H)

        # ---- bidirectional single-step LSTM: ONE (TB,3H)@(3H,8H) dot ----
        # gate column order (host-packed): [i_f, f_f, o_f, i_b, f_b, o_b, g_f, g_b]
        lstm_in = jnp.concatenate([x, h_f, h_b], axis=1)             # (TB, 3H)
        gates = (jnp.dot(lstm_in.astype(jnp.bfloat16), w_ref[:, C1:C1 + 8 * H],
                         preferred_element_type=jnp.float32)
                 + b_ref[:, C1:C1 + 8 * H])                          # (TB, 8H)
        sig = jax.nn.sigmoid(gates[:, 0:6 * H])
        tg = jnp.tanh(gates[:, 6 * H:8 * H])
        i_f, f_f, o_f = sig[:, 0:H], sig[:, H:2 * H], sig[:, 2 * H:3 * H]
        i_b, f_b, o_b = sig[:, 3 * H:4 * H], sig[:, 4 * H:5 * H], sig[:, 5 * H:6 * H]
        g_f, g_b = tg[:, 0:H], tg[:, H:2 * H]
        c_f_n = f_f * c_f + i_f * g_f
        h_f_n = o_f * jnp.tanh(c_f_n)
        c_b_n = f_b * c_b + i_b * g_b
        h_b_n = o_b * jnp.tanh(c_b_n)

        # ---- output head + log_softmax: one (TB,2H)@(2H,128) dot ----
        out_in = jnp.concatenate([h_f_n, h_b_n], axis=1)             # (TB, 2H)
        logits = (jnp.dot(out_in.astype(jnp.bfloat16), w_ref[0:2 * H, C2:C2 + H],
                          preferred_element_type=jnp.float32)
                  + b_ref[:, C2:C2 + H])                             # (TB, 128)
        mo = jnp.max(logits, axis=1, keepdims=True)
        z = logits - mo
        logp = z - jnp.log(jnp.sum(jnp.exp(z), axis=1, keepdims=True))

        # ---- per-step outputs: direct lane-dense (TB,128) stores ----
        logp_ref[t, :, :] = logp
        attn_ref[t, :, :] = attn_w
        return (h_f_n, h_b_n, c_f_n, c_b_n)

    init = (h0c0_ref[0], h0c0_ref[1], h0c0_ref[2], h0c0_ref[3])
    h_f, h_b, c_f, c_b = jax.lax.fori_loop(0, T, step, init)

    # ---- final state: four static lane-slice stores ----
    state_ref[:, 0:H] = h_f
    state_ref[:, H:2 * H] = h_b
    state_ref[:, 2 * H:3 * H] = c_f
    state_ref[:, 3 * H:4 * H] = c_b


# ----------------------------- host wrappers ----------------------------------

@functools.partial(jax.jit, static_argnames=("block_b",))
def attn_decoder_decode(token_ids, hidden, encoder_outputs, packed, block_b=8):
    """Teacher-forced multi-step decode of B independent sequences.

    token_ids: (T, B) int32; hidden = (h, c), each (2, B, H);
    encoder_outputs: (B, L, 2H).
    Returns (logp (T,B,V), (h_new, c_new) each (2,B,H) from the last step,
             attn (T,B,L)).
    """
    T, B = token_ids.shape
    h0, c0 = hidden
    Bp = ((B + block_b - 1) // block_b) * block_b
    pad = Bp - B

    tok = token_ids.astype(jnp.int32)
    h0c0 = jnp.concatenate([h0, c0], axis=0)                 # (4, B, H)
    enc = jnp.transpose(encoder_outputs, (1, 0, 2))          # (L, B, 2H)
    if pad:
        tok = jnp.pad(tok, ((0, 0), (0, pad)))
        h0c0 = jnp.pad(h0c0, ((0, 0), (0, pad), (0, 0)))
        enc = jnp.pad(enc, ((0, 0), (0, pad), (0, 0)))
    tok = tok[:, :, None]                                    # (T, Bp, 1)

    nb = Bp // block_b
    grid_spec = pltpu.PrefetchScalarGridSpec(
        num_scalar_prefetch=0,
        grid=(nb,),
        in_specs=[
            pl.BlockSpec((T, block_b, 1), lambda i: (0, i, 0)),       # tokens
            pl.BlockSpec((V, H), lambda i: (0, 0)),                   # embedding table
            pl.BlockSpec((4, block_b, H), lambda i: (0, i, 0)),       # initial state
            pl.BlockSpec((L, block_b, 2 * H), lambda i: (0, i, 0)),   # encoder outputs
            pl.BlockSpec((2 * H, 128), lambda i: (0, 0)),             # padded attn weight
            pl.BlockSpec((1, 128), lambda i: (0, 0)),                 # padded attn bias
            pl.BlockSpec((3 * H, NC), lambda i: (0, 0)),              # fused bf16 MXU slab
            pl.BlockSpec((1, NC), lambda i: (0, 0)),                  # fused f32 bias slab
        ],
        out_specs=(
            pl.BlockSpec((T, block_b, 128), lambda i: (0, i, 0)),     # logp (V real)
            pl.BlockSpec((T, block_b, 128), lambda i: (0, i, 0)),     # attn (L real)
            pl.BlockSpec((block_b, 4 * H), lambda i: (i, 0)),         # final state
        ),
    )

    logp_all, attn_all, state = pl.pallas_call(
        attn_decoder_kernel,
        grid_spec=grid_spec,
        out_shape=(
            jax.ShapeDtypeStruct((T, Bp, 128), jnp.float32),
            jax.ShapeDtypeStruct((T, Bp, 128), jnp.float32),
            jax.ShapeDtypeStruct((Bp, 4 * H), jnp.float32),
        ),
        compiler_params=pltpu.CompilerParams(
            dimension_semantics=("parallel",)),       # batch tiles are independent
    )(tok, packed["emb_table"], h0c0, enc,
      packed["w_attn_pad"], packed["b_attn_pad"],
      packed["w_mxu"], packed["b_mxu"])

    logp = logp_all[:, :B, :V]
    attn = attn_all[:, :B, :L]
    h_new = jnp.stack([state[:B, 0:H], state[:B, H:2 * H]], axis=0)
    c_new = jnp.stack([state[:B, 2 * H:3 * H], state[:B, 3 * H:4 * H]], axis=0)
    return logp, (h_new, c_new), attn


def attn_decoder_forward(token_id, hidden, encoder_outputs, packed):
    """Single decode step — same signature/semantics as AttnDecoderRNN.forward."""
    h, c = hidden                                            # (2, 1, H) each
    tok = jnp.asarray(token_id, jnp.int32).reshape(1, 1)
    logp, hidden_new, attn = attn_decoder_decode(
        tok, (h, c), encoder_outputs[None], packed)
    return logp[0], hidden_new, attn[0]


# ------------------------ parameters, packing, reference ----------------------

def make_params(key):
    ks = jax.random.split(key, 16)

    def u(k_, shape, fan_in):
        b = 1.0 / (fan_in ** 0.5)
        return jax.random.uniform(k_, shape, jnp.float32, -b, b)

    return {
        "embedding": jax.random.normal(ks[0], (V, H), jnp.float32),
        "w_attn": u(ks[1], (2 * H, L), 2 * H),
        "b_attn": u(ks[2], (1, L), 2 * H),
        "w_comb": u(ks[3], (3 * H, H), 3 * H),
        "b_comb": u(ks[4], (1, H), 3 * H),
        "w_ih_f": u(ks[5], (H, 4 * H), H),     # gate order (i, f, g, o) along columns
        "w_hh_f": u(ks[6], (H, 4 * H), H),
        "b_f":    u(ks[7], (1, 4 * H), H),
        "w_ih_b": u(ks[8], (H, 4 * H), H),
        "w_hh_b": u(ks[9], (H, 4 * H), H),
        "b_b":    u(ks[10], (1, 4 * H), H),
        "w_out":  u(ks[11], (2 * H, V), 2 * H),
        "b_out":  u(ks[12], (1, V), 2 * H),
    }


def pack_params(p):
    """One-time host-side packing of the 13 tensors into resident kernel slabs."""
    W = jnp.zeros((3 * H, NC), jnp.float32)
    Bv = jnp.zeros((1, NC), jnp.float32)

    # attn_combine block (columns 0:H); cat order is [emb, attn_applied]
    W = W.at[:, 0:H].set(p["w_comb"])
    Bv = Bv.at[:, 0:H].set(p["b_comb"])

    # fused bidirectional LSTM block (columns C1:C1+8H); input is [x, h_f, h_b]
    # slab gate order: [i_f, f_f, o_f, i_b, f_b, o_b, g_f, g_b]
    gate_src = {"i": slice(0, H), "f": slice(H, 2 * H),
                "g": slice(2 * H, 3 * H), "o": slice(3 * H, 4 * H)}
    order = [("f", "i"), ("f", "f"), ("f", "o"),
             ("b", "i"), ("b", "f"), ("b", "o"),
             ("f", "g"), ("b", "g")]
    for slot, (d, g) in enumerate(order):
        cols = slice(C1 + slot * H, C1 + (slot + 1) * H)
        src = gate_src[g]
        if d == "f":
            W = W.at[0:H, cols].set(p["w_ih_f"][:, src])
            W = W.at[H:2 * H, cols].set(p["w_hh_f"][:, src])
            Bv = Bv.at[:, cols].set(p["b_f"][:, src])
        else:
            W = W.at[0:H, cols].set(p["w_ih_b"][:, src])
            W = W.at[2 * H:3 * H, cols].set(p["w_hh_b"][:, src])
            Bv = Bv.at[:, cols].set(p["b_b"][:, src])

    # output block (columns C2:C2+128, first V real); input is [h_f', h_b']
    W = W.at[0:2 * H, C2:C2 + V].set(p["w_out"])
    Bv = Bv.at[:, C2:C2 + V].set(p["b_out"])
    Bv = Bv.at[:, C2 + V:C2 + H].set(NEG)       # mask padded vocab lanes (f32 only!)

    # attention: weight padded to 128 output lanes; padded lanes get NEG bias
    w_attn_pad = jnp.zeros((2 * H, 128), jnp.float32).at[:, 0:L].set(p["w_attn"])
    b_attn_pad = jnp.full((1, 128), NEG, jnp.float32).at[:, 0:L].set(p["b_attn"])

    return {
        "emb_table": p["embedding"].astype(jnp.float32),
        "w_attn_pad": w_attn_pad,
        "b_attn_pad": b_attn_pad,
        "w_mxu": W.astype(jnp.bfloat16),
        "b_mxu": Bv,                            # stays f32 (NEG must not become -inf)
    }


def _bdot(a, b):
    # mirrors the kernel's bf16-input / f32-accumulation MXU dots
    return jnp.dot(a.astype(jnp.bfloat16), b.astype(jnp.bfloat16),
                   preferred_element_type=jnp.float32)


def _fdot(a, b):
    return jnp.dot(a, b, precision=jax.lax.Precision.HIGHEST)


def ref_step(tok, h, c, enc, p):
    emb = p["embedding"][tok].reshape(1, H)
    h_f, h_b = h[0:1], h[1:2]
    c_f, c_b = c[0:1], c[1:2]

    attn_logits = _fdot(jnp.concatenate([emb, h_f], 1), p["w_attn"]) + p["b_attn"]
    attn_w = jax.nn.softmax(attn_logits, axis=1)                       # (1, L)
    attn_applied = _fdot(attn_w, enc)                                  # (1, 2H)
    x = jnp.maximum(_bdot(jnp.concatenate([emb, attn_applied], 1), p["w_comb"])
                    + p["b_comb"], 0.0)

    def cell(xin, hh, cc, wih, whh, b):
        g = _bdot(xin, wih) + _bdot(hh, whh) + b
        i = jax.nn.sigmoid(g[:, :H]); f = jax.nn.sigmoid(g[:, H:2 * H])
        gg = jnp.tanh(g[:, 2 * H:3 * H]); o = jax.nn.sigmoid(g[:, 3 * H:])
        c2 = f * cc + i * gg
        return o * jnp.tanh(c2), c2

    hf, cf = cell(x, h_f, c_f, p["w_ih_f"], p["w_hh_f"], p["b_f"])
    hb, cb = cell(x, h_b, c_b, p["w_ih_b"], p["w_hh_b"], p["b_b"])
    logits = _bdot(jnp.concatenate([hf, hb], 1), p["w_out"]) + p["b_out"]
    logp = jax.nn.log_softmax(logits, axis=1)
    return logp, jnp.concatenate([hf, hb], 0), jnp.concatenate([cf, cb], 0), attn_w


# ------------------------------------ main ------------------------------------

if __name__ == "__main__":
    key = jax.random.PRNGKey(0)
    kp, kh, kc, ke, kt = jax.random.split(key, 5)

    params = make_params(kp)
    packed = pack_params(params)               # one-time packing per model

    T, Bsz = 4, 12                              # Bsz not a multiple of 8 -> exercises padding
    token_ids = jax.random.randint(kt, (T, Bsz), 0, V, dtype=jnp.int32)
    h0 = jax.random.normal(kh, (2, Bsz, H), jnp.float32)
    c0 = jax.random.normal(kc, (2, Bsz, H), jnp.float32)
    enc = jax.random.normal(ke, (Bsz, L, 2 * H), jnp.float32)

    # batched multi-step fused decode (weights resident, T loop inside kernel)
    logp_seq, (h_fin, c_fin), attn_seq = attn_decoder_decode(
        token_ids, (h0, c0), enc, packed)
    jax.block_until_ready((logp_seq, h_fin, c_fin, attn_seq))

    # single-step / single-sequence wrapper (module-equivalent API)
    logp1, (h1, c1), attn1 = attn_decoder_forward(
        int(token_ids[0, 0]), (h0[:, 0:1, :], c0[:, 0:1, :]), enc[0], packed)
    jax.block_until_ready((logp1, h1, c1, attn1))

    # pure-JAX reference, per sequence
    ref_lp, ref_aw, ref_hf, ref_cf = [], [], [], []
    for b in range(Bsz):
        h = h0[:, b, :]; c = c0[:, b, :]
        lps, aws = [], []
        for t in range(T):
            lp, h, c, aw = ref_step(int(token_ids[t, b]), h, c, enc[b], params)
            lps.append(lp[0]); aws.append(aw[0])
        ref_lp.append(jnp.stack(lps)); ref_aw.append(jnp.stack(aws))
        ref_hf.append(h); ref_cf.append(c)
    ref_logp_seq = jnp.stack(ref_lp, axis=1)   # (T, Bsz, V)
    ref_attn_seq = jnp.stack(ref_aw, axis=1)   # (T, Bsz, L)
    ref_h_fin = jnp.stack(ref_hf, axis=1)      # (2, Bsz, H)
    ref_c_fin = jnp.stack(ref_cf, axis=1)      # (2, Bsz, H)

    assert logp_seq.shape == (T, Bsz, V) and attn_seq.shape == (T, Bsz, L)
    assert h_fin.shape == (2, Bsz, H) and c_fin.shape == (2, Bsz, H)

    tol = dict(atol=5e-3, rtol=5e-3)
    assert jnp.allclose(logp_seq, ref_logp_seq, **tol)
    assert jnp.allclose(attn_seq, ref_attn_seq, **tol)
    assert jnp.allclose(h_fin, ref_h_fin, **tol)
    assert jnp.allclose(c_fin, ref_c_fin, **tol)

    # single-step parity against a fresh reference step
    lp0, h_1, c_1, aw0 = ref_step(int(token_ids[0, 0]),
                                  h0[:, 0, :], c0[:, 0, :], enc[0], params)
    assert logp1.shape == (1, V) and attn1.shape == (1, L)
    assert jnp.allclose(logp1, lp0, **tol)
    assert jnp.allclose(attn1, aw0, **tol)
    assert jnp.allclose(h1[:, 0, :], h_1, **tol)
    assert jnp.allclose(c1[:, 0, :], c_1, **tol)

    print("KERNEL_OK")
</pallas_src>

<mosaic_0001>
module attributes {stable_mosaic.version = 11 : i64} {
  func.func @attn_decoder_kernel(%arg0: i32, %arg1: memref<4x8x1xi32, #tpu.memory_space<vmem>>, %arg2: memref<16x128xf32, #tpu.memory_space<vmem>>, %arg3: memref<4x8x128xf32, #tpu.memory_space<vmem>>, %arg4: memref<8x8x256xf32, #tpu.memory_space<vmem>>, %arg5: memref<256x128xf32, #tpu.memory_space<vmem>>, %arg6: memref<1x128xf32, #tpu.memory_space<vmem>>, %arg7: memref<384x1280xbf16, #tpu.memory_space<vmem>>, %arg8: memref<1x1280xf32, #tpu.memory_space<vmem>>, %arg9: memref<4x8x128xf32, #tpu.memory_space<vmem>>, %arg10: memref<4x8x128xf32, #tpu.memory_space<vmem>>, %arg11: memref<8x512xf32, #tpu.memory_space<vmem>>) attributes {dimension_semantics = [#tpu.dimension_semantics<parallel>], iteration_bounds = array<i64: 2>, scalar_prefetch = 0 : i64, scratch_operands = 0 : i64, tpu.core_type = #tpu.core_type<tc>, window_params = [{transform_indices = @transform_0, window_bounds = array<i64: 4, 8, 1>}, {pipeline_mode = #tpu.pipeline_mode<synchronous>, transform_indices = @transform_1, window_bounds = array<i64: 16, 128>}, {transform_indices = @transform_2, window_bounds = array<i64: 4, 8, 128>}, {transform_indices = @transform_3, window_bounds = array<i64: 8, 8, 256>}, {pipeline_mode = #tpu.pipeline_mode<synchronous>, transform_indices = @transform_4, window_bounds = array<i64: 256, 128>}, {pipeline_mode = #tpu.pipeline_mode<synchronous>, transform_indices = @transform_5, window_bounds = array<i64: 1, 128>}, {pipeline_mode = #tpu.pipeline_mode<synchronous>, transform_indices = @transform_6, window_bounds = array<i64: 384, 1280>}, {pipeline_mode = #tpu.pipeline_mode<synchronous>, transform_indices = @transform_7, window_bounds = array<i64: 1, 1280>}, {transform_indices = @transform_8, window_bounds = array<i64: 4, 8, 128>}, {transform_indices = @transform_9, window_bounds = array<i64: 4, 8, 128>}, {transform_indices = @transform_10, window_bounds = array<i64: 8, 512>}]} {
    %c0 = arith.constant 0 : index
    %c0_0 = arith.constant 0 : index
    %c0_1 = arith.constant 0 : index
    %0 = vector.load %arg3[%c0, %c0_0, %c0_1] : memref<4x8x128xf32, #tpu.memory_space<vmem>>, vector<1x8x128xf32>
    %1 = vector.shape_cast %0 : vector<1x8x128xf32> to vector<8x128xf32>
    %c1 = arith.constant 1 : index
    %c0_2 = arith.constant 0 : index
    %c0_3 = arith.constant 0 : index
    %2 = vector.load %arg3[%c1, %c0_2, %c0_3] : memref<4x8x128xf32, #tpu.memory_space<vmem>>, vector<1x8x128xf32>
    %3 = vector.shape_cast %2 : vector<1x8x128xf32> to vector<8x128xf32>
    %c2 = arith.constant 2 : index
    %c0_4 = arith.constant 0 : index
    %c0_5 = arith.constant 0 : index
    %4 = vector.load %arg3[%c2, %c0_4, %c0_5] : memref<4x8x128xf32, #tpu.memory_space<vmem>>, vector<1x8x128xf32>
    %5 = vector.shape_cast %4 : vector<1x8x128xf32> to vector<8x128xf32>
    %c3 = arith.constant 3 : index
    %c0_6 = arith.constant 0 : index
    %c0_7 = arith.constant 0 : index
    %6 = vector.load %arg3[%c3, %c0_6, %c0_7] : memref<4x8x128xf32, #tpu.memory_space<vmem>>, vector<1x8x128xf32>
    %7 = vector.shape_cast %6 : vector<1x8x128xf32> to vector<8x128xf32>
    %c0_i32 = arith.constant 0 : i32
    %c4_i32 = arith.constant 4 : i32
    %8 = arith.addi %c0_i32, %c4_i32 : i32
    %c1_i32 = arith.constant 1 : i32
    %9:4 = scf.for %arg12 = %c0_i32 to %8 step %c1_i32 iter_args(%arg13 = %1, %arg14 = %3, %arg15 = %5, %arg16 = %7) -> (vector<8x128xf32>, vector<8x128xf32>, vector<8x128xf32>, vector<8x128xf32>)  : i32 {
      %14 = arith.index_cast %arg12 : i32 to index
      %c0_14 = arith.constant 0 : index
      %c0_15 = arith.constant 0 : index
      %15 = vector.load %arg1[%14, %c0_14, %c0_15] : memref<4x8x1xi32, #tpu.memory_space<vmem>>, vector<1x8x1xi32>
      %16 = vector.shape_cast %15 : vector<1x8x1xi32> to vector<8x1xi32>
      %17 = tpu.iota {dimensions = array<i32: 1>} : vector<8x16xi32>
      %18 = vector.broadcast %16 : vector<8x1xi32> to vector<8x16xi32>
      %19 = arith.cmpi eq, %17, %18 : vector<8x16xi32>
      %20 = arith.extui %19 : vector<8x16xi1> to vector<8x16xi32>
      %21 = arith.sitofp %20 : vector<8x16xi32> to vector<8x16xf32>
      %c0_16 = arith.constant 0 : index
      %c0_17 = arith.constant 0 : index
      %22 = vector.load %arg2[%c0_16, %c0_17] : memref<16x128xf32, #tpu.memory_space<vmem>>, vector<16x128xf32>
      %cst = arith.constant dense<0.000000e+00> : vector<8x128xf32>
      %23 = tpu.matmul %21, %22, %cst {dimension_numbers = #tpu.dot_dimension_numbers<[1], [0], [0], [1], [0, 0, 1, 1], [], []>} : vector<8x16xf32>, vector<16x128xf32>, vector<8x128xf32> -> vector<8x128xf32>
      %24 = tpu.concatenate %23, %arg13 in 1 : vector<8x128xf32>, vector<8x128xf32> -> vector<8x256xf32>
      %c0_18 = arith.constant 0 : index
      %c0_19 = arith.constant 0 : index
      %25 = vector.load %arg5[%c0_18, %c0_19] : memref<256x128xf32, #tpu.memory_space<vmem>>, vector<256x128xf32>
      %cst_20 = arith.constant dense<0.000000e+00> : vector<8x128xf32>
      %26 = tpu.matmul %24, %25, %cst_20 {dimension_numbers = #tpu.dot_dimension_numbers<[1], [0], [0], [1], [0, 0, 1, 1], [], []>} : vector<8x256xf32>, vector<256x128xf32>, vector<8x128xf32> -> vector<8x128xf32>
      %c0_21 = arith.constant 0 : index
      %c0_22 = arith.constant 0 : index
      %27 = vector.load %arg6[%c0_21, %c0_22] : memref<1x128xf32, #tpu.memory_space<vmem>>, vector<1x128xf32>
      %28 = vector.broadcast %27 : vector<1x128xf32> to vector<8x128xf32>
      %29 = arith.addf %26, %28 : vector<8x128xf32>
      %cst_23 = arith.constant dense<0xFF800000> : vector<8xf32>
      %30 = vector.multi_reduction <maximumf>, %29, %cst_23 [1] : vector<8x128xf32> to vector<8xf32>
      %31 = vector.shape_cast %30 : vector<8xf32> to vector<8x1xf32>
      %32 = vector.broadcast %31 : vector<8x1xf32> to vector<8x128xf32>
      %33 = arith.subf %29, %32 : vector<8x128xf32>
      %34 = math.exp %33 : vector<8x128xf32>
      %cst_24 = arith.constant dense<0.000000e+00> : vector<8xf32>
      %35 = vector.multi_reduction <add>, %34, %cst_24 [1] : vector<8x128xf32> to vector<8xf32>
      %36 = vector.shape_cast %35 : vector<8xf32> to vector<8x1xf32>
      %37 = tpu.reciprocal %36 {approx = true} : vector<8x1xf32> -> vector<8x1xf32>
      %38 = vector.broadcast %37 : vector<8x1xf32> to vector<8x128xf32>
      %39 = arith.mulf %34, %38 : vector<8x128xf32>
      %40 = vector.extract_strided_slice %39 {offsets = [0, 0], sizes = [8, 1], strides = [1, 1]} : vector<8x128xf32> to vector<8x1xf32>
      %c0_25 = arith.constant 0 : index
      %c0_26 = arith.constant 0 : index
      %c0_27 = arith.constant 0 : index
      %41 = vector.load %arg4[%c0_25, %c0_26, %c0_27] : memref<8x8x256xf32, #tpu.memory_space<vmem>>, vector<1x8x256xf32>
      %42 = vector.shape_cast %41 : vector<1x8x256xf32> to vector<8x256xf32>
      %43 = vector.broadcast %40 : vector<8x1xf32> to vector<8x256xf32>
      %44 = arith.mulf %43, %42 : vector<8x256xf32>
      %45 = vector.extract_strided_slice %39 {offsets = [0, 1], sizes = [8, 1], strides = [1, 1]} : vector<8x128xf32> to vector<8x1xf32>
      %c1_28 = arith.constant 1 : index
      %c0_29 = arith.constant 0 : index
      %c0_30 = arith.constant 0 : index
      %46 = vector.load %arg4[%c1_28, %c0_29, %c0_30] : memref<8x8x256xf32, #tpu.memory_space<vmem>>, vector<1x8x256xf32>
      %47 = vector.shape_cast %46 : vector<1x8x256xf32> to vector<8x256xf32>
      %48 = vector.broadcast %45 : vector<8x1xf32> to vector<8x256xf32>
      %49 = arith.mulf %48, %47 : vector<8x256xf32>
      %50 = arith.addf %44, %49 : vector<8x256xf32>
      %51 = vector.extract_strided_slice %39 {offsets = [0, 2], sizes = [8, 1], strides = [1, 1]} : vector<8x128xf32> to vector<8x1xf32>
      %c2_31 = arith.constant 2 : index
      %c0_32 = arith.constant 0 : index
      %c0_33 = arith.constant 0 : index
      %52 = vector.load %arg4[%c2_31, %c0_32, %c0_33] : memref<8x8x256xf32, #tpu.memory_space<vmem>>, vector<1x8x256xf32>
      %53 = vector.shape_cast %52 : vector<1x8x256xf32> to vector<8x256xf32>
      %54 = vector.broadcast %51 : vector<8x1xf32> to vector<8x256xf32>
      %55 = arith.mulf %54, %53 : vector<8x256xf32>
      %56 = arith.addf %50, %55 : vector<8x256xf32>
      %57 = vector.extract_strided_slice %39 {offsets = [0, 3], sizes = [8, 1], strides = [1, 1]} : vector<8x128xf32> to vector<8x1xf32>
      %c3_34 = arith.constant 3 : index
      %c0_35 = arith.constant 0 : index
      %c0_36 = arith.constant 0 : index
      %58 = vector.load %arg4[%c3_34, %c0_35, %c0_36] : memref<8x8x256xf32, #tpu.memory_space<vmem>>, vector<1x8x256xf32>
      %59 = vector.shape_cast %58 : vector<1x8x256xf32> to vector<8x256xf32>
      %60 = vector.broadcast %57 : vector<8x1xf32> to vector<8x256xf32>
      %61 = arith.mulf %60, %59 : vector<8x256xf32>
      %62 = arith.addf %56, %61 : vector<8x256xf32>
      %63 = vector.extract_strided_slice %39 {offsets = [0, 4], sizes = [8, 1], strides = [1, 1]} : vector<8x128xf32> to vector<8x1xf32>
      %c4 = arith.constant 4 : index
      %c0_37 = arith.constant 0 : index
      %c0_38 = arith.constant 0 : index
      %64 = vector.load %arg4[%c4, %c0_37, %c0_38] : memref<8x8x256xf32, #tpu.memory_space<vmem>>, vector<1x8x256xf32>
      %65 = vector.shape_cast %64 : vector<1x8x256xf32> to vector<8x256xf32>
      %66 = vector.broadcast %63 : vector<8x1xf32> to vector<8x256xf32>
      %67 = arith.mulf %66, %65 : vector<8x256xf32>
      %68 = arith.addf %62, %67 : vector<8x256xf32>
      %69 = vector.extract_strided_slice %39 {offsets = [0, 5], sizes = [8, 1], strides = [1, 1]} : vector<8x128xf32> to vector<8x1xf32>
      %c5 = arith.constant 5 : index
      %c0_39 = arith.constant 0 : index
      %c0_40 = arith.constant 0 : index
      %70 = vector.load %arg4[%c5, %c0_39, %c0_40] : memref<8x8x256xf32, #tpu.memory_space<vmem>>, vector<1x8x256xf32>
      %71 = vector.shape_cast %70 : vector<1x8x256xf32> to vector<8x256xf32>
      %72 = vector.broadcast %69 : vector<8x1xf32> to vector<8x256xf32>
      %73 = arith.mulf %72, %71 : vector<8x256xf32>
      %74 = arith.addf %68, %73 : vector<8x256xf32>
      %75 = vector.extract_strided_slice %39 {offsets = [0, 6], sizes = [8, 1], strides = [1, 1]} : vector<8x128xf32> to vector<8x1xf32>
      %c6 = arith.constant 6 : index
      %c0_41 = arith.constant 0 : index
      %c0_42 = arith.constant 0 : index
      %76 = vector.load %arg4[%c6, %c0_41, %c0_42] : memref<8x8x256xf32, #tpu.memory_space<vmem>>, vector<1x8x256xf32>
      %77 = vector.shape_cast %76 : vector<1x8x256xf32> to vector<8x256xf32>
      %78 = vector.broadcast %75 : vector<8x1xf32> to vector<8x256xf32>
      %79 = arith.mulf %78, %77 : vector<8x256xf32>
      %80 = arith.addf %74, %79 : vector<8x256xf32>
      %81 = vector.extract_strided_slice %39 {offsets = [0, 7], sizes = [8, 1], strides = [1, 1]} : vector<8x128xf32> to vector<8x1xf32>
      %c7 = arith.constant 7 : index
      %c0_43 = arith.constant 0 : index
      %c0_44 = arith.constant 0 : index
      %82 = vector.load %arg4[%c7, %c0_43, %c0_44] : memref<8x8x256xf32, #tpu.memory_space<vmem>>, vector<1x8x256xf32>
      %83 = vector.shape_cast %82 : vector<1x8x256xf32> to vector<8x256xf32>
      %84 = vector.broadcast %81 : vector<8x1xf32> to vector<8x256xf32>
      %85 = arith.mulf %84, %83 : vector<8x256xf32>
      %86 = arith.addf %80, %85 : vector<8x256xf32>
      %87 = tpu.concatenate %23, %86 in 1 : vector<8x128xf32>, vector<8x256xf32> -> vector<8x384xf32>
      %88 = arith.truncf %87 : vector<8x384xf32> to vector<8x384xbf16>
      %c0_45 = arith.constant 0 : index
      %c0_46 = arith.constant 0 : index
      %89 = vector.load %arg7[%c0_45, %c0_46] : memref<384x1280xbf16, #tpu.memory_space<vmem>>, vector<384x128xbf16>
      %cst_47 = arith.constant dense<0.000000e+00> : vector<8x128xf32>
      %90 = tpu.matmul %88, %89, %cst_47 {dimension_numbers = #tpu.dot_dimension_numbers<[1], [0], [0], [1], [0, 0, 1, 1], [], []>} : vector<8x384xbf16>, vector<384x128xbf16>, vector<8x128xf32> -> vector<8x128xf32>
      %c0_48 = arith.constant 0 : index
      %c0_49 = arith.constant 0 : index
      %91 = vector.load %arg8[%c0_48, %c0_49] : memref<1x1280xf32, #tpu.memory_space<vmem>>, vector<1x128xf32>
      %92 = vector.broadcast %91 : vector<1x128xf32> to vector<8x128xf32>
      %93 = arith.addf %90, %92 : vector<8x128xf32>
      %cst_50 = arith.constant 0.000000e+00 : f32
      %94 = vector.broadcast %cst_50 : f32 to vector<8x128xf32>
      %95 = arith.maximumf %93, %94 : vector<8x128xf32>
      %96 = tpu.concatenate %95, %arg13, %arg14 in 1 : vector<8x128xf32>, vector<8x128xf32>, vector<8x128xf32> -> vector<8x384xf32>
      %97 = arith.truncf %96 : vector<8x384xf32> to vector<8x384xbf16>
      %c0_51 = arith.constant 0 : index
      %c128_52 = arith.constant 128 : index
      %98 = vector.load %arg7[%c0_51, %c128_52] : memref<384x1280xbf16, #tpu.memory_space<vmem>>, vector<384x1024xbf16>
      %cst_53 = arith.constant dense<0.000000e+00> : vector<8x1024xf32>
      %99 = tpu.matmul %97, %98, %cst_53 {dimension_numbers = #tpu.dot_dimension_numbers<[1], [0], [0], [1], [0, 0, 1, 1], [], []>} : vector<8x384xbf16>, vector<384x1024xbf16>, vector<8x1024xf32> -> vector<8x1024xf32>
      %c0_54 = arith.constant 0 : index
      %c128_55 = arith.constant 128 : index
      %100 = vector.load %arg8[%c0_54, %c128_55] : memref<1x1280xf32, #tpu.memory_space<vmem>>, vector<1x1024xf32>
      %101 = vector.broadcast %100 : vector<1x1024xf32> to vector<8x1024xf32>
      %102 = arith.addf %99, %101 : vector<8x1024xf32>
      %103 = vector.extract_strided_slice %102 {offsets = [0, 0], sizes = [8, 768], strides = [1, 1]} : vector<8x1024xf32> to vector<8x768xf32>
      %104 = arith.negf %103 : vector<8x768xf32>
      %105 = math.exp %104 : vector<8x768xf32>
      %cst_56 = arith.constant 1.000000e+00 : f32
      %106 = vector.broadcast %cst_56 : f32 to vector<8x768xf32>
      %107 = arith.addf %106, %105 : vector<8x768xf32>
      %108 = arith.divf %106, %107 : vector<8x768xf32>
      %109 = vector.extract_strided_slice %102 {offsets = [0, 768], sizes = [8, 256], strides = [1, 1]} : vector<8x1024xf32> to vector<8x256xf32>
      %110 = math.tanh %109 : vector<8x256xf32>
      %111 = vector.extract_strided_slice %108 {offsets = [0, 0], sizes = [8, 128], strides = [1, 1]} : vector<8x768xf32> to vector<8x128xf32>
      %112 = vector.extract_strided_slice %108 {offsets = [0, 128], sizes = [8, 128], strides = [1, 1]} : vector<8x768xf32> to vector<8x128xf32>
      %113 = vector.extract_strided_slice %108 {offsets = [0, 256], sizes = [8, 128], strides = [1, 1]} : vector<8x768xf32> to vector<8x128xf32>
      %114 = vector.extract_strided_slice %108 {offsets = [0, 384], sizes = [8, 128], strides = [1, 1]} : vector<8x768xf32> to vector<8x128xf32>
      %115 = vector.extract_strided_slice %108 {offsets = [0, 512], sizes = [8, 128], strides = [1, 1]} : vector<8x768xf32> to vector<8x128xf32>
      %116 = vector.extract_strided_slice %108 {offsets = [0, 640], sizes = [8, 128], strides = [1, 1]} : vector<8x768xf32> to vector<8x128xf32>
      %117 = vector.extract_strided_slice %110 {offsets = [0, 0], sizes = [8, 128], strides = [1, 1]} : vector<8x256xf32> to vector<8x128xf32>
      %118 = vector.extract_strided_slice %110 {offsets = [0, 128], sizes = [8, 128], strides = [1, 1]} : vector<8x256xf32> to vector<8x128xf32>
      %119 = arith.mulf %112, %arg15 : vector<8x128xf32>
      %120 = arith.mulf %111, %117 : vector<8x128xf32>
      %121 = arith.addf %119, %120 : vector<8x128xf32>
      %122 = math.tanh %121 : vector<8x128xf32>
      %123 = arith.mulf %113, %122 : vector<8x128xf32>
      %124 = arith.mulf %115, %arg16 : vector<8x128xf32>
      %125 = arith.mulf %114, %118 : vector<8x128xf32>
      %126 = arith.addf %124, %125 : vector<8x128xf32>
      %127 = math.tanh %126 : vector<8x128xf32>
      %128 = arith.mulf %116, %127 : vector<8x128xf32>
      %129 = tpu.concatenate %123, %128 in 1 : vector<8x128xf32>, vector<8x128xf32> -> vector<8x256xf32>
      %130 = arith.truncf %129 : vector<8x256xf32> to vector<8x256xbf16>
      %c0_57 = arith.constant 0 : index
      %c1152 = arith.constant 1152 : index
      %131 = vector.load %arg7[%c0_57, %c1152] : memref<384x1280xbf16, #tpu.memory_space<vmem>>, vector<256x128xbf16>
      %cst_58 = arith.constant dense<0.000000e+00> : vector<8x128xf32>
      %132 = tpu.matmul %130, %131, %cst_58 {dimension_numbers = #tpu.dot_dimension_numbers<[1], [0], [0], [1], [0, 0, 1, 1], [], []>} : vector<8x256xbf16>, vector<256x128xbf16>, vector<8x128xf32> -> vector<8x128xf32>
      %c0_59 = arith.constant 0 : index
      %c1152_60 = arith.constant 1152 : index
      %133 = vector.load %arg8[%c0_59, %c1152_60] : memref<1x1280xf32, #tpu.memory_space<vmem>>, vector<1x128xf32>
      %134 = vector.broadcast %133 : vector<1x128xf32> to vector<8x128xf32>
      %135 = arith.addf %132, %134 : vector<8x128xf32>
      %cst_61 = arith.constant dense<0xFF800000> : vector<8xf32>
      %136 = vector.multi_reduction <maximumf>, %135, %cst_61 [1] : vector<8x128xf32> to vector<8xf32>
      %137 = vector.shape_cast %136 : vector<8xf32> to vector<8x1xf32>
      %138 = vector.broadcast %137 : vector<8x1xf32> to vector<8x128xf32>
      %139 = arith.subf %135, %138 : vector<8x128xf32>
      %140 = math.exp %139 : vector<8x128xf32>
      %cst_62 = arith.constant dense<0.000000e+00> : vector<8xf32>
      %141 = vector.multi_reduction <add>, %140, %cst_62 [1] : vector<8x128xf32> to vector<8xf32>
      %142 = vector.shape_cast %141 : vector<8xf32> to vector<8x1xf32>
      %143 = math.log %142 : vector<8x1xf32>
      %144 = vector.broadcast %143 : vector<8x1xf32> to vector<8x128xf32>
      %145 = arith.subf %139, %144 : vector<8x128xf32>
      %146 = arith.index_cast %arg12 : i32 to index
      %c0_63 = arith.constant 0 : index
      %c0_64 = arith.constant 0 : index
      %147 = vector.load %arg9[%146, %c0_63, %c0_64] : memref<4x8x128xf32, #tpu.memory_space<vmem>>, vector<1x8x128xf32>
      %148 = vector.shape_cast %147 : vector<1x8x128xf32> to vector<8x128xf32>
      %149 = vector.shape_cast %145 : vector<8x128xf32> to vector<1x8x128xf32>
      tpu.vector_store %arg9[%146, %c0_63, %c0_64], %149 {strides = array<i32>} : memref<4x8x128xf32, #tpu.memory_space<vmem>>, vector<1x8x128xf32>,
      %150 = arith.index_cast %arg12 : i32 to index
      %c0_65 = arith.constant 0 : index
      %c0_66 = arith.constant 0 : index
      %151 = vector.load %arg10[%150, %c0_65, %c0_66] : memref<4x8x128xf32, #tpu.memory_space<vmem>>, vector<1x8x128xf32>
      %152 = vector.shape_cast %151 : vector<1x8x128xf32> to vector<8x128xf32>
      %153 = vector.shape_cast %39 : vector<8x128xf32> to vector<1x8x128xf32>
      tpu.vector_store %arg10[%150, %c0_65, %c0_66], %153 {strides = array<i32>} : memref<4x8x128xf32, #tpu.memory_space<vmem>>, vector<1x8x128xf32>,
      scf.yield %123, %128, %121, %126 : vector<8x128xf32>, vector<8x128xf32>, vector<8x128xf32>, vector<8x128xf32>
    }
    %c4_i32_8 = arith.constant 4 : i32
    %c0_9 = arith.constant 0 : index
    %c0_10 = arith.constant 0 : index
    %10 = vector.load %arg11[%c0_9, %c0_10] : memref<8x512xf32, #tpu.memory_space<vmem>>, vector<8x128xf32>
    tpu.vector_store %arg11[%c0_9, %c0_10], %9#0 {strides = array<i32>} : memref<8x512xf32, #tpu.memory_space<vmem>>, vector<8x128xf32>,
    %c0_11 = arith.constant 0 : index
    %c128 = arith.constant 128 : index
    %11 = vector.load %arg11[%c0_11, %c128] : memref<8x512xf32, #tpu.memory_space<vmem>>, vector<8x128xf32>
    tpu.vector_store %arg11[%c0_11, %c128], %9#1 {strides = array<i32>} : memref<8x512xf32, #tpu.memory_space<vmem>>, vector<8x128xf32>,
    %c0_12 = arith.constant 0 : index
    %c256 = arith.constant 256 : index
    %12 = vector.load %arg11[%c0_12, %c256] : memref<8x512xf32, #tpu.memory_space<vmem>>, vector<8x128xf32>
    tpu.vector_store %arg11[%c0_12, %c256], %9#2 {strides = array<i32>} : memref<8x512xf32, #tpu.memory_space<vmem>>, vector<8x128xf32>,
    %c0_13 = arith.constant 0 : index
    %c384 = arith.constant 384 : index
    %13 = vector.load %arg11[%c0_13, %c384] : memref<8x512xf32, #tpu.memory_space<vmem>>, vector<8x128xf32>
    tpu.vector_store %arg11[%c0_13, %c384], %9#3 {strides = array<i32>} : memref<8x512xf32, #tpu.memory_space<vmem>>, vector<8x128xf32>,
    return
  }
  func.func @transform_0(%arg0: i32) -> (i32, i32, i32) {
    %c0_i32 = arith.constant 0 : i32
    %c0_i32_0 = arith.constant 0 : i32
    %c0_i32_1 = arith.constant 0 : i32
    return %c0_i32, %arg0, %c0_i32_0 : i32, i32, i32
  }
  func.func @transform_1(%arg0: i32) -> (i32, i32) {
    %c0_i32 = arith.constant 0 : i32
    %c0_i32_0 = arith.constant 0 : i32
    %c0_i32_1 = arith.constant 0 : i32
    return %c0_i32, %c0_i32_0 : i32, i32
  }
  func.func @transform_2(%arg0: i32) -> (i32, i32, i32) {
    %c0_i32 = arith.constant 0 : i32
    %c0_i32_0 = arith.constant 0 : i32
    %c0_i32_1 = arith.constant 0 : i32
    return %c0_i32, %arg0, %c0_i32_0 : i32, i32, i32
  }
  func.func @transform_3(%arg0: i32) -> (i32, i32, i32) {
    %c0_i32 = arith.constant 0 : i32
    %c0_i32_0 = arith.constant 0 : i32
    %c0_i32_1 = arith.constant 0 : i32
    return %c0_i32, %arg0, %c0_i32_0 : i32, i32, i32
  }
  func.func @transform_4(%arg0: i32) -> (i32, i32) {
    %c0_i32 = arith.constant 0 : i32
    %c0_i32_0 = arith.constant 0 : i32
    %c0_i32_1 = arith.constant 0 : i32
    return %c0_i32, %c0_i32_0 : i32, i32
  }
  func.func @transform_5(%arg0: i32) -> (i32, i32) {
    %c0_i32 = arith.constant 0 : i32
    %c0_i32_0 = arith.constant 0 : i32
    %c0_i32_1 = arith.constant 0 : i32
    return %c0_i32, %c0_i32_0 : i32, i32
  }
  func.func @transform_6(%arg0: i32) -> (i32, i32) {
    %c0_i32 = arith.constant 0 : i32
    %c0_i32_0 = arith.constant 0 : i32
    %c0_i32_1 = arith.constant 0 : i32
    return %c0_i32, %c0_i32_0 : i32, i32
  }
  func.func @transform_7(%arg0: i32) -> (i32, i32) {
    %c0_i32 = arith.constant 0 : i32
    %c0_i32_0 = arith.constant 0 : i32
    %c0_i32_1 = arith.constant 0 : i32
    return %c0_i32, %c0_i32_0 : i32, i32
  }
  func.func @transform_8(%arg0: i32) -> (i32, i32, i32) {
    %c0_i32 = arith.constant 0 : i32
    %c0_i32_0 = arith.constant 0 : i32
    %c0_i32_1 = arith.constant 0 : i32
    return %c0_i32, %arg0, %c0_i32_0 : i32, i32, i32
  }
  func.func @transform_9(%arg0: i32) -> (i32, i32, i32) {
    %c0_i32 = arith.constant 0 : i32
    %c0_i32_0 = arith.constant 0 : i32
    %c0_i32_1 = arith.constant 0 : i32
    return %c0_i32, %arg0, %c0_i32_0 : i32, i32, i32
  }
  func.func @transform_10(%arg0: i32) -> (i32, i32) {
    %c0_i32 = arith.constant 0 : i32
    %c0_i32_0 = arith.constant 0 : i32
    return %arg0, %c0_i32 : i32, i32
  }
}

</mosaic_0001>

<llo_original>
// kernel: attn_decoder_decode.1
$region0: #{attn_decoder_decode.1}
  #allocation0 [shape = 'u32[]', space=smem, size = 0x4, offset = 0x4, fixed_abs, tag = 'smem constant byte address 0x4 - core index']
  #allocation1 [shape = 'u32[144,128]{1,0:T(1,128)}', space=vmem, size = 0x12000, scoped, tag = 'internal scratch']
  %s0 = inlined_call_operand.vmem [shape: s32[4,16,1], index: 0, kind: input, shape index: {}]
  %s1 = inlined_call_operand.vmem [shape: f32[16,128], index: 1, kind: input, shape index: {}]
  %s2 = inlined_call_operand.vmem [shape: f32[4,16,128], index: 2, kind: input, shape index: {}]
  %s3 = inlined_call_operand.vmem [shape: f32[8,16,256], index: 3, kind: input, shape index: {}]
  %s4 = inlined_call_operand.vmem [shape: f32[256,128], index: 4, kind: input, shape index: {}]
  %s5 = inlined_call_operand.vmem [shape: f32[1,128], index: 5, kind: input, shape index: {}]
  %s6 = inlined_call_operand.hbm [shape: bf16[384,1280], index: 6, kind: input, shape index: {}]
  %s7 = inlined_call_operand.vmem [shape: f32[1,1280], index: 7, kind: input, shape index: {}]
  %s8 = inlined_call_operand.vmem [shape: f32[4,16,128], index: 8, kind: output, shape index: {0}]
  %s9 = inlined_call_operand.vmem [shape: f32[4,16,128], index: 9, kind: output, shape index: {1}]
  %s10 = inlined_call_operand.vmem [shape: f32[16,512], index: 10, kind: output, shape index: {2}]
  %11 = xla_tuple %s8, %s9, %s10
  %s12 = sld [smem:[#allocation0]]
  $region259: #{attn_decoder_decode.1} parent=0
    _
  %s14 = ssub.s32 1, %s12
  %s15 = scalar_select 0, %s14, %s12
  $region1: #{attn_decoder_decode.1} parent=0
    #allocation2 [shape = 'u8[32768]{0}', space=vmem, size = 0x8000, scoped, tag = 'input window, operand 0']
    #allocation3 [shape = 'u8[32768]{0}', space=vmem, size = 0x8000, scoped, tag = 'input window, operand 2']
    #allocation4 [shape = 'u8[131072]{0}', space=vmem, size = 0x20000, scoped, tag = 'input window, operand 3']
    #allocation5 [shape = 'u8[983040]{0}', space=vmem, size = 0xf0000, scoped, tag = 'input window, operand 6, single buffered']
    #allocation6 [shape = 's32[2]{0}', space=sflag, size = 0x8, scoped, tag = 'scoped memory for attn_decoder_decode.1']
    #allocation7 [shape = 'u8[32768]{0}', space=vmem, size = 0x8000, scoped, tag = 'output window, operand 0']
    #allocation8 [shape = 'u8[32768]{0}', space=vmem, size = 0x8000, scoped, tag = 'output window, operand 1']
    %16 = vsyncpa [#allocation6], 0
    loop: start=0, step=1, limit=4
    $region2: #{attn_decoder_decode.1} parent=1 // loop_pre_header
      _
    $region3: #{attn_decoder_decode.1} parent=1 // loop_header
      %s18 = sphi 0, %s22
      %p19 = scmp.ge.s32.totalorder %s18, 4
      %s28 = sphi 0, %s30
      %s31 = sphi 0, %s28
      %s32 = sphi 0, %s31
      %s48 = sphi 0, %s32
      %s52 = sphi 0, %s52
      %s54 = sphi 0, %s52
      %s55 = sphi 0, %s54
      %s69 = sphi 0, %s55
      %s75 = sphi 0, %s77
      %s78 = sphi 0, %s75
      %s79 = sphi 0, %s78
      %s95 = sphi 0, %s79
      %s101 = sphi 0, %s103
      %s104 = sphi 0, %s101
      %s105 = sphi 0, %s104
      %s121 = sphi 0, %s105
      %s125 = sphi 0, %s125
      %s127 = sphi 0, %s125
      %s128 = sphi 0, %s127
      %s142 = sphi 0, %s128
      %s146 = sphi 0, %s146
      %s148 = sphi 0, %s146
      %s149 = sphi 0, %s148
      %s163 = sphi 0, %s149
      %s167 = sphi 0, %s167
      %s169 = sphi 0, %s167
      %s170 = sphi 0, %s169
      %s184 = sphi 0, %s170
      %s188 = sphi 0, %s188
      %s190 = sphi 0, %s188
      %s191 = sphi 0, %s190
      %s205 = sphi 0, %s191
      %s211 = sphi 0, %s213
      %s214 = sphi 0, %s211
      %s215 = sphi 0, %s214
      %s231 = sphi 0, %s215
      %s237 = sphi 0, %s239
      %s240 = sphi 0, %s237
      %s241 = sphi 0, %s240
      %s257 = sphi 0, %s241
      %s263 = sphi 0, %s265
      %s266 = sphi 0, %s263
      %s267 = sphi 0, %s266
      %s283 = sphi 0, %s267
    $region4: #{attn_decoder_decode.1} parent=1 // loop_header_branch
      %21 = sbr.rel (%p19) target = $region8
    $region5: #{attn_decoder_decode.1} parent=1 // loop_body
      %s23 = ssub.s32 %s18, 1
      %s24 = ssub.s32 %s18, 2
      %s25 = sadd.s32 %s18, 1
      %s26 = ssub.s32 %s18, %s25
      %p27 = scmp.eq.s32.totalorder %s26, 0
      %s29 = sadd.s32 %s28, 1
      %s30 = scalar_select %p27, %s28, %s29
      %p33 = pneg %p27
      %p34 = scmp.eq.s32.totalorder %s18, 1
      %p35 = por %p33, %p34
      %p36 = scmp.ne.s32.totalorder %s28, %s31
      %p37 = scmp.eq.s32.totalorder %s18, 0
      %p38 = por %p36, %p37
      %p39 = scmp.ne.s32.totalorder %s28, %s31
      %p40 = scmp.eq.s32.totalorder %s23, 1
      %p41 = por %p39, %p40
      %p42 = scmp.ne.s32.totalorder %s31, %s32
      %p43 = scmp.eq.s32.totalorder %s23, 0
      %p44 = por %p42, %p43
      %p45 = scmp.ne.s32.totalorder %s31, %s32
      %p46 = scmp.eq.s32.totalorder %s24, 1
      %p47 = por %p45, %p46
      %p49 = scmp.ne.s32.totalorder %s32, %s48
      %p50 = scmp.eq.s32.totalorder %s24, 0
      %p51 = por %p49, %p50
      %s53 = sadd.s32 %s52, 1
      %p56 = scmp.eq.s32.totalorder %s18, 1
      %p57 = scmp.ne.s32.totalorder %s52, %s54
      %p58 = scmp.eq.s32.totalorder %s18, 0
      %p59 = por %p57, %p58
      %p60 = scmp.ne.s32.totalorder %s52, %s54
      %p61 = scmp.eq.s32.totalorder %s23, 1
      %p62 = por %p60, %p61
      %p63 = scmp.ne.s32.totalorder %s54, %s55
      %p64 = scmp.eq.s32.totalorder %s23, 0
      %p65 = por %p63, %p64
      %p66 = scmp.ne.s32.totalorder %s54, %s55
      %p67 = scmp.eq.s32.totalorder %s24, 1
      %p68 = por %p66, %p67
      %p70 = scmp.ne.s32.totalorder %s55, %s69
      %p71 = scmp.eq.s32.totalorder %s24, 0
      %p72 = por %p70, %p71
      %s73 = ssub.s32 %s18, %s25
      %p74 = scmp.eq.s32.totalorder %s73, 0
      %s76 = sadd.s32 %s75, 1
      %s77 = scalar_select %p74, %s75, %s76
      %p80 = pneg %p74
      %p81 = scmp.eq.s32.totalorder %s18, 1
      %p82 = por %p80, %p81
      %p83 = scmp.ne.s32.totalorder %s75, %s78
      %p84 = scmp.eq.s32.totalorder %s18, 0
      %p85 = por %p83, %p84
      %p86 = scmp.ne.s32.totalorder %s75, %s78
      %p87 = scmp.eq.s32.totalorder %s23, 1
      %p88 = por %p86, %p87
      %p89 = scmp.ne.s32.totalorder %s78, %s79
      %p90 = scmp.eq.s32.totalorder %s23, 0
      %p91 = por %p89, %p90
      %p92 = scmp.ne.s32.totalorder %s78, %s79
      %p93 = scmp.eq.s32.totalorder %s24, 1
      %p94 = por %p92, %p93
      %p96 = scmp.ne.s32.totalorder %s79, %s95
      %p97 = scmp.eq.s32.totalorder %s24, 0
      %p98 = por %p96, %p97
      %s99 = ssub.s32 %s18, %s25
      %p100 = scmp.eq.s32.totalorder %s99, 0
      %s102 = sadd.s32 %s101, 1
      %s103 = scalar_select %p100, %s101, %s102
      %p106 = pneg %p100
      %p107 = scmp.eq.s32.totalorder %s18, 1
      %p108 = por %p106, %p107
      %p109 = scmp.ne.s32.totalorder %s101, %s104
      %p110 = scmp.eq.s32.totalorder %s18, 0
      %p111 = por %p109, %p110
      %p112 = scmp.ne.s32.totalorder %s101, %s104
      %p113 = scmp.eq.s32.totalorder %s23, 1
      %p114 = por %p112, %p113
      %p115 = scmp.ne.s32.totalorder %s104, %s105
      %p116 = scmp.eq.s32.totalorder %s23, 0
      %p117 = por %p115, %p116
      %p118 = scmp.ne.s32.totalorder %s104, %s105
      %p119 = scmp.eq.s32.totalorder %s24, 1
      %p120 = por %p118, %p119
      %p122 = scmp.ne.s32.totalorder %s105, %s121
      %p123 = scmp.eq.s32.totalorder %s24, 0
      %p124 = por %p122, %p123
      %s126 = sadd.s32 %s125, 1
      %p129 = scmp.eq.s32.totalorder %s18, 1
      %p130 = scmp.ne.s32.totalorder %s125, %s127
      %p131 = scmp.eq.s32.totalorder %s18, 0
      %p132 = por %p130, %p131
      %p133 = scmp.ne.s32.totalorder %s125, %s127
      %p134 = scmp.eq.s32.totalorder %s23, 1
      %p135 = por %p133, %p134
      %p136 = scmp.ne.s32.totalorder %s127, %s128
      %p137 = scmp.eq.s32.totalorder %s23, 0
      %p138 = por %p136, %p137
      %p139 = scmp.ne.s32.totalorder %s127, %s128
      %p140 = scmp.eq.s32.totalorder %s24, 1
      %p141 = por %p139, %p140
      %p143 = scmp.ne.s32.totalorder %s128, %s142
      %p144 = scmp.eq.s32.totalorder %s24, 0
      %p145 = por %p143, %p144
      %s147 = sadd.s32 %s146, 1
      %p150 = scmp.eq.s32.totalorder %s18, 1
      %p151 = scmp.ne.s32.totalorder %s146, %s148
      %p152 = scmp.eq.s32.totalorder %s18, 0
      %p153 = por %p151, %p152
      %p154 = scmp.ne.s32.totalorder %s146, %s148
      %p155 = scmp.eq.s32.totalorder %s23, 1
      %p156 = por %p154, %p155
      %p157 = scmp.ne.s32.totalorder %s148, %s149
      %p158 = scmp.eq.s32.totalorder %s23, 0
      %p159 = por %p157, %p158
      %p160 = scmp.ne.s32.totalorder %s148, %s149
      %p161 = scmp.eq.s32.totalorder %s24, 1
      %p162 = por %p160, %p161
      %p164 = scmp.ne.s32.totalorder %s149, %s163
      %p165 = scmp.eq.s32.totalorder %s24, 0
      %p166 = por %p164, %p165
      %s168 = sadd.s32 %s167, 1
      %p171 = scmp.eq.s32.totalorder %s18, 1
      %p172 = scmp.ne.s32.totalorder %s167, %s169
      %p173 = scmp.eq.s32.totalorder %s18, 0
      %p174 = por %p172, %p173
      %p175 = scmp.ne.s32.totalorder %s167, %s169
      %p176 = scmp.eq.s32.totalorder %s23, 1
      %p177 = por %p175, %p176
      %p178 = scmp.ne.s32.totalorder %s169, %s170
      %p179 = scmp.eq.s32.totalorder %s23, 0
      %p180 = por %p178, %p179
      %p181 = scmp.ne.s32.totalorder %s169, %s170
      %p182 = scmp.eq.s32.totalorder %s24, 1
      %p183 = por %p181, %p182
      %p185 = scmp.ne.s32.totalorder %s170, %s184
      %p186 = scmp.eq.s32.totalorder %s24, 0
      %p187 = por %p185, %p186
      %s189 = sadd.s32 %s188, 1
      %p192 = scmp.eq.s32.totalorder %s18, 1
      %p193 = scmp.ne.s32.totalorder %s188, %s190
      %p194 = scmp.eq.s32.totalorder %s18, 0
      %p195 = por %p193, %p194
      %p196 = scmp.ne.s32.totalorder %s188, %s190
      %p197 = scmp.eq.s32.totalorder %s23, 1
      %p198 = por %p196, %p197
      %p199 = scmp.ne.s32.totalorder %s190, %s191
      %p200 = scmp.eq.s32.totalorder %s23, 0
      %p201 = por %p199, %p200
      %p202 = scmp.ne.s32.totalorder %s190, %s191
      %p203 = scmp.eq.s32.totalorder %s24, 1
      %p204 = por %p202, %p203
      %p206 = scmp.ne.s32.totalorder %s191, %s205
      %p207 = scmp.eq.s32.totalorder %s24, 0
      %p208 = por %p206, %p207
      %s209 = ssub.s32 %s18, %s25
      %p210 = scmp.eq.s32.totalorder %s209, 0
      %s212 = sadd.s32 %s211, 1
      %s213 = scalar_select %p210, %s211, %s212
      %p216 = pneg %p210
      %p217 = scmp.eq.s32.totalorder %s18, 1
      %p218 = por %p216, %p217
      %p219 = scmp.ne.s32.totalorder %s211, %s214
      %p220 = scmp.eq.s32.totalorder %s18, 0
      %p221 = por %p219, %p220
      %p222 = scmp.ne.s32.totalorder %s211, %s214
      %p223 = scmp.eq.s32.totalorder %s23, 1
      %p224 = por %p222, %p223
      %p225 = scmp.ne.s32.totalorder %s214, %s215
      %p226 = scmp.eq.s32.totalorder %s23, 0
      %p227 = por %p225, %p226
      %p228 = scmp.ne.s32.totalorder %s214, %s215
      %p229 = scmp.eq.s32.totalorder %s24, 1
      %p230 = por %p228, %p229
      %p232 = scmp.ne.s32.totalorder %s215, %s231
      %p233 = scmp.eq.s32.totalorder %s24, 0
      %p234 = por %p232, %p233
      %s235 = ssub.s32 %s18, %s25
      %p236 = scmp.eq.s32.totalorder %s235, 0
      %s238 = sadd.s32 %s237, 1
      %s239 = scalar_select %p236, %s237, %s238
      %p242 = pneg %p236
      %p243 = scmp.eq.s32.totalorder %s18, 1
      %p244 = por %p242, %p243
      %p245 = scmp.ne.s32.totalorder %s237, %s240
      %p246 = scmp.eq.s32.totalorder %s18, 0
      %p247 = por %p245, %p246
      %p248 = scmp.ne.s32.totalorder %s237, %s240
      %p249 = scmp.eq.s32.totalorder %s23, 1
      %p250 = por %p248, %p249
      %p251 = scmp.ne.s32.totalorder %s240, %s241
      %p252 = scmp.eq.s32.totalorder %s23, 0
      %p253 = por %p251, %p252
      %p254 = scmp.ne.s32.totalorder %s240, %s241
      %p255 = scmp.eq.s32.totalorder %s24, 1
      %p256 = por %p254, %p255
      %p258 = scmp.ne.s32.totalorder %s241, %s257
      %p259 = scmp.eq.s32.totalorder %s24, 0
      %p260 = por %p258, %p259
      %s261 = ssub.s32 %s18, %s25
      %p262 = scmp.eq.s32.totalorder %s261, 0
      %s264 = sadd.s32 %s263, 1
      %s265 = scalar_select %p262, %s263, %s264
      %p268 = pneg %p262
      %p269 = scmp.eq.s32.totalorder %s18, 1
      %p270 = por %p268, %p269
      %p271 = scmp.ne.s32.totalorder %s263, %s266
      %p272 = scmp.eq.s32.totalorder %s18, 0
      %p273 = por %p271, %p272
      %p274 = scmp.ne.s32.totalorder %s263, %s266
      %p275 = scmp.eq.s32.totalorder %s23, 1
      %p276 = por %p274, %p275
      %p277 = scmp.ne.s32.totalorder %s266, %s267
      %p278 = scmp.eq.s32.totalorder %s23, 0
      %p279 = por %p277, %p278
      %p280 = scmp.ne.s32.totalorder %s266, %s267
      %p281 = scmp.eq.s32.totalorder %s24, 1
      %p282 = por %p280, %p281
      %p284 = scmp.ne.s32.totalorder %s267, %s283
      %p285 = scmp.eq.s32.totalorder %s24, 0
      %p286 = por %p284, %p285
      %p287 = scmp.le.s32.totalorder 1, %s18
      %p288 = scmp.lt.s32.totalorder %s18, 3
      %p289 = pnand %p287, %p288
      %p290 = pneg %p289
      // Predicated region
      $region9: #{attn_decoder_decode.1} parent=5 // pred_check
        _
      $region10: #{attn_decoder_decode.1} parent=5 // pred_check_branch
        %292 = sbr.rel (%p289) target = $region12
      $region11: #{attn_decoder_decode.1} parent=5 // pred_region
        %s293 = ssub.s32 %s18, 1
        // Predicated region
        $region13: #{attn_decoder_decode.1} parent=11 // pred_check
          %p294 = pneg %p65
        $region14: #{attn_decoder_decode.1} parent=11 // pred_check_branch
          %296 = sbr.rel (%p294) target = $region16
        $region15: #{attn_decoder_decode.1} parent=11 // pred_region
          _
        $region16: #{attn_decoder_decode.1} parent=11 // pred_fallthru
          _
        // Predicated region
        $region17: #{attn_decoder_decode.1} parent=11 // pred_check
          %p297 = pneg %p138
        $region18: #{attn_decoder_decode.1} parent=11 // pred_check_branch
          %299 = sbr.rel (%p297) target = $region20
        $region19: #{attn_decoder_decode.1} parent=11 // pred_region
          _
        $region20: #{attn_decoder_decode.1} parent=11 // pred_fallthru
          _
        // Predicated region
        $region21: #{attn_decoder_decode.1} parent=11 // pred_check
          %p300 = pneg %p159
        $region22: #{attn_decoder_decode.1} parent=11 // pred_check_branch
          %302 = sbr.rel (%p300) target = $region24
        $region23: #{attn_decoder_decode.1} parent=11 // pred_region
          _
        $region24: #{attn_decoder_decode.1} parent=11 // pred_fallthru
          _
        // Predicated region
        $region25: #{attn_decoder_decode.1} parent=11 // pred_check
          %p303 = pneg %p180
        $region26: #{attn_decoder_decode.1} parent=11 // pred_check_branch
          %305 = sbr.rel (%p303) target = $region28
        $region27: #{attn_decoder_decode.1} parent=11 // pred_region
          %s307 = ssub.s32 30720, 30720
          %308 = vsyncadd [#allocation6], %s307
          %s309 = sshll.u32 [#allocation5], 4
          %s310 = int_to_ptr.vmem [resolvable:$true] %s309
          %315 = dma.hbm_to_vmem [thread:$0]  %s6, 30720, %s310, [#allocation6], 640, 640, 40
        $region28: #{attn_decoder_decode.1} parent=11 // pred_fallthru
          _
        // Predicated region
        $region29: #{attn_decoder_decode.1} parent=11 // pred_check
          %p316 = pneg %p201
        $region30: #{attn_decoder_decode.1} parent=11 // pred_check_branch
          %318 = sbr.rel (%p316) target = $region32
        $region31: #{attn_decoder_decode.1} parent=11 // pred_region
          _
        $region32: #{attn_decoder_decode.1} parent=11 // pred_fallthru
          _
      $region12: #{attn_decoder_decode.1} parent=5 // pred_fallthru
        _
      %p319 = scmp.lt.s32.totalorder %s18, 2
      // Predicated region
      $region33: #{attn_decoder_decode.1} parent=5 // pred_check
        %p320 = pneg %p319
      $region34: #{attn_decoder_decode.1} parent=5 // pred_check_branch
        %322 = sbr.rel (%p320) target = $region36
      $region35: #{attn_decoder_decode.1} parent=5 // pred_region
        // Predicated region
        $region37: #{attn_decoder_decode.1} parent=35 // pred_check
          %p323 = pneg %p38
        $region38: #{attn_decoder_decode.1} parent=35 // pred_check_branch
          %325 = sbr.rel (%p323) target = $region40
        $region39: #{attn_decoder_decode.1} parent=35 // pred_region
          %s326 = sand.u32 %s28, 1
          %s327 = sand.u32 %s28, 1
          %s328 = smul.addr %s327, 32
          %s329 = scalar_lea.vmem [#allocation2], %s328
          %s330 = smul.addr %s18, 8
          %s331 = scalar_lea.vmem %s0, %s330
          // Predicated region
          $region41: #{attn_decoder_decode.1} parent=39 // pred_check
            _
          $region42: #{attn_decoder_decode.1} parent=39 // pred_check_branch
            %333 = sbr.rel (0) target = $region44
          $region43: #{attn_decoder_decode.1} parent=39 // pred_region
            // Predicated region
            $region45: #{attn_decoder_decode.1} parent=43 // pred_check
              _
            $region46: #{attn_decoder_decode.1} parent=43 // pred_check_branch
              %335 = sbr.rel (0) target = $region48
            $region47: #{attn_decoder_decode.1} parent=43 // pred_region
              // Predicated region
              $region60: #{attn_decoder_decode.1} parent=47 // pred_check
                _
              $region61: #{attn_decoder_decode.1} parent=47 // pred_check_branch
                %357 = sbr.rel (0) target = $region63
              $region62: #{attn_decoder_decode.1} parent=47 // pred_region
                loop: start=0, step=1, limit=1
                $region64: #{attn_decoder_decode.1} parent=62 // loop_pre_header
                  _
                $region65: #{attn_decoder_decode.1} parent=62 // loop_header
                  %s359 = sphi 0, %s363
                  %p360 = scmp.ge.s32.totalorder %s359, 1
                  %s364 = sphi %s331, %s331
                  %s365 = sphi %s329, %s329
                $region66: #{attn_decoder_decode.1} parent=62 // loop_header_branch
                  %362 = sbr.rel (%p360) target = $region70
                $region67: #{attn_decoder_decode.1} parent=62 // loop_body
                  %v366 = vld [vmem:[%s364] sm:$0xff]
                  %367 = vst [vmem:[%s365] sm:$0xff] %v366
                  %v368 = vld [vmem:[%s364 + $0x10] sm:$0xff]
                  %369 = vst [vmem:[%s365 + $0x8] sm:$0xff] %v368
                  %v370 = vld [vmem:[%s364 + $0x20] sm:$0xff]
                  %371 = vst [vmem:[%s365 + $0x10] sm:$0xff] %v370
                  %v372 = vld [vmem:[%s364 + $0x30] sm:$0xff]
                  %373 = vst [vmem:[%s365 + $0x18] sm:$0xff] %v372
                $region68: #{attn_decoder_decode.1} parent=62 // loop_footer
                  %s363 = sadd.s32 1, %s359
                $region69: #{attn_decoder_decode.1} parent=62 // loop_footer_branch
                  %358 = sbr.rel target = $region65
                $region70: #{attn_decoder_decode.1} parent=62 // loop_exit
                  _
              $region63: #{attn_decoder_decode.1} parent=47 // pred_fallthru
                _
              // Predicated region
              $region71: #{attn_decoder_decode.1} parent=47 // pred_check
                _
              $region72: #{attn_decoder_decode.1} parent=47 // pred_check_branch
                %375 = sbr.rel target = $region74
              $region73: #{attn_decoder_decode.1} parent=47 // pred_region
                _
              $region74: #{attn_decoder_decode.1} parent=47 // pred_fallthru
                _
            $region48: #{attn_decoder_decode.1} parent=43 // pred_fallthru
              _
            // Predicated region
            $region49: #{attn_decoder_decode.1} parent=43 // pred_check
              _
            $region50: #{attn_decoder_decode.1} parent=43 // pred_check_branch
              %337 = sbr.rel target = $region52
            $region51: #{attn_decoder_decode.1} parent=43 // pred_region
              %s339 = ssub.s32 256, 1
              loop: start=0, step=1, limit=1
              $region53: #{attn_decoder_decode.1} parent=51 // loop_pre_header
                _
              $region54: #{attn_decoder_decode.1} parent=51 // loop_header
                %s341 = sphi 0, %s345
                %p342 = scmp.ge.s32.totalorder %s341, 1
                %s346 = sphi %s331, %s331
                %s347 = sphi %s329, %s329
              $region55: #{attn_decoder_decode.1} parent=51 // loop_header_branch
                %344 = sbr.rel (%p342) target = $region59
              $region56: #{attn_decoder_decode.1} parent=51 // loop_body
                %v348 = vld [vmem:[%s346] sm:%s339]
                %349 = vst [vmem:[%s347] sm:%s339] %v348
                %v350 = vld [vmem:[%s346 + $0x10] sm:%s339]
                %351 = vst [vmem:[%s347 + $0x8] sm:%s339] %v350
                %v352 = vld [vmem:[%s346 + $0x20] sm:%s339]
                %353 = vst [vmem:[%s347 + $0x10] sm:%s339] %v352
                %v354 = vld [vmem:[%s346 + $0x30] sm:%s339]
                %355 = vst [vmem:[%s347 + $0x18] sm:%s339] %v354
              $region57: #{attn_decoder_decode.1} parent=51 // loop_footer
                %s345 = sadd.s32 1, %s341
              $region58: #{attn_decoder_decode.1} parent=51 // loop_footer_branch
                %340 = sbr.rel target = $region54
              $region59: #{attn_decoder_decode.1} parent=51 // loop_exit
                _
            $region52: #{attn_decoder_decode.1} parent=43 // pred_fallthru
              _
          $region44: #{attn_decoder_decode.1} parent=39 // pred_fallthru
            _
          %376 = vnop
        $region40: #{attn_decoder_decode.1} parent=35 // pred_fallthru
          _
        // Predicated region
        $region75: #{attn_decoder_decode.1} parent=35 // pred_check
          %p377 = pneg %p85
        $region76: #{attn_decoder_decode.1} parent=35 // pred_check_branch
          %379 = sbr.rel (%p377) target = $region78
        $region77: #{attn_decoder_decode.1} parent=35 // pred_region
          %s380 = sand.u32 %s75, 1
          %s381 = sand.u32 %s75, 1
          %s382 = smul.addr %s381, 32
          %s383 = scalar_lea.vmem [#allocation3], %s382
          %s384 = smul.addr %s18, 8
          %s385 = scalar_lea.vmem %s2, %s384
          // Predicated region
          $region79: #{attn_decoder_decode.1} parent=77 // pred_check
            _
          $region80: #{attn_decoder_decode.1} parent=77 // pred_check_branch
            %387 = sbr.rel (0) target = $region82
          $region81: #{attn_decoder_decode.1} parent=77 // pred_region
            // Predicated region
            $region83: #{attn_decoder_decode.1} parent=81 // pred_check
              _
            $region84: #{attn_decoder_decode.1} parent=81 // pred_check_branch
              %389 = sbr.rel (0) target = $region86
            $region85: #{attn_decoder_decode.1} parent=81 // pred_region
              // Predicated region
              $region98: #{attn_decoder_decode.1} parent=85 // pred_check
                _
              $region99: #{attn_decoder_decode.1} parent=85 // pred_check_branch
                %411 = sbr.rel (0) target = $region101
              $region100: #{attn_decoder_decode.1} parent=85 // pred_region
                loop: start=0, step=1, limit=1
                $region102: #{attn_decoder_decode.1} parent=100 // loop_pre_header
                  _
                $region103: #{attn_decoder_decode.1} parent=100 // loop_header
                  %s413 = sphi 0, %s417
                  %p414 = scmp.ge.s32.totalorder %s413, 1
                  %s418 = sphi %s385, %s385
                  %s419 = sphi %s383, %s383
                $region104: #{attn_decoder_decode.1} parent=100 // loop_header_branch
                  %416 = sbr.rel (%p414) target = $region108
                $region105: #{attn_decoder_decode.1} parent=100 // loop_body
                  %v420 = vld [vmem:[%s418] sm:$0xff]
                  %421 = vst [vmem:[%s419] sm:$0xff] %v420
                  %v422 = vld [vmem:[%s418 + $0x10] sm:$0xff]
                  %423 = vst [vmem:[%s419 + $0x8] sm:$0xff] %v422
                  %v424 = vld [vmem:[%s418 + $0x20] sm:$0xff]
                  %425 = vst [vmem:[%s419 + $0x10] sm:$0xff] %v424
                  %v426 = vld [vmem:[%s418 + $0x30] sm:$0xff]
                  %427 = vst [vmem:[%s419 + $0x18] sm:$0xff] %v426
                $region106: #{attn_decoder_decode.1} parent=100 // loop_footer
                  %s417 = sadd.s32 1, %s413
                $region107: #{attn_decoder_decode.1} parent=100 // loop_footer_branch
                  %412 = sbr.rel target = $region103
                $region108: #{attn_decoder_decode.1} parent=100 // loop_exit
                  _
              $region101: #{attn_decoder_decode.1} parent=85 // pred_fallthru
                _
              // Predicated region
              $region109: #{attn_decoder_decode.1} parent=85 // pred_check
                _
              $region110: #{attn_decoder_decode.1} parent=85 // pred_check_branch
                %429 = sbr.rel target = $region112
              $region111: #{attn_decoder_decode.1} parent=85 // pred_region
                _
              $region112: #{attn_decoder_decode.1} parent=85 // pred_fallthru
                _
            $region86: #{attn_decoder_decode.1} parent=81 // pred_fallthru
              _
            // Predicated region
            $region87: #{attn_decoder_decode.1} parent=81 // pred_check
              _
            $region88: #{attn_decoder_decode.1} parent=81 // pred_check_branch
              %391 = sbr.rel target = $region90
            $region89: #{attn_decoder_decode.1} parent=81 // pred_region
              %s393 = ssub.s32 256, 1
              loop: start=0, step=1, limit=1
              $region91: #{attn_decoder_decode.1} parent=89 // loop_pre_header
                _
              $region92: #{attn_decoder_decode.1} parent=89 // loop_header
                %s395 = sphi 0, %s399
                %p396 = scmp.ge.s32.totalorder %s395, 1
                %s400 = sphi %s385, %s385
                %s401 = sphi %s383, %s383
              $region93: #{attn_decoder_decode.1} parent=89 // loop_header_branch
                %398 = sbr.rel (%p396) target = $region97
              $region94: #{attn_decoder_decode.1} parent=89 // loop_body
                %v402 = vld [vmem:[%s400] sm:%s393]
                %403 = vst [vmem:[%s401] sm:%s393] %v402
                %v404 = vld [vmem:[%s400 + $0x10] sm:%s393]
                %405 = vst [vmem:[%s401 + $0x8] sm:%s393] %v404
                %v406 = vld [vmem:[%s400 + $0x20] sm:%s393]
                %407 = vst [vmem:[%s401 + $0x10] sm:%s393] %v406
                %v408 = vld [vmem:[%s400 + $0x30] sm:%s393]
                %409 = vst [vmem:[%s401 + $0x18] sm:%s393] %v408
              $region95: #{attn_decoder_decode.1} parent=89 // loop_footer
                %s399 = sadd.s32 1, %s395
              $region96: #{attn_decoder_decode.1} parent=89 // loop_footer_branch
                %394 = sbr.rel target = $region92
              $region97: #{attn_decoder_decode.1} parent=89 // loop_exit
                _
            $region90: #{attn_decoder_decode.1} parent=81 // pred_fallthru
              _
          $region82: #{attn_decoder_decode.1} parent=77 // pred_fallthru
            _
          %430 = vnop
        $region78: #{attn_decoder_decode.1} parent=35 // pred_fallthru
          _
        // Predicated region
        $region113: #{attn_decoder_decode.1} parent=35 // pred_check
          %p431 = pneg %p111
        $region114: #{attn_decoder_decode.1} parent=35 // pred_check_branch
          %433 = sbr.rel (%p431) target = $region116
        $region115: #{attn_decoder_decode.1} parent=35 // pred_region
          %s434 = sand.u32 %s101, 1
          %s435 = sand.u32 %s101, 1
          %s436 = smul.addr %s435, 128
          %s437 = scalar_lea.vmem [#allocation4], %s436
          %s438 = smul.addr %s18, 2
          %s439 = smul.addr %s438, 8
          %s440 = scalar_lea.vmem %s3, %s439
          // Predicated region
          $region117: #{attn_decoder_decode.1} parent=115 // pred_check
            _
          $region118: #{attn_decoder_decode.1} parent=115 // pred_check_branch
            %442 = sbr.rel (0) target = $region120
          $region119: #{attn_decoder_decode.1} parent=115 // pred_region
            // Predicated region
            $region121: #{attn_decoder_decode.1} parent=119 // pred_check
              _
            $region122: #{attn_decoder_decode.1} parent=119 // pred_check_branch
              %444 = sbr.rel (0) target = $region124
            $region123: #{attn_decoder_decode.1} parent=119 // pred_region
              loop: start=0, step=1, limit=1
              $region125: #{attn_decoder_decode.1} parent=123 // loop_pre_header
                _
              $region126: #{attn_decoder_decode.1} parent=123 // loop_header
                %s446 = sphi 0, %s450
                %p447 = scmp.ge.s32.totalorder %s446, 1
                %s451 = sphi %s440, %s440
                %s452 = sphi %s437, %s437
              $region127: #{attn_decoder_decode.1} parent=123 // loop_header_branch
                %449 = sbr.rel (%p447) target = $region131
              $region128: #{attn_decoder_decode.1} parent=123 // loop_body
                %v453 = vld [vmem:[%s451] sm:$0xff]
                %454 = vst [vmem:[%s452] sm:$0xff] %v453
                %v455 = vld [vmem:[%s451 + $0x8] sm:$0xff]
                %456 = vst [vmem:[%s452 + $0x8] sm:$0xff] %v455
                %v457 = vld [vmem:[%s451 + $0x20] sm:$0xff]
                %458 = vst [vmem:[%s452 + $0x10] sm:$0xff] %v457
                %v459 = vld [vmem:[%s451 + $0x28] sm:$0xff]
                %460 = vst [vmem:[%s452 + $0x18] sm:$0xff] %v459
                %v461 = vld [vmem:[%s451 + $0x40] sm:$0xff]
                %462 = vst [vmem:[%s452 + $0x20] sm:$0xff] %v461
                %v463 = vld [vmem:[%s451 + $0x48] sm:$0xff]
                %464 = vst [vmem:[%s452 + $0x28] sm:$0xff] %v463
                %v465 = vld [vmem:[%s451 + $0x60] sm:$0xff]
                %466 = vst [vmem:[%s452 + $0x30] sm:$0xff] %v465
                %v467 = vld [vmem:[%s451 + $0x68] sm:$0xff]
                %468 = vst [vmem:[%s452 + $0x38] sm:$0xff] %v467
                %v469 = vld [vmem:[%s451 + $0x80] sm:$0xff]
                %470 = vst [vmem:[%s452 + $0x40] sm:$0xff] %v469
                %v471 = vld [vmem:[%s451 + $0x88] sm:$0xff]
                %472 = vst [vmem:[%s452 + $0x48] sm:$0xff] %v471
                %v473 = vld [vmem:[%s451 + $0xa0] sm:$0xff]
                %474 = vst [vmem:[%s452 + $0x50] sm:$0xff] %v473
                %v475 = vld [vmem:[%s451 + $0xa8] sm:$0xff]
                %476 = vst [vmem:[%s452 + $0x58] sm:$0xff] %v475
                %v477 = vld [vmem:[%s451 + $0xc0] sm:$0xff]
                %478 = vst [vmem:[%s452 + $0x60] sm:$0xff] %v477
                %v479 = vld [vmem:[%s451 + $0xc8] sm:$0xff]
                %480 = vst [vmem:[%s452 + $0x68] sm:$0xff] %v479
                %v481 = vld [vmem:[%s451 + $0xe0] sm:$0xff]
                %482 = vst [vmem:[%s452 + $0x70] sm:$0xff] %v481
                %v483 = vld [vmem:[%s451 + $0xe8] sm:$0xff]
                %484 = vst [vmem:[%s452 + $0x78] sm:$0xff] %v483
              $region129: #{attn_decoder_decode.1} parent=123 // loop_footer
                %s450 = sadd.s32 1, %s446
              $region130: #{attn_decoder_decode.1} parent=123 // loop_footer_branch
                %445 = sbr.rel target = $region126
              $region131: #{attn_decoder_decode.1} parent=123 // loop_exit
                _
            $region124: #{attn_decoder_decode.1} parent=119 // pred_fallthru
              _
            // Predicated region
            $region132: #{attn_decoder_decode.1} parent=119 // pred_check
              _
            $region133: #{attn_decoder_decode.1} parent=119 // pred_check_branch
              %486 = sbr.rel target = $region135
            $region134: #{attn_decoder_decode.1} parent=119 // pred_region
              _
            $region135: #{attn_decoder_decode.1} parent=119 // pred_fallthru
              _
          $region120: #{attn_decoder_decode.1} parent=115 // pred_fallthru
            _
          %487 = vnop
        $region116: #{attn_decoder_decode.1} parent=35 // pred_fallthru
          _
      $region36: #{attn_decoder_decode.1} parent=5 // pred_fallthru
        _
      %p488 = scmp.le.s32.totalorder 1, %s18
      %p489 = scmp.lt.s32.totalorder %s18, 3
      %p490 = pnand %p488, %p489
      %p491 = pneg %p490
      // Predicated region
      $region136: #{attn_decoder_decode.1} parent=5 // pred_check
        _
      $region137: #{attn_decoder_decode.1} parent=5 // pred_check_branch
        %493 = sbr.rel (%p490) target = $region139
      $region138: #{attn_decoder_decode.1} parent=5 // pred_region
        %s494 = ssub.s32 %s18, 1
        %s495 = sand.u32 %s31, 1
        %s496 = sand.u32 %s31, 1
        %s497 = smul.addr %s496, 32
        %s498 = scalar_lea.vmem [#allocation2], %s497
        // Predicated region
        $region140: #{attn_decoder_decode.1} parent=138 // pred_check
          %p499 = pneg %p44
        $region141: #{attn_decoder_decode.1} parent=138 // pred_check_branch
          %501 = sbr.rel (%p499) target = $region143
        $region142: #{attn_decoder_decode.1} parent=138 // pred_region
          _
        $region143: #{attn_decoder_decode.1} parent=138 // pred_fallthru
          _
        %s502 = sand.u32 %s78, 1
        %s503 = sand.u32 %s78, 1
        %s504 = smul.addr %s503, 32
        %s505 = scalar_lea.vmem [#allocation3], %s504
        // Predicated region
        $region144: #{attn_decoder_decode.1} parent=138 // pred_check
          %p506 = pneg %p91
        $region145: #{attn_decoder_decode.1} parent=138 // pred_check_branch
          %508 = sbr.rel (%p506) target = $region147
        $region146: #{attn_decoder_decode.1} parent=138 // pred_region
          _
        $region147: #{attn_decoder_decode.1} parent=138 // pred_fallthru
          _
        %s509 = sand.u32 %s104, 1
        %s510 = sand.u32 %s104, 1
        %s511 = smul.addr %s510, 128
        %s512 = scalar_lea.vmem [#allocation4], %s511
        // Predicated region
        $region148: #{attn_decoder_decode.1} parent=138 // pred_check
          %p513 = pneg %p117
        $region149: #{attn_decoder_decode.1} parent=138 // pred_check_branch
          %515 = sbr.rel (%p513) target = $region151
        $region150: #{attn_decoder_decode.1} parent=138 // pred_region
          _
        $region151: #{attn_decoder_decode.1} parent=138 // pred_fallthru
          _
        // Predicated region
        $region152: #{attn_decoder_decode.1} parent=138 // pred_check
          %p516 = pneg %p180
        $region153: #{attn_decoder_decode.1} parent=138 // pred_check_branch
          %518 = sbr.rel (%p516) target = $region155
        $region154: #{attn_decoder_decode.1} parent=138 // pred_region
          %519 = dma.done [#allocation6], 30720
        $region155: #{attn_decoder_decode.1} parent=138 // pred_fallthru
          _
        %s520 = sand.u32 %s31, 1
        %s521 = sand.u32 %s31, 1
        %s522 = smul.addr %s521, 32
        %s523 = scalar_lea.vmem [#allocation2], %s522
        %p524 = pneg %p44
        %p525 = pneg %p41
        %p526 = pneg %p65
        %p527 = pneg %p62
        %s528 = sand.u32 %s78, 1
        %s529 = sand.u32 %s78, 1
        %s530 = smul.addr %s529, 32
        %s531 = scalar_lea.vmem [#allocation3], %s530
        %p532 = pneg %p91
        %p533 = pneg %p88
        %s534 = sand.u32 %s104, 1
        %s535 = sand.u32 %s104, 1
        %s536 = smul.addr %s535, 128
        %s537 = scalar_lea.vmem [#allocation4], %s536
        %p538 = pneg %p117
        %p539 = pneg %p114
        %p540 = pneg %p138
        %p541 = pneg %p135
        %p542 = pneg %p159
        %p543 = pneg %p156
        %p544 = pneg %p180
        %p545 = pneg %p177
        %p546 = pneg %p201
        %p547 = pneg %p198
        %p548 = pneg %p227
        %p549 = pneg %p224
        %s550 = sand.u32 %s214, 1
        %s551 = sand.u32 %s214, 1
        %s552 = smul.addr %s551, 32
        %s553 = scalar_lea.vmem [#allocation7], %s552
        %p554 = pneg %p253
        %p555 = pneg %p250
        %s556 = sand.u32 %s240, 1
        %s557 = sand.u32 %s240, 1
        %s558 = smul.addr %s557, 32
        %s559 = scalar_lea.vmem [#allocation8], %s558
        %p560 = pneg %p279
        %p561 = pneg %p276
        %p562 = scmp.lt.s32.totalorder %s23, 1
        %s563 = scalar_select %p562, %s23, 1
        %s564 = smul.addr %s563, 4
        %s565 = smul.addr %s564, 8
        %s566 = scalar_lea.vmem %s10, %s565
        %p567 = scmp.lt.s32.totalorder %s23, 1
        %s568 = scalar_select %p567, %s23, 1
        %s569 = smul.addr %s568, 4
        %s570 = smul.addr %s569, 8
        %s571 = scalar_lea.vmem %s10, %s570
        %v573 = vld [vmem:[%s505] sm:$0xff]
        %s574 = scalar_lea.vmem %s505, 8 [#allocation3]
        %v575 = vld [vmem:[%s574] sm:$0xff]
        %s576 = scalar_lea.vmem %s505, 16 [#allocation3]
        %v577 = vld [vmem:[%s576] sm:$0xff]
        %s578 = scalar_lea.vmem %s505, 24 [#allocation3]
        %v579 = vld [vmem:[%s578] sm:$0xff]
        loop: start=0, step=1, limit=4
        $region156: #{attn_decoder_decode.1} parent=138 // loop_pre_header
          _
        $region157: #{attn_decoder_decode.1} parent=138 // loop_header
          %s581 = sphi 0, %s585
          %p582 = scmp.ge.s32.totalorder %s581, 4
          %v586 = vphi %v573, %v2731
          %v587 = vphi %v575, %v2736
          %v588 = vphi %v577, %v2729
          %v589 = vphi %v579, %v2734
        $region158: #{attn_decoder_decode.1} parent=138 // loop_header_branch
          %584 = sbr.rel (%p582) target = $region162
        $region159: #{attn_decoder_decode.1} parent=138 // loop_body
          %s590 = smul.u32 %s581, 8
          %s591 = scalar_lea.vmem %s498, %s590 [#allocation2]
          %v592 = vld [vmem:[%s591] sm:$0xff]
          %v593 = vlaneseq
          %v594 = vand.u32 %v593, 127
          %595 = vset.pattern.permute.xlu0 0
          %596 = vperm.xlu0 %595, %v592
          %v597 = vpop.permute.xlu0 %596
          %vm598 = vcmp.eq.s32.totalorder %v594, %v597
          %v599 = vsel %vm598, 1, 0
          %v600 = vcvt.s32.f32 %v599
          %v601 = vld [vmem:[%s1] sm:$0xff]
          %v602 = vld [vmem:[%s1 + $0x8] sm:$0xff]
          %vm603 = vcmask 130048
          %v605 = vsel %vm603, %v600, 0
          %607 = vmatprep.subr.mxu0 0.0
          %608 = vmatpush1.msra.mxu0 0.0
          %609 = vmatprep.subr.mxu0 0.0
          %610 = vmatpush1.msra.mxu0 0.0
          %611 = vmatprep.subr.mxu0 0.0
          %612 = vmatpush1.msra.mxu0 0.0
          %613 = vmatprep.subr.mxu0 0.0
          %614 = vmatpush1.msra.mxu0 0.0
          %615 = vmatprep.subr.mxu0 0.0
          %616 = vmatpush1.msra.mxu0 0.0
          %617 = vmatprep.subr.mxu0 0.0
          %618 = vmatpush1.msra.mxu0 0.0
          %619 = vmatprep.subr.mxu0 0.0
          %620 = vmatpush1.msra.mxu0 0.0
          %621 = vmatprep.subr.mxu0 0.0
          %622 = vmatpush1.msra.mxu0 0.0
          %623 = vmatprep.subr.mxu0 0.0
          %624 = vmatpush1.msra.mxu0 0.0
          %625 = vmatprep.subr.mxu0 0.0
          %626 = vmatpush1.msra.mxu0 0.0
          %627 = vmatprep.subr.mxu0 0.0
          %628 = vmatpush1.msra.mxu0 0.0
          %629 = vmatprep.subr.mxu0 0.0
          %630 = vmatpush1.msra.mxu0 0.0
          %631 = vmatprep.subr.mxu0 0.0
          %632 = vmatpush1.msra.mxu0 0.0
          %633 = vmatprep.subr.mxu0 0.0
          %634 = vmatpush1.msra.mxu0 0.0
          %635 = vmatprep.subr.mxu0 0.0
          %636 = vmatpush1.msra.mxu0 %v602
          %637 = vmatprep.subr.mxu0 0.0
          %638 = vmatpush1.msra.mxu0 %v601
          %639 = vmatprep.subr.mxu0 0.0
          %640 = vmatpush2.msra.mxu0 0.0
          %641 = vmatprep.subr.mxu0 0.0
          %642 = vmatpush2.msra.mxu0 0.0
          %643 = vmatprep.subr.mxu0 0.0
          %644 = vmatpush2.msra.mxu0 0.0
          %645 = vmatprep.subr.mxu0 0.0
          %646 = vmatpush2.msra.mxu0 0.0
          %647 = vmatprep.subr.mxu0 0.0
          %648 = vmatpush2.msra.mxu0 0.0
          %649 = vmatprep.subr.mxu0 0.0
          %650 = vmatpush2.msra.mxu0 0.0
          %651 = vmatprep.subr.mxu0 0.0
          %652 = vmatpush2.msra.mxu0 0.0
          %653 = vmatprep.subr.mxu0 0.0
          %654 = vmatpush2.msra.mxu0 0.0
          %655 = vmatprep.subr.mxu0 0.0
          %656 = vmatpush2.msra.mxu0 0.0
          %657 = vmatprep.subr.mxu0 0.0
          %658 = vmatpush2.msra.mxu0 0.0
          %659 = vmatprep.subr.mxu0 0.0
          %660 = vmatpush2.msra.mxu0 0.0
          %661 = vmatprep.subr.mxu0 0.0
          %662 = vmatpush2.msra.mxu0 0.0
          %663 = vmatprep.subr.mxu0 0.0
          %664 = vmatpush2.msra.mxu0 0.0
          %665 = vmatprep.subr.mxu0 0.0
          %666 = vmatpush2.msra.mxu0 0.0
          %667 = vmatprep.subr.mxu0 0.0
          %668 = vmatpush2.msra.mxu0 0.0
          %669 = vmatprep.subr.mxu0 0.0
          %670 = vmatpush2.msra.mxu0 0.0
          %671 = vmatprep.mubr.f32.mxu0 0.0
          %672 = vmatmul.mubr.f32.gmra.mxu0 %v605
          %v673 = vpop.f32.mrf.mxu0
          %v674 = vadd.f32 0.0, %v673
          %v675 = vpop.f32.mrf.mxu0
          %676 = vdwg.mxu0
          %v677 = vld [vmem:[%s4] sm:$0xff]
          %v678 = vld [vmem:[%s4 + $0x8] sm:$0xff]
          %v679 = vld [vmem:[%s4 + $0x10] sm:$0xff]
          %v680 = vld [vmem:[%s4 + $0x18] sm:$0xff]
          %v681 = vld [vmem:[%s4 + $0x20] sm:$0xff]
          %v682 = vld [vmem:[%s4 + $0x28] sm:$0xff]
          %v683 = vld [vmem:[%s4 + $0x30] sm:$0xff]
          %v684 = vld [vmem:[%s4 + $0x38] sm:$0xff]
          %v685 = vld [vmem:[%s4 + $0x40] sm:$0xff]
          %v686 = vld [vmem:[%s4 + $0x48] sm:$0xff]
          %v687 = vld [vmem:[%s4 + $0x50] sm:$0xff]
          %v688 = vld [vmem:[%s4 + $0x58] sm:$0xff]
          %v689 = vld [vmem:[%s4 + $0x60] sm:$0xff]
          %v690 = vld [vmem:[%s4 + $0x68] sm:$0xff]
          %v691 = vld [vmem:[%s4 + $0x70] sm:$0xff]
          %v692 = vld [vmem:[%s4 + $0x78] sm:$0xff]
          %v693 = vld [vmem:[%s4 + $0x80] sm:$0xff]
          %v694 = vld [vmem:[%s4 + $0x88] sm:$0xff]
          %v695 = vld [vmem:[%s4 + $0x90] sm:$0xff]
          %v696 = vld [vmem:[%s4 + $0x98] sm:$0xff]
          %v697 = vld [vmem:[%s4 + $0xa0] sm:$0xff]
          %v698 = vld [vmem:[%s4 + $0xa8] sm:$0xff]
          %v699 = vld [vmem:[%s4 + $0xb0] sm:$0xff]
          %v700 = vld [vmem:[%s4 + $0xb8] sm:$0xff]
          %v701 = vld [vmem:[%s4 + $0xc0] sm:$0xff]
          %v702 = vld [vmem:[%s4 + $0xc8] sm:$0xff]
          %v703 = vld [vmem:[%s4 + $0xd0] sm:$0xff]
          %v704 = vld [vmem:[%s4 + $0xd8] sm:$0xff]
          %v705 = vld [vmem:[%s4 + $0xe0] sm:$0xff]
          %v706 = vld [vmem:[%s4 + $0xe8] sm:$0xff]
          %v707 = vld [vmem:[%s4 + $0xf0] sm:$0xff]
          %v708 = vld [vmem:[%s4 + $0xf8] sm:$0xff]
          %v709 = vld [vmem:[%s5] sm:$0x1]
          %v711 = vlaneseq
          %v712 = vshrl.u32 %v711, 7
          %v713 = vsub.s32 0, %v712
          %v714 = vrot.slane %v709, %v713
          %716 = vmatprep.subr.mxu0 0.0
          %717 = vmatpush1.msra.mxu0 %v692
          %718 = vmatprep.subr.mxu0 0.0
          %719 = vmatpush1.msra.mxu0 %v691
          %720 = vmatprep.subr.mxu0 0.0
          %721 = vmatpush1.msra.mxu0 %v690
          %722 = vmatprep.subr.mxu0 0.0
          %723 = vmatpush1.msra.mxu0 %v689
          %724 = vmatprep.subr.mxu0 0.0
          %725 = vmatpush1.msra.mxu0 %v688
          %726 = vmatprep.subr.mxu0 0.0
          %727 = vmatpush1.msra.mxu0 %v687
          %728 = vmatprep.subr.mxu0 0.0
          %729 = vmatpush1.msra.mxu0 %v686
          %730 = vmatprep.subr.mxu0 0.0
          %731 = vmatpush1.msra.mxu0 %v685
          %732 = vmatprep.subr.mxu0 0.0
          %733 = vmatpush1.msra.mxu0 %v684
          %734 = vmatprep.subr.mxu0 0.0
          %735 = vmatpush1.msra.mxu0 %v683
          %736 = vmatprep.subr.mxu0 0.0
          %737 = vmatpush1.msra.mxu0 %v682
          %738 = vmatprep.subr.mxu0 0.0
          %739 = vmatpush1.msra.mxu0 %v681
          %740 = vmatprep.subr.mxu0 0.0
          %741 = vmatpush1.msra.mxu0 %v680
          %742 = vmatprep.subr.mxu0 0.0
          %743 = vmatpush1.msra.mxu0 %v679
          %744 = vmatprep.subr.mxu0 0.0
          %745 = vmatpush1.msra.mxu0 %v678
          %746 = vmatprep.subr.mxu0 0.0
          %747 = vmatpush1.msra.mxu0 %v677
          %748 = vmatprep.subr.mxu0 0.0
          %749 = vmatpush2.msra.mxu0 %v708
          %750 = vmatprep.subr.mxu0 0.0
          %751 = vmatpush2.msra.mxu0 %v707
          %752 = vmatprep.subr.mxu0 0.0
          %753 = vmatpush2.msra.mxu0 %v706
          %754 = vmatprep.subr.mxu0 0.0
          %755 = vmatpush2.msra.mxu0 %v705
          %756 = vmatprep.subr.mxu0 0.0
          %757 = vmatpush2.msra.mxu0 %v704
          %758 = vmatprep.subr.mxu0 0.0
          %759 = vmatpush2.msra.mxu0 %v703
          %760 = vmatprep.subr.mxu0 0.0
          %761 = vmatpush2.msra.mxu0 %v702
          %762 = vmatprep.subr.mxu0 0.0
          %763 = vmatpush2.msra.mxu0 %v701
          %764 = vmatprep.subr.mxu0 0.0
          %765 = vmatpush2.msra.mxu0 %v700
          %766 = vmatprep.subr.mxu0 0.0
          %767 = vmatpush2.msra.mxu0 %v699
          %768 = vmatprep.subr.mxu0 0.0
          %769 = vmatpush2.msra.mxu0 %v698
          %770 = vmatprep.subr.mxu0 0.0
          %771 = vmatpush2.msra.mxu0 %v697
          %772 = vmatprep.subr.mxu0 0.0
          %773 = vmatpush2.msra.mxu0 %v696
          %774 = vmatprep.subr.mxu0 0.0
          %775 = vmatpush2.msra.mxu0 %v695
          %776 = vmatprep.subr.mxu0 0.0
          %777 = vmatpush2.msra.mxu0 %v694
          %778 = vmatprep.subr.mxu0 0.0
          %779 = vmatpush2.msra.mxu0 %v693
          %780 = vmatprep.mubr.f32.mxu0 %v586
          %781 = vmatmul.mubr.f32.gmra.mxu0 %v674
          %v782 = vpop.f32.mrf.mxu0
          %v783 = vadd.f32 %v714, %v782
          %v784 = vpop.f32.mrf.mxu0
          %785 = vdwg.mxu0
          %786 = vmax.xlane.f32.xlu0 %v783
          %v787 = vpop.xlane.xlu0 %786
          %v788 = vsub.f32 %v783, %v787
          %v789 = vmul.f32 %v788, 1.442695
          %v790 = vpow.pop %v789
          %791 = vadd.xlane.f32.xlu0 %v790
          %v792 = vpop.xlane.xlu0 %791
          %v793 = vrcp.pop %v792
          %v794 = vmul.f32 %v790, %v793
          %v795 = vld [vmem:[%s512] sm:$0xff]
          %v796 = vld [vmem:[%s512 + $0x8] sm:$0xff]
          %798 = vset.pattern.permute.xlu0 0
          %799 = vperm.xlu0 %798, %v794
          %v800 = vpop.permute.xlu0 %799
          %v802 = vmul.f32 %v800, %v795
          %v803 = vmul.f32 %v800, %v796
          %s804 = scalar_lea.vmem %s512, 16 [#allocation4]
          %v805 = vld [vmem:[%s804] sm:$0xff]
          %v806 = vld [vmem:[%s804 + $0x8] sm:$0xff]
          %807 = vset.pattern.permute.xlu0 1
          %808 = vperm.xlu0 %807, %v794
          %v809 = vpop.permute.xlu0 %808
          %v811 = vmul.f32 %v809, %v805
          %v812 = vmul.f32 %v809, %v806
          %v813 = vadd.f32 %v802, %v811
          %v814 = vadd.f32 %v803, %v812
          %s815 = scalar_lea.vmem %s512, 32 [#allocation4]
          %v816 = vld [vmem:[%s815] sm:$0xff]
          %v817 = vld [vmem:[%s815 + $0x8] sm:$0xff]
          %818 = vset.pattern.permute.xlu0 2
          %819 = vperm.xlu0 %818, %v794
          %v820 = vpop.permute.xlu0 %819
          %v822 = vmul.f32 %v820, %v816
          %v823 = vmul.f32 %v820, %v817
          %v824 = vadd.f32 %v813, %v822
          %v825 = vadd.f32 %v814, %v823
          %s826 = scalar_lea.vmem %s512, 48 [#allocation4]
          %v827 = vld [vmem:[%s826] sm:$0xff]
          %v828 = vld [vmem:[%s826 + $0x8] sm:$0xff]
          %829 = vset.pattern.permute.xlu0 3
          %830 = vperm.xlu0 %829, %v794
          %v831 = vpop.permute.xlu0 %830
          %v833 = vmul.f32 %v831, %v827
          %v834 = vmul.f32 %v831, %v828
          %v835 = vadd.f32 %v824, %v833
          %v836 = vadd.f32 %v825, %v834
          %s837 = scalar_lea.vmem %s512, 64 [#allocation4]
          %v838 = vld [vmem:[%s837] sm:$0xff]
          %v839 = vld [vmem:[%s837 + $0x8] sm:$0xff]
          %840 = vset.pattern.permute.xlu0 4
          %841 = vperm.xlu0 %840, %v794
          %v842 = vpop.permute.xlu0 %841
          %v844 = vmul.f32 %v842, %v838
          %v845 = vmul.f32 %v842, %v839
          %v846 = vadd.f32 %v835, %v844
          %v847 = vadd.f32 %v836, %v845
          %s848 = scalar_lea.vmem %s512, 80 [#allocation4]
          %v849 = vld [vmem:[%s848] sm:$0xff]
          %v850 = vld [vmem:[%s848 + $0x8] sm:$0xff]
          %851 = vset.pattern.permute.xlu0 5
          %852 = vperm.xlu0 %851, %v794
          %v853 = vpop.permute.xlu0 %852
          %v855 = vmul.f32 %v853, %v849
          %v856 = vmul.f32 %v853, %v850
          %v857 = vadd.f32 %v846, %v855
          %v858 = vadd.f32 %v847, %v856
          %s859 = scalar_lea.vmem %s512, 96 [#allocation4]
          %v860 = vld [vmem:[%s859] sm:$0xff]
          %v861 = vld [vmem:[%s859 + $0x8] sm:$0xff]
          %862 = vset.pattern.permute.xlu0 6
          %863 = vperm.xlu0 %862, %v794
          %v864 = vpop.permute.xlu0 %863
          %v866 = vmul.f32 %v864, %v860
          %v867 = vmul.f32 %v864, %v861
          %v868 = vadd.f32 %v857, %v866
          %v869 = vadd.f32 %v858, %v867
          %s870 = scalar_lea.vmem %s512, 112 [#allocation4]
          %v871 = vld [vmem:[%s870] sm:$0xff]
          %v872 = vld [vmem:[%s870 + $0x8] sm:$0xff]
          %873 = vset.pattern.permute.xlu0 7
          %874 = vperm.xlu0 %873, %v794
          %v875 = vpop.permute.xlu0 %874
          %v877 = vmul.f32 %v875, %v871
          %v878 = vmul.f32 %v875, %v872
          %v879 = vadd.f32 %v868, %v877
          %v880 = vadd.f32 %v869, %v878
          %v881 = vpack.c.bf16 %v674, %v674
          %v882 = vpack.c.bf16 %v879, %v879
          %v883 = vpack.c.bf16 %v880, %v880
          %v884 = vld [vmem:[#allocation5] sm:$0xf]
          %v885 = vld [vmem:[#allocation5 + $0x28] sm:$0xf]
          %v886 = vld [vmem:[#allocation5 + $0x50] sm:$0xf]
          %v887 = vld [vmem:[#allocation5 + $0x78] sm:$0xf]
          %v888 = vld [vmem:[#allocation5 + $0xa0] sm:$0xf]
          %v889 = vld [vmem:[#allocation5 + $0xc8] sm:$0xf]
          %v890 = vld [vmem:[#allocation5 + $0xf0] sm:$0xf]
          %v891 = vld [vmem:[#allocation5 + $0x118] sm:$0xf]
          %v892 = vld [vmem:[#allocation5 + $0x140] sm:$0xf]
          %v893 = vld [vmem:[#allocation5 + $0x168] sm:$0xf]
          %v894 = vld [vmem:[#allocation5 + $0x190] sm:$0xf]
          %v895 = vld [vmem:[#allocation5 + $0x1b8] sm:$0xf]
          %v896 = vld [vmem:[#allocation5 + $0x1e0] sm:$0xf]
          %v897 = vld [vmem:[#allocation5 + $0x208] sm:$0xf]
          %v898 = vld [vmem:[#allocation5 + $0x230] sm:$0xf]
          %v899 = vld [vmem:[#allocation5 + $0x258] sm:$0xf]
          %v900 = vld [vmem:[#allocation5 + $0x280] sm:$0xf]
          %v901 = vld [vmem:[#allocation5 + $0x2a8] sm:$0xf]
          %v902 = vld [vmem:[#allocation5 + $0x2d0] sm:$0xf]
          %v903 = vld [vmem:[#allocation5 + $0x2f8] sm:$0xf]
          %v904 = vld [vmem:[#allocation5 + $0x320] sm:$0xf]
          %v905 = vld [vmem:[#allocation5 + $0x348] sm:$0xf]
          %v906 = vld [vmem:[#allocation5 + $0x370] sm:$0xf]
          %v907 = vld [vmem:[#allocation5 + $0x398] sm:$0xf]
          %v908 = vld [vmem:[#allocation5 + $0x3c0] sm:$0xf]
          %v909 = vld [vmem:[#allocation5 + $0x3e8] sm:$0xf]
          %v910 = vld [vmem:[#allocation5 + $0x410] sm:$0xf]
          %v911 = vld [vmem:[#allocation5 + $0x438] sm:$0xf]
          %v912 = vld [vmem:[#allocation5 + $0x460] sm:$0xf]
          %v913 = vld [vmem:[#allocation5 + $0x488] sm:$0xf]
          %v914 = vld [vmem:[#allocation5 + $0x4b0] sm:$0xf]
          %v915 = vld [vmem:[#allocation5 + $0x4d8] sm:$0xf]
          %v916 = vld [vmem:[#allocation5 + $0x500] sm:$0xf]
          %v917 = vld [vmem:[#allocation5 + $0x528] sm:$0xf]
          %v918 = vld [vmem:[#allocation5 + $0x550] sm:$0xf]
          %v919 = vld [vmem:[#allocation5 + $0x578] sm:$0xf]
          %v920 = vld [vmem:[#allocation5 + $0x5a0] sm:$0xf]
          %v921 = vld [vmem:[#allocation5 + $0x5c8] sm:$0xf]
          %v922 = vld [vmem:[#allocation5 + $0x5f0] sm:$0xf]
          %v923 = vld [vmem:[#allocation5 + $0x618] sm:$0xf]
          %v924 = vld [vmem:[#allocation5 + $0x640] sm:$0xf]
          %v925 = vld [vmem:[#allocation5 + $0x668] sm:$0xf]
          %v926 = vld [vmem:[#allocation5 + $0x690] sm:$0xf]
          %v927 = vld [vmem:[#allocation5 + $0x6b8] sm:$0xf]
          %v928 = vld [vmem:[#allocation5 + $0x6e0] sm:$0xf]
          %v929 = vld [vmem:[#allocation5 + $0x708] sm:$0xf]
          %v930 = vld [vmem:[#allocation5 + $0x730] sm:$0xf]
          %v931 = vld [vmem:[#allocation5 + $0x758] sm:$0xf]
          %v932 = vld [vmem:[%s7] sm:$0x1]
          %v934 = vlaneseq
          %v935 = vshrl.u32 %v934, 7
          %v936 = vsub.s32 0, %v935
          %v937 = vrot.slane %v932, %v936
          %v987 = vunpack.c.l.b16 %v884
          %v988 = vunpack.c.l.b16 %v885
          %v989 = vunpack.c.l.b16 %v886
          %v990 = vunpack.c.l.b16 %v887
          %v991 = vunpack.c.l.b16 %v888
          %v992 = vunpack.c.l.b16 %v889
          %v993 = vunpack.c.l.b16 %v890
          %v994 = vunpack.c.l.b16 %v891
          %v995 = vunpack.c.l.b16 %v892
          %v996 = vunpack.c.l.b16 %v893
          %v997 = vunpack.c.l.b16 %v894
          %v998 = vunpack.c.l.b16 %v895
          %v999 = vunpack.c.l.b16 %v896
          %v1000 = vunpack.c.l.b16 %v897
          %v1001 = vunpack.c.l.b16 %v898
          %v1002 = vunpack.c.l.b16 %v899
          %v1003 = vunpack.c.l.b16 %v900
          %v1004 = vunpack.c.l.b16 %v901
          %v1005 = vunpack.c.l.b16 %v902
          %v1006 = vunpack.c.l.b16 %v903
          %v1007 = vunpack.c.l.b16 %v904
          %v1008 = vunpack.c.l.b16 %v905
          %v1009 = vunpack.c.l.b16 %v906
          %v1010 = vunpack.c.l.b16 %v907
          %v1011 = vunpack.c.l.b16 %v908
          %v1012 = vunpack.c.l.b16 %v909
          %v1013 = vunpack.c.l.b16 %v910
          %v1014 = vunpack.c.l.b16 %v911
          %v1015 = vunpack.c.l.b16 %v912
          %v1016 = vunpack.c.l.b16 %v913
          %v1017 = vunpack.c.l.b16 %v914
          %v1018 = vunpack.c.l.b16 %v915
          %v1019 = vunpack.c.l.b16 %v916
          %v1020 = vunpack.c.l.b16 %v917
          %v1021 = vunpack.c.l.b16 %v918
          %v1022 = vunpack.c.l.b16 %v919
          %v1023 = vunpack.c.l.b16 %v920
          %v1024 = vunpack.c.l.b16 %v921
          %v1025 = vunpack.c.l.b16 %v922
          %v1026 = vunpack.c.l.b16 %v923
          %v1027 = vunpack.c.l.b16 %v924
          %v1028 = vunpack.c.l.b16 %v925
          %v1029 = vunpack.c.l.b16 %v926
          %v1030 = vunpack.c.l.b16 %v927
          %v1031 = vunpack.c.l.b16 %v928
          %v1032 = vunpack.c.l.b16 %v929
          %v1033 = vunpack.c.l.b16 %v930
          %v1034 = vunpack.c.l.b16 %v931
          %v1035 = vpack.c.b16 %v988, %v987
          %v1036 = vpack.c.b16 %v990, %v989
          %v1037 = vpack.c.b16 %v992, %v991
          %v1038 = vpack.c.b16 %v994, %v993
          %v1039 = vpack.c.b16 %v996, %v995
          %v1040 = vpack.c.b16 %v998, %v997
          %v1041 = vpack.c.b16 %v1000, %v999
          %v1042 = vpack.c.b16 %v1002, %v1001
          %v1043 = vpack.c.b16 %v1004, %v1003
          %v1044 = vpack.c.b16 %v1006, %v1005
          %v1045 = vpack.c.b16 %v1008, %v1007
          %v1046 = vpack.c.b16 %v1010, %v1009
          %v1047 = vpack.c.b16 %v1012, %v1011
          %v1048 = vpack.c.b16 %v1014, %v1013
          %v1049 = vpack.c.b16 %v1016, %v1015
          %v1050 = vpack.c.b16 %v1018, %v1017
          %v1051 = vpack.c.b16 %v1020, %v1019
          %v1052 = vpack.c.b16 %v1022, %v1021
          %v1053 = vpack.c.b16 %v1024, %v1023
          %v1054 = vpack.c.b16 %v1026, %v1025
          %v1055 = vpack.c.b16 %v1028, %v1027
          %v1056 = vpack.c.b16 %v1030, %v1029
          %v1057 = vpack.c.b16 %v1032, %v1031
          %v1058 = vpack.c.b16 %v1034, %v1033
          %1083 = vmatprep.subr.bf16.mxu0 0
          %1084 = vmatpush1.bf16.msra.mxu0 %v1042
          %1085 = vmatprep.subr.bf16.mxu0 0
          %1086 = vmatpush1.bf16.msra.mxu0 %v1041
          %1087 = vmatprep.subr.bf16.mxu0 0
          %1088 = vmatpush1.bf16.msra.mxu0 %v1040
          %1089 = vmatprep.subr.bf16.mxu0 0
          %1090 = vmatpush1.bf16.msra.mxu0 %v1039
          %1091 = vmatprep.subr.bf16.mxu0 0
          %1092 = vmatpush1.bf16.msra.mxu0 %v1038
          %1093 = vmatprep.subr.bf16.mxu0 0
          %1094 = vmatpush1.bf16.msra.mxu0 %v1037
          %1095 = vmatprep.subr.bf16.mxu0 0
          %1096 = vmatpush1.bf16.msra.mxu0 %v1036
          %1097 = vmatprep.subr.bf16.mxu0 0
          %1098 = vmatpush1.bf16.msra.mxu0 %v1035
          %1099 = vmatprep.subr.bf16.mxu0 0
          %1100 = vmatpush2.bf16.msra.mxu0 %v1050
          %1101 = vmatprep.subr.bf16.mxu0 0
          %1102 = vmatpush2.bf16.msra.mxu0 %v1049
          %1103 = vmatprep.subr.bf16.mxu0 0
          %1104 = vmatpush2.bf16.msra.mxu0 %v1048
          %1105 = vmatprep.subr.bf16.mxu0 0
          %1106 = vmatpush2.bf16.msra.mxu0 %v1047
          %1107 = vmatprep.subr.bf16.mxu0 0
          %1108 = vmatpush2.bf16.msra.mxu0 %v1046
          %1109 = vmatprep.subr.bf16.mxu0 0
          %1110 = vmatpush2.bf16.msra.mxu0 %v1045
          %1111 = vmatprep.subr.bf16.mxu0 0
          %1112 = vmatpush2.bf16.msra.mxu0 %v1044
          %1113 = vmatprep.subr.bf16.mxu0 0
          %1114 = vmatpush2.bf16.msra.mxu0 %v1043
          %1115 = vmatprep.mubr.bf16.mxu0 %v882
          %1116 = vmatmul.mubr.bf16.gmra.mxu0 %v881
          %v1117 = vpop.f32.mrf.mxu0
          %v1118 = vadd.f32 %v937, %v1117
          %v1119 = vpop.f32.mrf.mxu0
          %v1120 = vpop.f32.mrf.mxu0
          %v1121 = vpop.f32.mrf.mxu0
          %1122 = vdwg.mxu0
          %1123 = vmatprep.subr.bf16.mxu0 0
          %1124 = vmatpush1.bf16.msra.mxu0 %v1058
          %1125 = vmatprep.subr.bf16.mxu0 0
          %1126 = vmatpush1.bf16.msra.mxu0 %v1057
          %1127 = vmatprep.subr.bf16.mxu0 0
          %1128 = vmatpush1.bf16.msra.mxu0 %v1056
          %1129 = vmatprep.subr.bf16.mxu0 0
          %1130 = vmatpush1.bf16.msra.mxu0 %v1055
          %1131 = vmatprep.subr.bf16.mxu0 0
          %1132 = vmatpush1.bf16.msra.mxu0 %v1054
          %1133 = vmatprep.subr.bf16.mxu0 0
          %1134 = vmatpush1.bf16.msra.mxu0 %v1053
          %1135 = vmatprep.subr.bf16.mxu0 0
          %1136 = vmatpush1.bf16.msra.mxu0 %v1052
          %1137 = vmatprep.subr.bf16.mxu0 0
          %1138 = vmatpush1.bf16.msra.mxu0 %v1051
          %1139 = vmatprep.subr.bf16.mxu0 0
          %1140 = vmatpush2.bf16.msra.mxu0 0
          %1141 = vmatprep.subr.bf16.mxu0 0
          %1142 = vmatpush2.bf16.msra.mxu0 0
          %1143 = vmatprep.subr.bf16.mxu0 0
          %1144 = vmatpush2.bf16.msra.mxu0 0
          %1145 = vmatprep.subr.bf16.mxu0 0
          %1146 = vmatpush2.bf16.msra.mxu0 0
          %1147 = vmatprep.subr.bf16.mxu0 0
          %1148 = vmatpush2.bf16.msra.mxu0 0
          %1149 = vmatprep.subr.bf16.mxu0 0
          %1150 = vmatpush2.bf16.msra.mxu0 0
          %1151 = vmatprep.subr.bf16.mxu0 0
          %1152 = vmatpush2.bf16.msra.mxu0 0
          %1153 = vmatprep.subr.bf16.mxu0 0
          %1154 = vmatpush2.bf16.msra.mxu0 0
          %1155 = vmatprep.mubr.bf16.mxu0 0
          %1156 = vmatmul.mubr.bf16.gmra.mxu0 %v883
          %v1157 = vpop.f32.mrf.mxu0
          %v1158 = vadd.f32 %v1118, %v1157
          %v1159 = vpop.f32.mrf.mxu0
          %v1160 = vpop.f32.mrf.mxu0
          %v1161 = vpop.f32.mrf.mxu0
          %1162 = vdwg.mxu0
          %v1163 = vmax.f32 %v1158, 0.0
          %v1164 = vpack.c.bf16 %v1163, %v1163
          %v1165 = vpack.c.bf16 %v586, %v586
          %v1166 = vpack.c.bf16 %v587, %v587
          %v1167 = vld [vmem:[#allocation5 + $0x4] sm:$0xff]
          %v1168 = vld [vmem:[#allocation5 + $0xc] sm:$0xff]
          %v1169 = vld [vmem:[#allocation5 + $0x14] sm:$0xff]
          %v1170 = vld [vmem:[#allocation5 + $0x1c] sm:$0xff]
          %v1171 = vld [vmem:[#allocation5 + $0x2c] sm:$0xff]
          %v1172 = vld [vmem:[#allocation5 + $0x34] sm:$0xff]
          %v1173 = vld [vmem:[#allocation5 + $0x3c] sm:$0xff]
          %v1174 = vld [vmem:[#allocation5 + $0x44] sm:$0xff]
          %v1175 = vld [vmem:[#allocation5 + $0x54] sm:$0xff]
          %v1176 = vld [vmem:[#allocation5 + $0x5c] sm:$0xff]
          %v1177 = vld [vmem:[#allocation5 + $0x64] sm:$0xff]
          %v1178 = vld [vmem:[#allocation5 + $0x6c] sm:$0xff]
          %v1179 = vld [vmem:[#allocation5 + $0x7c] sm:$0xff]
          %v1180 = vld [vmem:[#allocation5 + $0x84] sm:$0xff]
          %v1181 = vld [vmem:[#allocation5 + $0x8c] sm:$0xff]
          %v1182 = vld [vmem:[#allocation5 + $0x94] sm:$0xff]
          %v1183 = vld [vmem:[#allocation5 + $0xa4] sm:$0xff]
          %v1184 = vld [vmem:[#allocation5 + $0xac] sm:$0xff]
          %v1185 = vld [vmem:[#allocation5 + $0xb4] sm:$0xff]
          %v1186 = vld [vmem:[#allocation5 + $0xbc] sm:$0xff]
          %v1187 = vld [vmem:[#allocation5 + $0xcc] sm:$0xff]
          %v1188 = vld [vmem:[#allocation5 + $0xd4] sm:$0xff]
          %v1189 = vld [vmem:[#allocation5 + $0xdc] sm:$0xff]
          %v1190 = vld [vmem:[#allocation5 + $0xe4] sm:$0xff]
          %v1191 = vld [vmem:[#allocation5 + $0xf4] sm:$0xff]
          %v1192 = vld [vmem:[#allocation5 + $0xfc] sm:$0xff]
          %v1193 = vld [vmem:[#allocation5 + $0x104] sm:$0xff]
          %v1194 = vld [vmem:[#allocation5 + $0x10c] sm:$0xff]
          %v1195 = vld [vmem:[#allocation5 + $0x11c] sm:$0xff]
          %v1196 = vld [vmem:[#allocation5 + $0x124] sm:$0xff]
          %v1197 = vld [vmem:[#allocation5 + $0x12c] sm:$0xff]
          %v1198 = vld [vmem:[#allocation5 + $0x134] sm:$0xff]
          %v1199 = vld [vmem:[#allocation5 + $0x144] sm:$0xff]
          %v1200 = vld [vmem:[#allocation5 + $0x14c] sm:$0xff]
          %v1201 = vld [vmem:[#allocation5 + $0x154] sm:$0xff]
          %v1202 = vld [vmem:[#allocation5 + $0x15c] sm:$0xff]
          %v1203 = vld [vmem:[#allocation5 + $0x16c] sm:$0xff]
          %v1204 = vld [vmem:[#allocation5 + $0x174] sm:$0xff]
          %v1205 = vld [vmem:[#allocation5 + $0x17c] sm:$0xff]
          %v1206 = vld [vmem:[#allocation5 + $0x184] sm:$0xff]
          %v1207 = vld [vmem:[#allocation5 + $0x194] sm:$0xff]
          %v1208 = vld [vmem:[#allocation5 + $0x19c] sm:$0xff]
          %v1209 = vld [vmem:[#allocation5 + $0x1a4] sm:$0xff]
          %v1210 = vld [vmem:[#allocation5 + $0x1ac] sm:$0xff]
          %v1211 = vld [vmem:[#allocation5 + $0x1bc] sm:$0xff]
          %v1212 = vld [vmem:[#allocation5 + $0x1c4] sm:$0xff]
          %v1213 = vld [vmem:[#allocation5 + $0x1cc] sm:$0xff]
          %v1214 = vld [vmem:[#allocation5 + $0x1d4] sm:$0xff]
          %v1215 = vld [vmem:[#allocation5 + $0x1e4] sm:$0xff]
          %v1216 = vld [vmem:[#allocation5 + $0x1ec] sm:$0xff]
          %v1217 = vld [vmem:[#allocation5 + $0x1f4] sm:$0xff]
          %v1218 = vld [vmem:[#allocation5 + $0x1fc] sm:$0xff]
          %v1219 = vld [vmem:[#allocation5 + $0x20c] sm:$0xff]
          %v1220 = vld [vmem:[#allocation5 + $0x214] sm:$0xff]
          %v1221 = vld [vmem:[#allocation5 + $0x21c] sm:$0xff]
          %v1222 = vld [vmem:[#allocation5 + $0x224] sm:$0xff]
          %v1223 = vld [vmem:[#allocation5 + $0x234] sm:$0xff]
          %v1224 = vld [vmem:[#allocation5 + $0x23c] sm:$0xff]
          %v1225 = vld [vmem:[#allocation5 + $0x244] sm:$0xff]
          %v1226 = vld [vmem:[#allocation5 + $0x24c] sm:$0xff]
          %v1227 = vld [vmem:[#allocation5 + $0x25c] sm:$0xff]
          %v1228 = vld [vmem:[#allocation5 + $0x264] sm:$0xff]
          %v1229 = vld [vmem:[#allocation5 + $0x26c] sm:$0xff]
          %v1230 = vld [vmem:[#allocation5 + $0x274] sm:$0xff]
          %v1231 = vld [vmem:[#allocation5 + $0x284] sm:$0xff]
          %v1232 = vld [vmem:[#allocation5 + $0x28c] sm:$0xff]
          %v1233 = vld [vmem:[#allocation5 + $0x294] sm:$0xff]
          %v1234 = vld [vmem:[#allocation5 + $0x29c] sm:$0xff]
          %v1235 = vld [vmem:[#allocation5 + $0x2ac] sm:$0xff]
          %v1236 = vld [vmem:[#allocation5 + $0x2b4] sm:$0xff]
          %v1237 = vld [vmem:[#allocation5 + $0x2bc] sm:$0xff]
          %v1238 = vld [vmem:[#allocation5 + $0x2c4] sm:$0xff]
          %v1239 = vld [vmem:[#allocation5 + $0x2d4] sm:$0xff]
          %v1240 = vld [vmem:[#allocation5 + $0x2dc] sm:$0xff]
          %v1241 = vld [vmem:[#allocation5 + $0x2e4] sm:$0xff]
          %v1242 = vld [vmem:[#allocation5 + $0x2ec] sm:$0xff]
          %v1243 = vld [vmem:[#allocation5 + $0x2fc] sm:$0xff]
          %v1244 = vld [vmem:[#allocation5 + $0x304] sm:$0xff]
          %v1245 = vld [vmem:[#allocation5 + $0x30c] sm:$0xff]
          %v1246 = vld [vmem:[#allocation5 + $0x314] sm:$0xff]
          %v1247 = vld [vmem:[#allocation5 + $0x324] sm:$0xff]
          %v1248 = vld [vmem:[#allocation5 + $0x32c] sm:$0xff]
          %v1249 = vld [vmem:[#allocation5 + $0x334] sm:$0xff]
          %v1250 = vld [vmem:[#allocation5 + $0x33c] sm:$0xff]
          %v1251 = vld [vmem:[#allocation5 + $0x34c] sm:$0xff]
          %v1252 = vld [vmem:[#allocation5 + $0x354] sm:$0xff]
          %v1253 = vld [vmem:[#allocation5 + $0x35c] sm:$0xff]
          %v1254 = vld [vmem:[#allocation5 + $0x364] sm:$0xff]
          %v1255 = vld [vmem:[#allocation5 + $0x374] sm:$0xff]
          %v1256 = vld [vmem:[#allocation5 + $0x37c] sm:$0xff]
          %v1257 = vld [vmem:[#allocation5 + $0x384] sm:$0xff]
          %v1258 = vld [vmem:[#allocation5 + $0x38c] sm:$0xff]
          %v1259 = vld [vmem:[#allocation5 + $0x39c] sm:$0xff]
          %v1260 = vld [vmem:[#allocation5 + $0x3a4] sm:$0xff]
          %v1261 = vld [vmem:[#allocation5 + $0x3ac] sm:$0xff]
          %v1262 = vld [vmem:[#allocation5 + $0x3b4] sm:$0xff]
          %v1263 = vld [vmem:[#allocation5 + $0x3c4] sm:$0xff]
          %v1264 = vld [vmem:[#allocation5 + $0x3cc] sm:$0xff]
          %v1265 = vld [vmem:[#allocation5 + $0x3d4] sm:$0xff]
          %v1266 = vld [vmem:[#allocation5 + $0x3dc] sm:$0xff]
          %v1267 = vld [vmem:[#allocation5 + $0x3ec] sm:$0xff]
          %v1268 = vld [vmem:[#allocation5 + $0x3f4] sm:$0xff]
          %v1269 = vld [vmem:[#allocation5 + $0x3fc] sm:$0xff]
          %v1270 = vld [vmem:[#allocation5 + $0x404] sm:$0xff]
          %v1271 = vld [vmem:[#allocation5 + $0x414] sm:$0xff]
          %v1272 = vld [vmem:[#allocation5 + $0x41c] sm:$0xff]
          %v1273 = vld [vmem:[#allocation5 + $0x424] sm:$0xff]
          %v1274 = vld [vmem:[#allocation5 + $0x42c] sm:$0xff]
          %v1275 = vld [vmem:[#allocation5 + $0x43c] sm:$0xff]
          %v1276 = vld [vmem:[#allocation5 + $0x444] sm:$0xff]
          %v1277 = vld [vmem:[#allocation5 + $0x44c] sm:$0xff]
          %v1278 = vld [vmem:[#allocation5 + $0x454] sm:$0xff]
          %v1279 = vld [vmem:[#allocation5 + $0x464] sm:$0xff]
          %v1280 = vld [vmem:[#allocation5 + $0x46c] sm:$0xff]
          %v1281 = vld [vmem:[#allocation5 + $0x474] sm:$0xff]
          %v1282 = vld [vmem:[#allocation5 + $0x47c] sm:$0xff]
          %v1283 = vld [vmem:[#allocation5 + $0x48c] sm:$0xff]
          %v1284 = vld [vmem:[#allocation5 + $0x494] sm:$0xff]
          %v1285 = vld [vmem:[#allocation5 + $0x49c] sm:$0xff]
          %v1286 = vld [vmem:[#allocation5 + $0x4a4] sm:$0xff]
          %v1287 = vld [vmem:[#allocation5 + $0x4b4] sm:$0xff]
          %v1288 = vld [vmem:[#allocation5 + $0x4bc] sm:$0xff]
          %v1289 = vld [vmem:[#allocation5 + $0x4c4] sm:$0xff]
          %v1290 = vld [vmem:[#allocation5 + $0x4cc] sm:$0xff]
          %v1291 = vld [vmem:[#allocation5 + $0x4dc] sm:$0xff]
          %v1292 = vld [vmem:[#allocation5 + $0x4e4] sm:$0xff]
          %v1293 = vld [vmem:[#allocation5 + $0x4ec] sm:$0xff]
          %v1294 = vld [vmem:[#allocation5 + $0x4f4] sm:$0xff]
          %v1295 = vld [vmem:[#allocation5 + $0x504] sm:$0xff]
          %v1296 = vld [vmem:[#allocation5 + $0x50c] sm:$0xff]
          %v1297 = vld [vmem:[#allocation5 + $0x514] sm:$0xff]
          %v1298 = vld [vmem:[#allocation5 + $0x51c] sm:$0xff]
          %v1299 = vld [vmem:[#allocation5 + $0x52c] sm:$0xff]
          %v1300 = vld [vmem:[#allocation5 + $0x534] sm:$0xff]
          %v1301 = vld [vmem:[#allocation5 + $0x53c] sm:$0xff]
          %v1302 = vld [vmem:[#allocation5 + $0x544] sm:$0xff]
          %v1303 = vld [vmem:[#allocation5 + $0x554] sm:$0xff]
          %v1304 = vld [vmem:[#allocation5 + $0x55c] sm:$0xff]
          %v1305 = vld [vmem:[#allocation5 + $0x564] sm:$0xff]
          %v1306 = vld [vmem:[#allocation5 + $0x56c] sm:$0xff]
          %v1307 = vld [vmem:[#allocation5 + $0x57c] sm:$0xff]
          %v1308 = vld [vmem:[#allocation5 + $0x584] sm:$0xff]
          %v1309 = vld [vmem:[#allocation5 + $0x58c] sm:$0xff]
          %v1310 = vld [vmem:[#allocation5 + $0x594] sm:$0xff]
          %v1311 = vld [vmem:[#allocation5 + $0x5a4] sm:$0xff]
          %v1312 = vld [vmem:[#allocation5 + $0x5ac] sm:$0xff]
          %v1313 = vld [vmem:[#allocation5 + $0x5b4] sm:$0xff]
          %v1314 = vld [vmem:[#allocation5 + $0x5bc] sm:$0xff]
          %v1315 = vld [vmem:[#allocation5 + $0x5cc] sm:$0xff]
          %v1316 = vld [vmem:[#allocation5 + $0x5d4] sm:$0xff]
          %v1317 = vld [vmem:[#allocation5 + $0x5dc] sm:$0xff]
          %v1318 = vld [vmem:[#allocation5 + $0x5e4] sm:$0xff]
          %v1319 = vld [vmem:[#allocation5 + $0x5f4] sm:$0xff]
          %v1320 = vld [vmem:[#allocation5 + $0x5fc] sm:$0xff]
          %v1321 = vld [vmem:[#allocation5 + $0x604] sm:$0xff]
          %v1322 = vld [vmem:[#allocation5 + $0x60c] sm:$0xff]
          %v1323 = vld [vmem:[#allocation5 + $0x61c] sm:$0xff]
          %v1324 = vld [vmem:[#allocation5 + $0x624] sm:$0xff]
          %v1325 = vld [vmem:[#allocation5 + $0x62c] sm:$0xff]
          %v1326 = vld [vmem:[#allocation5 + $0x634] sm:$0xff]
          %v1327 = vld [vmem:[#allocation5 + $0x644] sm:$0xff]
          %v1328 = vld [vmem:[#allocation5 + $0x64c] sm:$0xff]
          %v1329 = vld [vmem:[#allocation5 + $0x654] sm:$0xff]
          %v1330 = vld [vmem:[#allocation5 + $0x65c] sm:$0xff]
          %v1331 = vld [vmem:[#allocation5 + $0x66c] sm:$0xff]
          %v1332 = vld [vmem:[#allocation5 + $0x674] sm:$0xff]
          %v1333 = vld [vmem:[#allocation5 + $0x67c] sm:$0xff]
          %v1334 = vld [vmem:[#allocation5 + $0x684] sm:$0xff]
          %v1335 = vld [vmem:[#allocation5 + $0x694] sm:$0xff]
          %v1336 = vld [vmem:[#allocation5 + $0x69c] sm:$0xff]
          %v1337 = vld [vmem:[#allocation5 + $0x6a4] sm:$0xff]
          %v1338 = vld [vmem:[#allocation5 + $0x6ac] sm:$0xff]
          %v1339 = vld [vmem:[#allocation5 + $0x6bc] sm:$0xff]
          %v1340 = vld [vmem:[#allocation5 + $0x6c4] sm:$0xff]
          %v1341 = vld [vmem:[#allocation5 + $0x6cc] sm:$0xff]
          %v1342 = vld [vmem:[#allocation5 + $0x6d4] sm:$0xff]
          %v1343 = vld [vmem:[#allocation5 + $0x6e4] sm:$0xff]
          %v1344 = vld [vmem:[#allocation5 + $0x6ec] sm:$0xff]
          %v1345 = vld [vmem:[#allocation5 + $0x6f4] sm:$0xff]
          %v1346 = vld [vmem:[#allocation5 + $0x6fc] sm:$0xff]
          %v1347 = vld [vmem:[#allocation5 + $0x70c] sm:$0xff]
          %v1348 = vld [vmem:[#allocation5 + $0x714] sm:$0xff]
          %v1349 = vld [vmem:[#allocation5 + $0x71c] sm:$0xff]
          %v1350 = vld [vmem:[#allocation5 + $0x724] sm:$0xff]
          %v1351 = vld [vmem:[#allocation5 + $0x734] sm:$0xff]
          %v1352 = vld [vmem:[#allocation5 + $0x73c] sm:$0xff]
          %v1353 = vld [vmem:[#allocation5 + $0x744] sm:$0xff]
          %v1354 = vld [vmem:[#allocation5 + $0x74c] sm:$0xff]
          %v1355 = vld [vmem:[#allocation5 + $0x75c] sm:$0xff]
          %v1356 = vld [vmem:[#allocation5 + $0x764] sm:$0xff]
          %v1357 = vld [vmem:[#allocation5 + $0x76c] sm:$0xff]
          %v1358 = vld [vmem:[#allocation5 + $0x774] sm:$0xff]
          %v1359 = vld [vmem:[%s7 + $0x1] sm:$0xff]
          %v1361 = vlaneseq
          %v1362 = vshrl.u32 %v1361, 7
          %v1363 = vsub.s32 0, %v1362
          %v1364 = vrot.slane %v1359, %v1363
          %v1365 = vlaneseq
          %v1366 = vshrl.u32 %v1365, 7
          %v1367 = vsub.s32 1, %v1366
          %v1368 = vrot.slane %v1359, %v1367
          %v1369 = vlaneseq
          %v1370 = vshrl.u32 %v1369, 7
          %v1371 = vsub.s32 2, %v1370
          %v1372 = vrot.slane %v1359, %v1371
          %v1373 = vlaneseq
          %v1374 = vshrl.u32 %v1373, 7
          %v1375 = vsub.s32 3, %v1374
          %v1376 = vrot.slane %v1359, %v1375
          %v1377 = vlaneseq
          %v1378 = vshrl.u32 %v1377, 7
          %v1379 = vsub.s32 4, %v1378
          %v1380 = vrot.slane %v1359, %v1379
          %v1381 = vlaneseq
          %v1382 = vshrl.u32 %v1381, 7
          %v1383 = vsub.s32 5, %v1382
          %v1384 = vrot.slane %v1359, %v1383
          %v1385 = vlaneseq
          %v1386 = vshrl.u32 %v1385, 7
          %v1387 = vsub.s32 6, %v1386
          %v1388 = vrot.slane %v1359, %v1387
          %v1389 = vlaneseq
          %v1390 = vshrl.u32 %v1389, 7
          %v1391 = vsub.s32 7, %v1390
          %v1392 = vrot.slane %v1359, %v1391
          %v1593 = vunpack.c.l.b16 %v1167
          %v1594 = vunpack.c.h.b16 %v1167
          %v1595 = vunpack.c.l.b16 %v1168
          %v1596 = vunpack.c.h.b16 %v1168
          %v1597 = vunpack.c.l.b16 %v1169
          %v1598 = vunpack.c.h.b16 %v1169
          %v1599 = vunpack.c.l.b16 %v1170
          %v1600 = vunpack.c.h.b16 %v1170
          %v1601 = vunpack.c.l.b16 %v1171
          %v1602 = vunpack.c.h.b16 %v1171
          %v1603 = vunpack.c.l.b16 %v1172
          %v1604 = vunpack.c.h.b16 %v1172
          %v1605 = vunpack.c.l.b16 %v1173
          %v1606 = vunpack.c.h.b16 %v1173
          %v1607 = vunpack.c.l.b16 %v1174
          %v1608 = vunpack.c.h.b16 %v1174
          %v1609 = vunpack.c.l.b16 %v1175
          %v1610 = vunpack.c.h.b16 %v1175
          %v1611 = vunpack.c.l.b16 %v1176
          %v1612 = vunpack.c.h.b16 %v1176
          %v1613 = vunpack.c.l.b16 %v1177
          %v1614 = vunpack.c.h.b16 %v1177
          %v1615 = vunpack.c.l.b16 %v1178
          %v1616 = vunpack.c.h.b16 %v1178
          %v1617 = vunpack.c.l.b16 %v1179
          %v1618 = vunpack.c.h.b16 %v1179
          %v1619 = vunpack.c.l.b16 %v1180
          %v1620 = vunpack.c.h.b16 %v1180
          %v1621 = vunpack.c.l.b16 %v1181
          %v1622 = vunpack.c.h.b16 %v1181
          %v1623 = vunpack.c.l.b16 %v1182
          %v1624 = vunpack.c.h.b16 %v1182
          %v1625 = vunpack.c.l.b16 %v1183
          %v1626 = vunpack.c.h.b16 %v1183
          %v1627 = vunpack.c.l.b16 %v1184
          %v1628 = vunpack.c.h.b16 %v1184
          %v1629 = vunpack.c.l.b16 %v1185
          %v1630 = vunpack.c.h.b16 %v1185
          %v1631 = vunpack.c.l.b16 %v1186
          %v1632 = vunpack.c.h.b16 %v1186
          %v1633 = vunpack.c.l.b16 %v1187
          %v1634 = vunpack.c.h.b16 %v1187
          %v1635 = vunpack.c.l.b16 %v1188
          %v1636 = vunpack.c.h.b16 %v1188
          %v1637 = vunpack.c.l.b16 %v1189
          %v1638 = vunpack.c.h.b16 %v1189
          %v1639 = vunpack.c.l.b16 %v1190
          %v1640 = vunpack.c.h.b16 %v1190
          %v1641 = vunpack.c.l.b16 %v1191
          %v1642 = vunpack.c.h.b16 %v1191
          %v1643 = vunpack.c.l.b16 %v1192
          %v1644 = vunpack.c.h.b16 %v1192
          %v1645 = vunpack.c.l.b16 %v1193
          %v1646 = vunpack.c.h.b16 %v1193
          %v1647 = vunpack.c.l.b16 %v1194
          %v1648 = vunpack.c.h.b16 %v1194
          %v1649 = vunpack.c.l.b16 %v1195
          %v1650 = vunpack.c.h.b16 %v1195
          %v1651 = vunpack.c.l.b16 %v1196
          %v1652 = vunpack.c.h.b16 %v1196
          %v1653 = vunpack.c.l.b16 %v1197
          %v1654 = vunpack.c.h.b16 %v1197
          %v1655 = vunpack.c.l.b16 %v1198
          %v1656 = vunpack.c.h.b16 %v1198
          %v1657 = vunpack.c.l.b16 %v1199
          %v1658 = vunpack.c.h.b16 %v1199
          %v1659 = vunpack.c.l.b16 %v1200
          %v1660 = vunpack.c.h.b16 %v1200
          %v1661 = vunpack.c.l.b16 %v1201
          %v1662 = vunpack.c.h.b16 %v1201
          %v1663 = vunpack.c.l.b16 %v1202
          %v1664 = vunpack.c.h.b16 %v1202
          %v1665 = vunpack.c.l.b16 %v1203
          %v1666 = vunpack.c.h.b16 %v1203
          %v1667 = vunpack.c.l.b16 %v1204
          %v1668 = vunpack.c.h.b16 %v1204
          %v1669 = vunpack.c.l.b16 %v1205
          %v1670 = vunpack.c.h.b16 %v1205
          %v1671 = vunpack.c.l.b16 %v1206
          %v1672 = vunpack.c.h.b16 %v1206
          %v1673 = vunpack.c.l.b16 %v1207
          %v1674 = vunpack.c.h.b16 %v1207
          %v1675 = vunpack.c.l.b16 %v1208
          %v1676 = vunpack.c.h.b16 %v1208
          %v1677 = vunpack.c.l.b16 %v1209
          %v1678 = vunpack.c.h.b16 %v1209
          %v1679 = vunpack.c.l.b16 %v1210
          %v1680 = vunpack.c.h.b16 %v1210
          %v1681 = vunpack.c.l.b16 %v1211
          %v1682 = vunpack.c.h.b16 %v1211
          %v1683 = vunpack.c.l.b16 %v1212
          %v1684 = vunpack.c.h.b16 %v1212
          %v1685 = vunpack.c.l.b16 %v1213
          %v1686 = vunpack.c.h.b16 %v1213
          %v1687 = vunpack.c.l.b16 %v1214
          %v1688 = vunpack.c.h.b16 %v1214
          %v1689 = vunpack.c.l.b16 %v1215
          %v1690 = vunpack.c.h.b16 %v1215
          %v1691 = vunpack.c.l.b16 %v1216
          %v1692 = vunpack.c.h.b16 %v1216
          %v1693 = vunpack.c.l.b16 %v1217
          %v1694 = vunpack.c.h.b16 %v1217
          %v1695 = vunpack.c.l.b16 %v1218
          %v1696 = vunpack.c.h.b16 %v1218
          %v1697 = vunpack.c.l.b16 %v1219
          %v1698 = vunpack.c.h.b16 %v1219
          %v1699 = vunpack.c.l.b16 %v1220
          %v1700 = vunpack.c.h.b16 %v1220
          %v1701 = vunpack.c.l.b16 %v1221
          %v1702 = vunpack.c.h.b16 %v1221
          %v1703 = vunpack.c.l.b16 %v1222
          %v1704 = vunpack.c.h.b16 %v1222
          %v1705 = vunpack.c.l.b16 %v1223
          %v1706 = vunpack.c.h.b16 %v1223
          %v1707 = vunpack.c.l.b16 %v1224
          %v1708 = vunpack.c.h.b16 %v1224
          %v1709 = vunpack.c.l.b16 %v1225
          %v1710 = vunpack.c.h.b16 %v1225
          %v1711 = vunpack.c.l.b16 %v1226
          %v1712 = vunpack.c.h.b16 %v1226
          %v1713 = vunpack.c.l.b16 %v1227
          %v1714 = vunpack.c.h.b16 %v1227
          %v1715 = vunpack.c.l.b16 %v1228
          %v1716 = vunpack.c.h.b16 %v1228
          %v1717 = vunpack.c.l.b16 %v1229
          %v1718 = vunpack.c.h.b16 %v1229
          %v1719 = vunpack.c.l.b16 %v1230
          %v1720 = vunpack.c.h.b16 %v1230
          %v1721 = vunpack.c.l.b16 %v1231
          %v1722 = vunpack.c.h.b16 %v1231
          %v1723 = vunpack.c.l.b16 %v1232
          %v1724 = vunpack.c.h.b16 %v1232
          %v1725 = vunpack.c.l.b16 %v1233
          %v1726 = vunpack.c.h.b16 %v1233
          %v1727 = vunpack.c.l.b16 %v1234
          %v1728 = vunpack.c.h.b16 %v1234
          %v1729 = vunpack.c.l.b16 %v1235
          %v1730 = vunpack.c.h.b16 %v1235
          %v1731 = vunpack.c.l.b16 %v1236
          %v1732 = vunpack.c.h.b16 %v1236
          %v1733 = vunpack.c.l.b16 %v1237
          %v1734 = vunpack.c.h.b16 %v1237
          %v1735 = vunpack.c.l.b16 %v1238
          %v1736 = vunpack.c.h.b16 %v1238
          %v1737 = vunpack.c.l.b16 %v1239
          %v1738 = vunpack.c.h.b16 %v1239
          %v1739 = vunpack.c.l.b16 %v1240
          %v1740 = vunpack.c.h.b16 %v1240
          %v1741 = vunpack.c.l.b16 %v1241
          %v1742 = vunpack.c.h.b16 %v1241
          %v1743 = vunpack.c.l.b16 %v1242
          %v1744 = vunpack.c.h.b16 %v1242
          %v1745 = vunpack.c.l.b16 %v1243
          %v1746 = vunpack.c.h.b16 %v1243
          %v1747 = vunpack.c.l.b16 %v1244
          %v1748 = vunpack.c.h.b16 %v1244
          %v1749 = vunpack.c.l.b16 %v1245
          %v1750 = vunpack.c.h.b16 %v1245
          %v1751 = vunpack.c.l.b16 %v1246
          %v1752 = vunpack.c.h.b16 %v1246
          %v1753 = vunpack.c.l.b16 %v1247
          %v1754 = vunpack.c.h.b16 %v1247
          %v1755 = vunpack.c.l.b16 %v1248
          %v1756 = vunpack.c.h.b16 %v1248
          %v1757 = vunpack.c.l.b16 %v1249
          %v1758 = vunpack.c.h.b16 %v1249
          %v1759 = vunpack.c.l.b16 %v1250
          %v1760 = vunpack.c.h.b16 %v1250
          %v1761 = vunpack.c.l.b16 %v1251
          %v1762 = vunpack.c.h.b16 %v1251
          %v1763 = vunpack.c.l.b16 %v1252
          %v1764 = vunpack.c.h.b16 %v1252
          %v1765 = vunpack.c.l.b16 %v1253
          %v1766 = vunpack.c.h.b16 %v1253
          %v1767 = vunpack.c.l.b16 %v1254
          %v1768 = vunpack.c.h.b16 %v1254
          %v1769 = vunpack.c.l.b16 %v1255
          %v1770 = vunpack.c.h.b16 %v1255
          %v1771 = vunpack.c.l.b16 %v1256
          %v1772 = vunpack.c.h.b16 %v1256
          %v1773 = vunpack.c.l.b16 %v1257
          %v1774 = vunpack.c.h.b16 %v1257
          %v1775 = vunpack.c.l.b16 %v1258
          %v1776 = vunpack.c.h.b16 %v1258
          %v1777 = vunpack.c.l.b16 %v1259
          %v1778 = vunpack.c.h.b16 %v1259
          %v1779 = vunpack.c.l.b16 %v1260
          %v1780 = vunpack.c.h.b16 %v1260
          %v1781 = vunpack.c.l.b16 %v1261
          %v1782 = vunpack.c.h.b16 %v1261
          %v1783 = vunpack.c.l.b16 %v1262
          %v1784 = vunpack.c.h.b16 %v1262
          %v1785 = vunpack.c.l.b16 %v1263
          %v1786 = vunpack.c.h.b16 %v1263
          %v1787 = vunpack.c.l.b16 %v1264
          %v1788 = vunpack.c.h.b16 %v1264
          %v1789 = vunpack.c.l.b16 %v1265
          %v1790 = vunpack.c.h.b16 %v1265
          %v1791 = vunpack.c.l.b16 %v1266
          %v1792 = vunpack.c.h.b16 %v1266
          %v1793 = vunpack.c.l.b16 %v1267
          %v1794 = vunpack.c.h.b16 %v1267
          %v1795 = vunpack.c.l.b16 %v1268
          %v1796 = vunpack.c.h.b16 %v1268
          %v1797 = vunpack.c.l.b16 %v1269
          %v1798 = vunpack.c.h.b16 %v1269
          %v1799 = vunpack.c.l.b16 %v1270
          %v1800 = vunpack.c.h.b16 %v1270
          %v1801 = vunpack.c.l.b16 %v1271
          %v1802 = vunpack.c.h.b16 %v1271
          %v1803 = vunpack.c.l.b16 %v1272
          %v1804 = vunpack.c.h.b16 %v1272
          %v1805 = vunpack.c.l.b16 %v1273
          %v1806 = vunpack.c.h.b16 %v1273
          %v1807 = vunpack.c.l.b16 %v1274
          %v1808 = vunpack.c.h.b16 %v1274
          %v1809 = vunpack.c.l.b16 %v1275
          %v1810 = vunpack.c.h.b16 %v1275
          %v1811 = vunpack.c.l.b16 %v1276
          %v1812 = vunpack.c.h.b16 %v1276
          %v1813 = vunpack.c.l.b16 %v1277
          %v1814 = vunpack.c.h.b16 %v1277
          %v1815 = vunpack.c.l.b16 %v1278
          %v1816 = vunpack.c.h.b16 %v1278
          %v1817 = vunpack.c.l.b16 %v1279
          %v1818 = vunpack.c.h.b16 %v1279
          %v1819 = vunpack.c.l.b16 %v1280
          %v1820 = vunpack.c.h.b16 %v1280
          %v1821 = vunpack.c.l.b16 %v1281
          %v1822 = vunpack.c.h.b16 %v1281
          %v1823 = vunpack.c.l.b16 %v1282
          %v1824 = vunpack.c.h.b16 %v1282
          %v1825 = vunpack.c.l.b16 %v1283
          %v1826 = vunpack.c.h.b16 %v1283
          %v1827 = vunpack.c.l.b16 %v1284
          %v1828 = vunpack.c.h.b16 %v1284
          %v1829 = vunpack.c.l.b16 %v1285
          %v1830 = vunpack.c.h.b16 %v1285
          %v1831 = vunpack.c.l.b16 %v1286
          %v1832 = vunpack.c.h.b16 %v1286
          %v1833 = vunpack.c.l.b16 %v1287
          %v1834 = vunpack.c.h.b16 %v1287
          %v1835 = vunpack.c.l.b16 %v1288
          %v1836 = vunpack.c.h.b16 %v1288
          %v1837 = vunpack.c.l.b16 %v1289
          %v1838 = vunpack.c.h.b16 %v1289
          %v1839 = vunpack.c.l.b16 %v1290
          %v1840 = vunpack.c.h.b16 %v1290
          %v1841 = vunpack.c.l.b16 %v1291
          %v1842 = vunpack.c.h.b16 %v1291
          %v1843 = vunpack.c.l.b16 %v1292
          %v1844 = vunpack.c.h.b16 %v1292
          %v1845 = vunpack.c.l.b16 %v1293
          %v1846 = vunpack.c.h.b16 %v1293
          %v1847 = vunpack.c.l.b16 %v1294
          %v1848 = vunpack.c.h.b16 %v1294
          %v1849 = vunpack.c.l.b16 %v1295
          %v1850 = vunpack.c.h.b16 %v1295
          %v1851 = vunpack.c.l.b16 %v1296
          %v1852 = vunpack.c.h.b16 %v1296
          %v1853 = vunpack.c.l.b16 %v1297
          %v1854 = vunpack.c.h.b16 %v1297
          %v1855 = vunpack.c.l.b16 %v1298
          %v1856 = vunpack.c.h.b16 %v1298
          %v1857 = vunpack.c.l.b16 %v1299
          %v1858 = vunpack.c.h.b16 %v1299
          %v1859 = vunpack.c.l.b16 %v1300
          %v1860 = vunpack.c.h.b16 %v1300
          %v1861 = vunpack.c.l.b16 %v1301
          %v1862 = vunpack.c.h.b16 %v1301
          %v1863 = vunpack.c.l.b16 %v1302
          %v1864 = vunpack.c.h.b16 %v1302
          %v1865 = vunpack.c.l.b16 %v1303
          %v1866 = vunpack.c.h.b16 %v1303
          %v1867 = vunpack.c.l.b16 %v1304
          %v1868 = vunpack.c.h.b16 %v1304
          %v1869 = vunpack.c.l.b16 %v1305
          %v1870 = vunpack.c.h.b16 %v1305
          %v1871 = vunpack.c.l.b16 %v1306
          %v1872 = vunpack.c.h.b16 %v1306
          %v1873 = vunpack.c.l.b16 %v1307
          %v1874 = vunpack.c.h.b16 %v1307
          %v1875 = vunpack.c.l.b16 %v1308
          %v1876 = vunpack.c.h.b16 %v1308
          %v1877 = vunpack.c.l.b16 %v1309
          %v1878 = vunpack.c.h.b16 %v1309
          %v1879 = vunpack.c.l.b16 %v1310
          %v1880 = vunpack.c.h.b16 %v1310
          %v1881 = vunpack.c.l.b16 %v1311
          %v1882 = vunpack.c.h.b16 %v1311
          %v1883 = vunpack.c.l.b16 %v1312
          %v1884 = vunpack.c.h.b16 %v1312
          %v1885 = vunpack.c.l.b16 %v1313
          %v1886 = vunpack.c.h.b16 %v1313
          %v1887 = vunpack.c.l.b16 %v1314
          %v1888 = vunpack.c.h.b16 %v1314
          %v1889 = vunpack.c.l.b16 %v1315
          %v1890 = vunpack.c.h.b16 %v1315
          %v1891 = vunpack.c.l.b16 %v1316
          %v1892 = vunpack.c.h.b16 %v1316
          %v1893 = vunpack.c.l.b16 %v1317
          %v1894 = vunpack.c.h.b16 %v1317
          %v1895 = vunpack.c.l.b16 %v1318
          %v1896 = vunpack.c.h.b16 %v1318
          %v1897 = vunpack.c.l.b16 %v1319
          %v1898 = vunpack.c.h.b16 %v1319
          %v1899 = vunpack.c.l.b16 %v1320
          %v1900 = vunpack.c.h.b16 %v1320
          %v1901 = vunpack.c.l.b16 %v1321
          %v1902 = vunpack.c.h.b16 %v1321
          %v1903 = vunpack.c.l.b16 %v1322
          %v1904 = vunpack.c.h.b16 %v1322
          %v1905 = vunpack.c.l.b16 %v1323
          %v1906 = vunpack.c.h.b16 %v1323
          %v1907 = vunpack.c.l.b16 %v1324
          %v1908 = vunpack.c.h.b16 %v1324
          %v1909 = vunpack.c.l.b16 %v1325
          %v1910 = vunpack.c.h.b16 %v1325
          %v1911 = vunpack.c.l.b16 %v1326
          %v1912 = vunpack.c.h.b16 %v1326
          %v1913 = vunpack.c.l.b16 %v1327
          %v1914 = vunpack.c.h.b16 %v1327
          %v1915 = vunpack.c.l.b16 %v1328
          %v1916 = vunpack.c.h.b16 %v1328
          %v1917 = vunpack.c.l.b16 %v1329
          %v1918 = vunpack.c.h.b16 %v1329
          %v1919 = vunpack.c.l.b16 %v1330
          %v1920 = vunpack.c.h.b16 %v1330
          %v1921 = vunpack.c.l.b16 %v1331
          %v1922 = vunpack.c.h.b16 %v1331
          %v1923 = vunpack.c.l.b16 %v1332
          %v1924 = vunpack.c.h.b16 %v1332
          %v1925 = vunpack.c.l.b16 %v1333
          %v1926 = vunpack.c.h.b16 %v1333
          %v1927 = vunpack.c.l.b16 %v1334
          %v1928 = vunpack.c.h.b16 %v1334
          %v1929 = vunpack.c.l.b16 %v1335
          %v1930 = vunpack.c.h.b16 %v1335
          %v1931 = vunpack.c.l.b16 %v1336
          %v1932 = vunpack.c.h.b16 %v1336
          %v1933 = vunpack.c.l.b16 %v1337
          %v1934 = vunpack.c.h.b16 %v1337
          %v1935 = vunpack.c.l.b16 %v1338
          %v1936 = vunpack.c.h.b16 %v1338
          %v1937 = vunpack.c.l.b16 %v1339
          %v1938 = vunpack.c.h.b16 %v1339
          %v1939 = vunpack.c.l.b16 %v1340
          %v1940 = vunpack.c.h.b16 %v1340
          %v1941 = vunpack.c.l.b16 %v1341
          %v1942 = vunpack.c.h.b16 %v1341
          %v1943 = vunpack.c.l.b16 %v1342
          %v1944 = vunpack.c.h.b16 %v1342
          %v1945 = vunpack.c.l.b16 %v1343
          %v1946 = vunpack.c.h.b16 %v1343
          %v1947 = vunpack.c.l.b16 %v1344
          %v1948 = vunpack.c.h.b16 %v1344
          %v1949 = vunpack.c.l.b16 %v1345
          %v1950 = vunpack.c.h.b16 %v1345
          %v1951 = vunpack.c.l.b16 %v1346
          %v1952 = vunpack.c.h.b16 %v1346
          %v1953 = vunpack.c.l.b16 %v1347
          %v1954 = vunpack.c.h.b16 %v1347
          %v1955 = vunpack.c.l.b16 %v1348
          %v1956 = vunpack.c.h.b16 %v1348
          %v1957 = vunpack.c.l.b16 %v1349
          %v1958 = vunpack.c.h.b16 %v1349
          %v1959 = vunpack.c.l.b16 %v1350
          %v1960 = vunpack.c.h.b16 %v1350
          %v1961 = vunpack.c.l.b16 %v1351
          %v1962 = vunpack.c.h.b16 %v1351
          %v1963 = vunpack.c.l.b16 %v1352
          %v1964 = vunpack.c.h.b16 %v1352
          %v1965 = vunpack.c.l.b16 %v1353
          %v1966 = vunpack.c.h.b16 %v1353
          %v1967 = vunpack.c.l.b16 %v1354
          %v1968 = vunpack.c.h.b16 %v1354
          %v1969 = vunpack.c.l.b16 %v1355
          %v1970 = vunpack.c.h.b16 %v1355
          %v1971 = vunpack.c.l.b16 %v1356
          %v1972 = vunpack.c.h.b16 %v1356
          %v1973 = vunpack.c.l.b16 %v1357
          %v1974 = vunpack.c.h.b16 %v1357
          %v1975 = vunpack.c.l.b16 %v1358
          %v1976 = vunpack.c.h.b16 %v1358
          %v1977 = vpack.c.b16 %v1601, %v1593
          %v1978 = vpack.c.b16 %v1602, %v1594
          %v1979 = vpack.c.b16 %v1603, %v1595
          %v1980 = vpack.c.b16 %v1604, %v1596
          %v1981 = vpack.c.b16 %v1605, %v1597
          %v1982 = vpack.c.b16 %v1606, %v1598
          %v1983 = vpack.c.b16 %v1607, %v1599
          %v1984 = vpack.c.b16 %v1608, %v1600
          %v1985 = vpack.c.b16 %v1617, %v1609
          %v1986 = vpack.c.b16 %v1618, %v1610
          %v1987 = vpack.c.b16 %v1619, %v1611
          %v1988 = vpack.c.b16 %v1620, %v1612
          %v1989 = vpack.c.b16 %v1621, %v1613
          %v1990 = vpack.c.b16 %v1622, %v1614
          %v1991 = vpack.c.b16 %v1623, %v1615
          %v1992 = vpack.c.b16 %v1624, %v1616
          %v1993 = vpack.c.b16 %v1633, %v1625
          %v1994 = vpack.c.b16 %v1634, %v1626
          %v1995 = vpack.c.b16 %v1635, %v1627
          %v1996 = vpack.c.b16 %v1636, %v1628
          %v1997 = vpack.c.b16 %v1637, %v1629
          %v1998 = vpack.c.b16 %v1638, %v1630
          %v1999 = vpack.c.b16 %v1639, %v1631
          %v2000 = vpack.c.b16 %v1640, %v1632
          %v2001 = vpack.c.b16 %v1649, %v1641
          %v2002 = vpack.c.b16 %v1650, %v1642
          %v2003 = vpack.c.b16 %v1651, %v1643
          %v2004 = vpack.c.b16 %v1652, %v1644
          %v2005 = vpack.c.b16 %v1653, %v1645
          %v2006 = vpack.c.b16 %v1654, %v1646
          %v2007 = vpack.c.b16 %v1655, %v1647
          %v2008 = vpack.c.b16 %v1656, %v1648
          %v2009 = vpack.c.b16 %v1665, %v1657
          %v2010 = vpack.c.b16 %v1666, %v1658
          %v2011 = vpack.c.b16 %v1667, %v1659
          %v2012 = vpack.c.b16 %v1668, %v1660
          %v2013 = vpack.c.b16 %v1669, %v1661
          %v2014 = vpack.c.b16 %v1670, %v1662
          %v2015 = vpack.c.b16 %v1671, %v1663
          %v2016 = vpack.c.b16 %v1672, %v1664
          %v2017 = vpack.c.b16 %v1681, %v1673
          %v2018 = vpack.c.b16 %v1682, %v1674
          %v2019 = vpack.c.b16 %v1683, %v1675
          %v2020 = vpack.c.b16 %v1684, %v1676
          %v2021 = vpack.c.b16 %v1685, %v1677
          %v2022 = vpack.c.b16 %v1686, %v1678
          %v2023 = vpack.c.b16 %v1687, %v1679
          %v2024 = vpack.c.b16 %v1688, %v1680
          %v2025 = vpack.c.b16 %v1697, %v1689
          %v2026 = vpack.c.b16 %v1698, %v1690
          %v2027 = vpack.c.b16 %v1699, %v1691
          %v2028 = vpack.c.b16 %v1700, %v1692
          %v2029 = vpack.c.b16 %v1701, %v1693
          %v2030 = vpack.c.b16 %v1702, %v1694
          %v2031 = vpack.c.b16 %v1703, %v1695
          %v2032 = vpack.c.b16 %v1704, %v1696
          %v2033 = vpack.c.b16 %v1713, %v1705
          %v2034 = vpack.c.b16 %v1714, %v1706
          %v2035 = vpack.c.b16 %v1715, %v1707
          %v2036 = vpack.c.b16 %v1716, %v1708
          %v2037 = vpack.c.b16 %v1717, %v1709
          %v2038 = vpack.c.b16 %v1718, %v1710
          %v2039 = vpack.c.b16 %v1719, %v1711
          %v2040 = vpack.c.b16 %v1720, %v1712
          %v2041 = vpack.c.b16 %v1729, %v1721
          %v2042 = vpack.c.b16 %v1730, %v1722
          %v2043 = vpack.c.b16 %v1731, %v1723
          %v2044 = vpack.c.b16 %v1732, %v1724
          %v2045 = vpack.c.b16 %v1733, %v1725
          %v2046 = vpack.c.b16 %v1734, %v1726
          %v2047 = vpack.c.b16 %v1735, %v1727
          %v2048 = vpack.c.b16 %v1736, %v1728
          %v2049 = vpack.c.b16 %v1745, %v1737
          %v2050 = vpack.c.b16 %v1746, %v1738
          %v2051 = vpack.c.b16 %v1747, %v1739
          %v2052 = vpack.c.b16 %v1748, %v1740
          %v2053 = vpack.c.b16 %v1749, %v1741
          %v2054 = vpack.c.b16 %v1750, %v1742
          %v2055 = vpack.c.b16 %v1751, %v1743
          %v2056 = vpack.c.b16 %v1752, %v1744
          %v2057 = vpack.c.b16 %v1761, %v1753
          %v2058 = vpack.c.b16 %v1762, %v1754
          %v2059 = vpack.c.b16 %v1763, %v1755
          %v2060 = vpack.c.b16 %v1764, %v1756
          %v2061 = vpack.c.b16 %v1765, %v1757
          %v2062 = vpack.c.b16 %v1766, %v1758
          %v2063 = vpack.c.b16 %v1767, %v1759
          %v2064 = vpack.c.b16 %v1768, %v1760
          %v2065 = vpack.c.b16 %v1777, %v1769
          %v2066 = vpack.c.b16 %v1778, %v1770
          %v2067 = vpack.c.b16 %v1779, %v1771
          %v2068 = vpack.c.b16 %v1780, %v1772
          %v2069 = vpack.c.b16 %v1781, %v1773
          %v2070 = vpack.c.b16 %v1782, %v1774
          %v2071 = vpack.c.b16 %v1783, %v1775
          %v2072 = vpack.c.b16 %v1784, %v1776
          %v2073 = vpack.c.b16 %v1793, %v1785
          %v2074 = vpack.c.b16 %v1794, %v1786
          %v2075 = vpack.c.b16 %v1795, %v1787
          %v2076 = vpack.c.b16 %v1796, %v1788
          %v2077 = vpack.c.b16 %v1797, %v1789
          %v2078 = vpack.c.b16 %v1798, %v1790
          %v2079 = vpack.c.b16 %v1799, %v1791
          %v2080 = vpack.c.b16 %v1800, %v1792
          %v2081 = vpack.c.b16 %v1809, %v1801
          %v2082 = vpack.c.b16 %v1810, %v1802
          %v2083 = vpack.c.b16 %v1811, %v1803
          %v2084 = vpack.c.b16 %v1812, %v1804
          %v2085 = vpack.c.b16 %v1813, %v1805
          %v2086 = vpack.c.b16 %v1814, %v1806
          %v2087 = vpack.c.b16 %v1815, %v1807
          %v2088 = vpack.c.b16 %v1816, %v1808
          %v2089 = vpack.c.b16 %v1825, %v1817
          %v2090 = vpack.c.b16 %v1826, %v1818
          %v2091 = vpack.c.b16 %v1827, %v1819
          %v2092 = vpack.c.b16 %v1828, %v1820
          %v2093 = vpack.c.b16 %v1829, %v1821
          %v2094 = vpack.c.b16 %v1830, %v1822
          %v2095 = vpack.c.b16 %v1831, %v1823
          %v2096 = vpack.c.b16 %v1832, %v1824
          %v2097 = vpack.c.b16 %v1841, %v1833
          %v2098 = vpack.c.b16 %v1842, %v1834
          %v2099 = vpack.c.b16 %v1843, %v1835
          %v2100 = vpack.c.b16 %v1844, %v1836
          %v2101 = vpack.c.b16 %v1845, %v1837
          %v2102 = vpack.c.b16 %v1846, %v1838
          %v2103 = vpack.c.b16 %v1847, %v1839
          %v2104 = vpack.c.b16 %v1848, %v1840
          %v2105 = vpack.c.b16 %v1857, %v1849
          %v2106 = vpack.c.b16 %v1858, %v1850
          %v2107 = vpack.c.b16 %v1859, %v1851
          %v2108 = vpack.c.b16 %v1860, %v1852
          %v2109 = vpack.c.b16 %v1861, %v1853
          %v2110 = vpack.c.b16 %v1862, %v1854
          %v2111 = vpack.c.b16 %v1863, %v1855
          %v2112 = vpack.c.b16 %v1864, %v1856
          %v2113 = vpack.c.b16 %v1873, %v1865
          %v2114 = vpack.c.b16 %v1874, %v1866
          %v2115 = vpack.c.b16 %v1875, %v1867
          %v2116 = vpack.c.b16 %v1876, %v1868
          %v2117 = vpack.c.b16 %v1877, %v1869
          %v2118 = vpack.c.b16 %v1878, %v1870
          %v2119 = vpack.c.b16 %v1879, %v1871
          %v2120 = vpack.c.b16 %v1880, %v1872
          %v2121 = vpack.c.b16 %v1889, %v1881
          %v2122 = vpack.c.b16 %v1890, %v1882
          %v2123 = vpack.c.b16 %v1891, %v1883
          %v2124 = vpack.c.b16 %v1892, %v1884
          %v2125 = vpack.c.b16 %v1893, %v1885
          %v2126 = vpack.c.b16 %v1894, %v1886
          %v2127 = vpack.c.b16 %v1895, %v1887
          %v2128 = vpack.c.b16 %v1896, %v1888
          %v2129 = vpack.c.b16 %v1905, %v1897
          %v2130 = vpack.c.b16 %v1906, %v1898
          %v2131 = vpack.c.b16 %v1907, %v1899
          %v2132 = vpack.c.b16 %v1908, %v1900
          %v2133 = vpack.c.b16 %v1909, %v1901
          %v2134 = vpack.c.b16 %v1910, %v1902
          %v2135 = vpack.c.b16 %v1911, %v1903
          %v2136 = vpack.c.b16 %v1912, %v1904
          %v2137 = vpack.c.b16 %v1921, %v1913
          %v2138 = vpack.c.b16 %v1922, %v1914
          %v2139 = vpack.c.b16 %v1923, %v1915
          %v2140 = vpack.c.b16 %v1924, %v1916
          %v2141 = vpack.c.b16 %v1925, %v1917
          %v2142 = vpack.c.b16 %v1926, %v1918
          %v2143 = vpack.c.b16 %v1927, %v1919
          %v2144 = vpack.c.b16 %v1928, %v1920
          %v2145 = vpack.c.b16 %v1937, %v1929
          %v2146 = vpack.c.b16 %v1938, %v1930
          %v2147 = vpack.c.b16 %v1939, %v1931
          %v2148 = vpack.c.b16 %v1940, %v1932
          %v2149 = vpack.c.b16 %v1941, %v1933
          %v2150 = vpack.c.b16 %v1942, %v1934
          %v2151 = vpack.c.b16 %v1943, %v1935
          %v2152 = vpack.c.b16 %v1944, %v1936
          %v2153 = vpack.c.b16 %v1953, %v1945
          %v2154 = vpack.c.b16 %v1954, %v1946
          %v2155 = vpack.c.b16 %v1955, %v1947
          %v2156 = vpack.c.b16 %v1956, %v1948
          %v2157 = vpack.c.b16 %v1957, %v1949
          %v2158 = vpack.c.b16 %v1958, %v1950
          %v2159 = vpack.c.b16 %v1959, %v1951
          %v2160 = vpack.c.b16 %v1960, %v1952
          %v2161 = vpack.c.b16 %v1969, %v1961
          %v2162 = vpack.c.b16 %v1970, %v1962
          %v2163 = vpack.c.b16 %v1971, %v1963
          %v2164 = vpack.c.b16 %v1972, %v1964
          %v2165 = vpack.c.b16 %v1973, %v1965
          %v2166 = vpack.c.b16 %v1974, %v1966
          %v2167 = vpack.c.b16 %v1975, %v1967
          %v2168 = vpack.c.b16 %v1976, %v1968
          %2361 = vmatprep.subr.bf16.mxu0 %v2034
          %2362 = vmatpush1.bf16.msra.mxu0 %v2033
          %2363 = vmatprep.subr.bf16.mxu0 %v2026
          %2364 = vmatpush1.bf16.msra.mxu0 %v2025
          %2365 = vmatprep.subr.bf16.mxu0 %v2018
          %2366 = vmatpush1.bf16.msra.mxu0 %v2017
          %2367 = vmatprep.subr.bf16.mxu0 %v2010
          %2368 = vmatpush1.bf16.msra.mxu0 %v2009
          %2369 = vmatprep.subr.bf16.mxu0 %v2002
          %2370 = vmatpush1.bf16.msra.mxu0 %v2001
          %2371 = vmatprep.subr.bf16.mxu0 %v1994
          %2372 = vmatpush1.bf16.msra.mxu0 %v1993
          %2373 = vmatprep.subr.bf16.mxu0 %v1986
          %2374 = vmatpush1.bf16.msra.mxu0 %v1985
          %2375 = vmatprep.subr.bf16.mxu0 %v1978
          %2376 = vmatpush1.bf16.msra.mxu0 %v1977
          %2377 = vmatprep.subr.bf16.mxu0 %v2098
          %2378 = vmatpush2.bf16.msra.mxu0 %v2097
          %2379 = vmatprep.subr.bf16.mxu0 %v2090
          %2380 = vmatpush2.bf16.msra.mxu0 %v2089
          %2381 = vmatprep.subr.bf16.mxu0 %v2082
          %2382 = vmatpush2.bf16.msra.mxu0 %v2081
          %2383 = vmatprep.subr.bf16.mxu0 %v2074
          %2384 = vmatpush2.bf16.msra.mxu0 %v2073
          %2385 = vmatprep.subr.bf16.mxu0 %v2066
          %2386 = vmatpush2.bf16.msra.mxu0 %v2065
          %2387 = vmatprep.subr.bf16.mxu0 %v2058
          %2388 = vmatpush2.bf16.msra.mxu0 %v2057
          %2389 = vmatprep.subr.bf16.mxu0 %v2050
          %2390 = vmatpush2.bf16.msra.mxu0 %v2049
          %2391 = vmatprep.subr.bf16.mxu0 %v2042
          %2392 = vmatpush2.bf16.msra.mxu0 %v2041
          %2393 = vmatprep.mubr.bf16.mxu0 %v1165
          %2394 = vmatmul.mubr.bf16.gmra.mxu0 %v1164
          %v2395 = vpop.f32.mrf.mxu0
          %v2396 = vadd.f32 %v1364, %v2395
          %v2397 = vpop.f32.mrf.mxu0
          %v2398 = vadd.f32 %v1368, %v2397
          %v2399 = vpop.f32.mrf.mxu0
          %v2400 = vpop.f32.mrf.mxu0
          %2401 = vdwg.mxu0
          %2402 = vmatprep.subr.bf16.mxu0 %v2162
          %2403 = vmatpush1.bf16.msra.mxu0 %v2161
          %2404 = vmatprep.subr.bf16.mxu0 %v2154
          %2405 = vmatpush1.bf16.msra.mxu0 %v2153
          %2406 = vmatprep.subr.bf16.mxu0 %v2146
          %2407 = vmatpush1.bf16.msra.mxu0 %v2145
          %2408 = vmatprep.subr.bf16.mxu0 %v2138
          %2409 = vmatpush1.bf16.msra.mxu0 %v2137
          %2410 = vmatprep.subr.bf16.mxu0 %v2130
          %2411 = vmatpush1.bf16.msra.mxu0 %v2129
          %2412 = vmatprep.subr.bf16.mxu0 %v2122
          %2413 = vmatpush1.bf16.msra.mxu0 %v2121
          %2414 = vmatprep.subr.bf16.mxu0 %v2114
          %2415 = vmatpush1.bf16.msra.mxu0 %v2113
          %2416 = vmatprep.subr.bf16.mxu0 %v2106
          %2417 = vmatpush1.bf16.msra.mxu0 %v2105
          %2418 = vmatprep.subr.bf16.mxu0 0
          %2419 = vmatpush2.bf16.msra.mxu0 0
          %2420 = vmatprep.subr.bf16.mxu0 0
          %2421 = vmatpush2.bf16.msra.mxu0 0
          %2422 = vmatprep.subr.bf16.mxu0 0
          %2423 = vmatpush2.bf16.msra.mxu0 0
          %2424 = vmatprep.subr.bf16.mxu0 0
          %2425 = vmatpush2.bf16.msra.mxu0 0
          %2426 = vmatprep.subr.bf16.mxu0 0
          %2427 = vmatpush2.bf16.msra.mxu0 0
          %2428 = vmatprep.subr.bf16.mxu0 0
          %2429 = vmatpush2.bf16.msra.mxu0 0
          %2430 = vmatprep.subr.bf16.mxu0 0
          %2431 = vmatpush2.bf16.msra.mxu0 0
          %2432 = vmatprep.subr.bf16.mxu0 0
          %2433 = vmatpush2.bf16.msra.mxu0 0
          %2434 = vmatprep.mubr.bf16.mxu0 0
          %2435 = vmatmul.mubr.bf16.gmra.mxu0 %v1166
          %v2436 = vpop.f32.mrf.mxu0
          %v2437 = vadd.f32 %v2396, %v2436
          %v2438 = vpop.f32.mrf.mxu0
          %v2439 = vadd.f32 %v2398, %v2438
          %v2440 = vpop.f32.mrf.mxu0
          %v2441 = vpop.f32.mrf.mxu0
          %2442 = vdwg.mxu0
          %2443 = vmatprep.subr.bf16.mxu0 %v2036
          %2444 = vmatpush1.bf16.msra.mxu0 %v2035
          %2445 = vmatprep.subr.bf16.mxu0 %v2028
          %2446 = vmatpush1.bf16.msra.mxu0 %v2027
          %2447 = vmatprep.subr.bf16.mxu0 %v2020
          %2448 = vmatpush1.bf16.msra.mxu0 %v2019
          %2449 = vmatprep.subr.bf16.mxu0 %v2012
          %2450 = vmatpush1.bf16.msra.mxu0 %v2011
          %2451 = vmatprep.subr.bf16.mxu0 %v2004
          %2452 = vmatpush1.bf16.msra.mxu0 %v2003
          %2453 = vmatprep.subr.bf16.mxu0 %v1996
          %2454 = vmatpush1.bf16.msra.mxu0 %v1995
          %2455 = vmatprep.subr.bf16.mxu0 %v1988
          %2456 = vmatpush1.bf16.msra.mxu0 %v1987
          %2457 = vmatprep.subr.bf16.mxu0 %v1980
          %2458 = vmatpush1.bf16.msra.mxu0 %v1979
          %2459 = vmatprep.subr.bf16.mxu0 %v2100
          %2460 = vmatpush2.bf16.msra.mxu0 %v2099
          %2461 = vmatprep.subr.bf16.mxu0 %v2092
          %2462 = vmatpush2.bf16.msra.mxu0 %v2091
          %2463 = vmatprep.subr.bf16.mxu0 %v2084
          %2464 = vmatpush2.bf16.msra.mxu0 %v2083
          %2465 = vmatprep.subr.bf16.mxu0 %v2076
          %2466 = vmatpush2.bf16.msra.mxu0 %v2075
          %2467 = vmatprep.subr.bf16.mxu0 %v2068
          %2468 = vmatpush2.bf16.msra.mxu0 %v2067
          %2469 = vmatprep.subr.bf16.mxu0 %v2060
          %2470 = vmatpush2.bf16.msra.mxu0 %v2059
          %2471 = vmatprep.subr.bf16.mxu0 %v2052
          %2472 = vmatpush2.bf16.msra.mxu0 %v2051
          %2473 = vmatprep.subr.bf16.mxu0 %v2044
          %2474 = vmatpush2.bf16.msra.mxu0 %v2043
          %2475 = vmatprep.mubr.bf16.mxu0 %v1165
          %2476 = vmatmul.mubr.bf16.gmra.mxu0 %v1164
          %v2477 = vpop.f32.mrf.mxu0
          %v2478 = vadd.f32 %v1372, %v2477
          %v2479 = vpop.f32.mrf.mxu0
          %v2480 = vadd.f32 %v1376, %v2479
          %v2481 = vpop.f32.mrf.mxu0
          %v2482 = vpop.f32.mrf.mxu0
          %2483 = vdwg.mxu0
          %2484 = vmatprep.subr.bf16.mxu0 %v2164
          %2485 = vmatpush1.bf16.msra.mxu0 %v2163
          %2486 = vmatprep.subr.bf16.mxu0 %v2156
          %2487 = vmatpush1.bf16.msra.mxu0 %v2155
          %2488 = vmatprep.subr.bf16.mxu0 %v2148
          %2489 = vmatpush1.bf16.msra.mxu0 %v2147
          %2490 = vmatprep.subr.bf16.mxu0 %v2140
          %2491 = vmatpush1.bf16.msra.mxu0 %v2139
          %2492 = vmatprep.subr.bf16.mxu0 %v2132
          %2493 = vmatpush1.bf16.msra.mxu0 %v2131
          %2494 = vmatprep.subr.bf16.mxu0 %v2124
          %2495 = vmatpush1.bf16.msra.mxu0 %v2123
          %2496 = vmatprep.subr.bf16.mxu0 %v2116
          %2497 = vmatpush1.bf16.msra.mxu0 %v2115
          %2498 = vmatprep.subr.bf16.mxu0 %v2108
          %2499 = vmatpush1.bf16.msra.mxu0 %v2107
          %2500 = vmatprep.subr.bf16.mxu0 0
          %2501 = vmatpush2.bf16.msra.mxu0 0
          %2502 = vmatprep.subr.bf16.mxu0 0
          %2503 = vmatpush2.bf16.msra.mxu0 0
          %2504 = vmatprep.subr.bf16.mxu0 0
          %2505 = vmatpush2.bf16.msra.mxu0 0
          %2506 = vmatprep.subr.bf16.mxu0 0
          %2507 = vmatpush2.bf16.msra.mxu0 0
          %2508 = vmatprep.subr.bf16.mxu0 0
          %2509 = vmatpush2.bf16.msra.mxu0 0
          %2510 = vmatprep.subr.bf16.mxu0 0
          %2511 = vmatpush2.bf16.msra.mxu0 0
          %2512 = vmatprep.subr.bf16.mxu0 0
          %2513 = vmatpush2.bf16.msra.mxu0 0
          %2514 = vmatprep.subr.bf16.mxu0 0
          %2515 = vmatpush2.bf16.msra.mxu0 0
          %2516 = vmatprep.mubr.bf16.mxu0 0
          %2517 = vmatmul.mubr.bf16.gmra.mxu0 %v1166
          %v2518 = vpop.f32.mrf.mxu0
          %v2519 = vadd.f32 %v2478, %v2518
          %v2520 = vpop.f32.mrf.mxu0
          %v2521 = vadd.f32 %v2480, %v2520
          %v2522 = vpop.f32.mrf.mxu0
          %v2523 = vpop.f32.mrf.mxu0
          %2524 = vdwg.mxu0
          %2525 = vmatprep.subr.bf16.mxu0 %v2038
          %2526 = vmatpush1.bf16.msra.mxu0 %v2037
          %2527 = vmatprep.subr.bf16.mxu0 %v2030
          %2528 = vmatpush1.bf16.msra.mxu0 %v2029
          %2529 = vmatprep.subr.bf16.mxu0 %v2022
          %2530 = vmatpush1.bf16.msra.mxu0 %v2021
          %2531 = vmatprep.subr.bf16.mxu0 %v2014
          %2532 = vmatpush1.bf16.msra.mxu0 %v2013
          %2533 = vmatprep.subr.bf16.mxu0 %v2006
          %2534 = vmatpush1.bf16.msra.mxu0 %v2005
          %2535 = vmatprep.subr.bf16.mxu0 %v1998
          %2536 = vmatpush1.bf16.msra.mxu0 %v1997
          %2537 = vmatprep.subr.bf16.mxu0 %v1990
          %2538 = vmatpush1.bf16.msra.mxu0 %v1989
          %2539 = vmatprep.subr.bf16.mxu0 %v1982
          %2540 = vmatpush1.bf16.msra.mxu0 %v1981
          %2541 = vmatprep.subr.bf16.mxu0 %v2102
          %2542 = vmatpush2.bf16.msra.mxu0 %v2101
          %2543 = vmatprep.subr.bf16.mxu0 %v2094
          %2544 = vmatpush2.bf16.msra.mxu0 %v2093
          %2545 = vmatprep.subr.bf16.mxu0 %v2086
          %2546 = vmatpush2.bf16.msra.mxu0 %v2085
          %2547 = vmatprep.subr.bf16.mxu0 %v2078
          %2548 = vmatpush2.bf16.msra.mxu0 %v2077
          %2549 = vmatprep.subr.bf16.mxu0 %v2070
          %2550 = vmatpush2.bf16.msra.mxu0 %v2069
          %2551 = vmatprep.subr.bf16.mxu0 %v2062
          %2552 = vmatpush2.bf16.msra.mxu0 %v2061
          %2553 = vmatprep.subr.bf16.mxu0 %v2054
          %2554 = vmatpush2.bf16.msra.mxu0 %v2053
          %2555 = vmatprep.subr.bf16.mxu0 %v2046
          %2556 = vmatpush2.bf16.msra.mxu0 %v2045
          %2557 = vmatprep.mubr.bf16.mxu0 %v1165
          %2558 = vmatmul.mubr.bf16.gmra.mxu0 %v1164
          %v2559 = vpop.f32.mrf.mxu0
          %v2560 = vadd.f32 %v1380, %v2559
          %v2561 = vpop.f32.mrf.mxu0
          %v2562 = vadd.f32 %v1384, %v2561
          %v2563 = vpop.f32.mrf.mxu0
          %v2564 = vpop.f32.mrf.mxu0
          %2565 = vdwg.mxu0
          %2566 = vmatprep.subr.bf16.mxu0 %v2166
          %2567 = vmatpush1.bf16.msra.mxu0 %v2165
          %2568 = vmatprep.subr.bf16.mxu0 %v2158
          %2569 = vmatpush1.bf16.msra.mxu0 %v2157
          %2570 = vmatprep.subr.bf16.mxu0 %v2150
          %2571 = vmatpush1.bf16.msra.mxu0 %v2149
          %2572 = vmatprep.subr.bf16.mxu0 %v2142
          %2573 = vmatpush1.bf16.msra.mxu0 %v2141
          %2574 = vmatprep.subr.bf16.mxu0 %v2134
          %2575 = vmatpush1.bf16.msra.mxu0 %v2133
          %2576 = vmatprep.subr.bf16.mxu0 %v2126
          %2577 = vmatpush1.bf16.msra.mxu0 %v2125
          %2578 = vmatprep.subr.bf16.mxu0 %v2118
          %2579 = vmatpush1.bf16.msra.mxu0 %v2117
          %2580 = vmatprep.subr.bf16.mxu0 %v2110
          %2581 = vmatpush1.bf16.msra.mxu0 %v2109
          %2582 = vmatprep.subr.bf16.mxu0 0
          %2583 = vmatpush2.bf16.msra.mxu0 0
          %2584 = vmatprep.subr.bf16.mxu0 0
          %2585 = vmatpush2.bf16.msra.mxu0 0
          %2586 = vmatprep.subr.bf16.mxu0 0
          %2587 = vmatpush2.bf16.msra.mxu0 0
          %2588 = vmatprep.subr.bf16.mxu0 0
          %2589 = vmatpush2.bf16.msra.mxu0 0
          %2590 = vmatprep.subr.bf16.mxu0 0
          %2591 = vmatpush2.bf16.msra.mxu0 0
          %2592 = vmatprep.subr.bf16.mxu0 0
          %2593 = vmatpush2.bf16.msra.mxu0 0
          %2594 = vmatprep.subr.bf16.mxu0 0
          %2595 = vmatpush2.bf16.msra.mxu0 0
          %2596 = vmatprep.subr.bf16.mxu0 0
          %2597 = vmatpush2.bf16.msra.mxu0 0
          %2598 = vmatprep.mubr.bf16.mxu0 0
          %2599 = vmatmul.mubr.bf16.gmra.mxu0 %v1166
          %v2600 = vpop.f32.mrf.mxu0
          %v2601 = vadd.f32 %v2560, %v2600
          %v2602 = vpop.f32.mrf.mxu0
          %v2603 = vadd.f32 %v2562, %v2602
          %v2604 = vpop.f32.mrf.mxu0
          %v2605 = vpop.f32.mrf.mxu0
          %2606 = vdwg.mxu0
          %2607 = vmatprep.subr.bf16.mxu0 %v2040
          %2608 = vmatpush1.bf16.msra.mxu0 %v2039
          %2609 = vmatprep.subr.bf16.mxu0 %v2032
          %2610 = vmatpush1.bf16.msra.mxu0 %v2031
          %2611 = vmatprep.subr.bf16.mxu0 %v2024
          %2612 = vmatpush1.bf16.msra.mxu0 %v2023
          %2613 = vmatprep.subr.bf16.mxu0 %v2016
          %2614 = vmatpush1.bf16.msra.mxu0 %v2015
          %2615 = vmatprep.subr.bf16.mxu0 %v2008
          %2616 = vmatpush1.bf16.msra.mxu0 %v2007
          %2617 = vmatprep.subr.bf16.mxu0 %v2000
          %2618 = vmatpush1.bf16.msra.mxu0 %v1999
          %2619 = vmatprep.subr.bf16.mxu0 %v1992
          %2620 = vmatpush1.bf16.msra.mxu0 %v1991
          %2621 = vmatprep.subr.bf16.mxu0 %v1984
          %2622 = vmatpush1.bf16.msra.mxu0 %v1983
          %2623 = vmatprep.subr.bf16.mxu0 %v2104
          %2624 = vmatpush2.bf16.msra.mxu0 %v2103
          %2625 = vmatprep.subr.bf16.mxu0 %v2096
          %2626 = vmatpush2.bf16.msra.mxu0 %v2095
          %2627 = vmatprep.subr.bf16.mxu0 %v2088
          %2628 = vmatpush2.bf16.msra.mxu0 %v2087
          %2629 = vmatprep.subr.bf16.mxu0 %v2080
          %2630 = vmatpush2.bf16.msra.mxu0 %v2079
          %2631 = vmatprep.subr.bf16.mxu0 %v2072
          %2632 = vmatpush2.bf16.msra.mxu0 %v2071
          %2633 = vmatprep.subr.bf16.mxu0 %v2064
          %2634 = vmatpush2.bf16.msra.mxu0 %v2063
          %2635 = vmatprep.subr.bf16.mxu0 %v2056
          %2636 = vmatpush2.bf16.msra.mxu0 %v2055
          %2637 = vmatprep.subr.bf16.mxu0 %v2048
          %2638 = vmatpush2.bf16.msra.mxu0 %v2047
          %2639 = vmatprep.mubr.bf16.mxu0 %v1165
          %2640 = vmatmul.mubr.bf16.gmra.mxu0 %v1164
          %v2641 = vpop.f32.mrf.mxu0
          %v2642 = vadd.f32 %v1388, %v2641
          %v2643 = vpop.f32.mrf.mxu0
          %v2644 = vadd.f32 %v1392, %v2643
          %v2645 = vpop.f32.mrf.mxu0
          %v2646 = vpop.f32.mrf.mxu0
          %2647 = vdwg.mxu0
          %2648 = vmatprep.subr.bf16.mxu0 %v2168
          %2649 = vmatpush1.bf16.msra.mxu0 %v2167
          %2650 = vmatprep.subr.bf16.mxu0 %v2160
          %2651 = vmatpush1.bf16.msra.mxu0 %v2159
          %2652 = vmatprep.subr.bf16.mxu0 %v2152
          %2653 = vmatpush1.bf16.msra.mxu0 %v2151
          %2654 = vmatprep.subr.bf16.mxu0 %v2144
          %2655 = vmatpush1.bf16.msra.mxu0 %v2143
          %2656 = vmatprep.subr.bf16.mxu0 %v2136
          %2657 = vmatpush1.bf16.msra.mxu0 %v2135
          %2658 = vmatprep.subr.bf16.mxu0 %v2128
          %2659 = vmatpush1.bf16.msra.mxu0 %v2127
          %2660 = vmatprep.subr.bf16.mxu0 %v2120
          %2661 = vmatpush1.bf16.msra.mxu0 %v2119
          %2662 = vmatprep.subr.bf16.mxu0 %v2112
          %2663 = vmatpush1.bf16.msra.mxu0 %v2111
          %2664 = vmatprep.subr.bf16.mxu0 0
          %2665 = vmatpush2.bf16.msra.mxu0 0
          %2666 = vmatprep.subr.bf16.mxu0 0
          %2667 = vmatpush2.bf16.msra.mxu0 0
          %2668 = vmatprep.subr.bf16.mxu0 0
          %2669 = vmatpush2.bf16.msra.mxu0 0
          %2670 = vmatprep.subr.bf16.mxu0 0
          %2671 = vmatpush2.bf16.msra.mxu0 0
          %2672 = vmatprep.subr.bf16.mxu0 0
          %2673 = vmatpush2.bf16.msra.mxu0 0
          %2674 = vmatprep.subr.bf16.mxu0 0
          %2675 = vmatpush2.bf16.msra.mxu0 0
          %2676 = vmatprep.subr.bf16.mxu0 0
          %2677 = vmatpush2.bf16.msra.mxu0 0
          %2678 = vmatprep.subr.bf16.mxu0 0
          %2679 = vmatpush2.bf16.msra.mxu0 0
          %2680 = vmatprep.mubr.bf16.mxu0 0
          %2681 = vmatmul.mubr.bf16.gmra.mxu0 %v1166
          %v2682 = vpop.f32.mrf.mxu0
          %v2683 = vadd.f32 %v2642, %v2682
          %v2684 = vpop.f32.mrf.mxu0
          %v2685 = vadd.f32 %v2644, %v2684
          %v2686 = vpop.f32.mrf.mxu0
          %v2687 = vpop.f32.mrf.mxu0
          %2688 = vdwg.mxu0
          %v2689 = vxor.u32 %v2437, 2147483648
          %v2690 = vxor.u32 %v2439, 2147483648
          %v2691 = vxor.u32 %v2519, 2147483648
          %v2692 = vxor.u32 %v2521, 2147483648
          %v2693 = vxor.u32 %v2601, 2147483648
          %v2694 = vxor.u32 %v2603, 2147483648
          %v2695 = vmul.f32 %v2689, 1.442695
          %v2696 = vpow.pop %v2695
          %v2697 = vmul.f32 %v2690, 1.442695
          %v2698 = vpow.pop %v2697
          %v2699 = vmul.f32 %v2691, 1.442695
          %v2700 = vpow.pop %v2699
          %v2701 = vmul.f32 %v2692, 1.442695
          %v2702 = vpow.pop %v2701
          %v2703 = vmul.f32 %v2693, 1.442695
          %v2704 = vpow.pop %v2703
          %v2705 = vmul.f32 %v2694, 1.442695
          %v2706 = vpow.pop %v2705
          %v2707 = vadd.f32 %v2696, 1.0
          %v2708 = vadd.f32 %v2698, 1.0
          %v2709 = vadd.f32 %v2700, 1.0
          %v2710 = vadd.f32 %v2702, 1.0
          %v2711 = vadd.f32 %v2704, 1.0
          %v2712 = vadd.f32 %v2706, 1.0
          %v2713 = vrcp.pop %v2707
          %v2714 = vmul.f32 1.0, %v2713
          %v2715 = vrcp.pop %v2708
          %v2716 = vmul.f32 1.0, %v2715
          %v2717 = vrcp.pop %v2709
          %v2718 = vmul.f32 1.0, %v2717
          %v2719 = vrcp.pop %v2710
          %v2720 = vmul.f32 1.0, %v2719
          %v2721 = vrcp.pop %v2711
          %v2722 = vmul.f32 1.0, %v2721
          %v2723 = vrcp.pop %v2712
          %v2724 = vmul.f32 1.0, %v2723
          %v2725 = vtanh.pop %v2683
          %v2726 = vtanh.pop %v2685
          %v2727 = vmul.f32 %v2716, %v588
          %v2728 = vmul.f32 %v2714, %v2725
          %v2729 = vadd.f32 %v2727, %v2728
          %v2730 = vtanh.pop %v2729
          %v2731 = vmul.f32 %v2718, %v2730
          %v2732 = vmul.f32 %v2722, %v589
          %v2733 = vmul.f32 %v2720, %v2726
          %v2734 = vadd.f32 %v2732, %v2733
          %v2735 = vtanh.pop %v2734
          %v2736 = vmul.f32 %v2724, %v2735
          %v2737 = vpack.c.bf16 %v2731, %v2731
          %v2738 = vpack.c.bf16 %v2736, %v2736
          %v2739 = vld [vmem:[#allocation5 + $0x24] sm:$0xf]
          %v2740 = vld [vmem:[#allocation5 + $0x4c] sm:$0xf]
          %v2741 = vld [vmem:[#allocation5 + $0x74] sm:$0xf]
          %v2742 = vld [vmem:[#allocation5 + $0x9c] sm:$0xf]
          %v2743 = vld [vmem:[#allocation5 + $0xc4] sm:$0xf]
          %v2744 = vld [vmem:[#allocation5 + $0xec] sm:$0xf]
          %v2745 = vld [vmem:[#allocation5 + $0x114] sm:$0xf]
          %v2746 = vld [vmem:[#allocation5 + $0x13c] sm:$0xf]
          %v2747 = vld [vmem:[#allocation5 + $0x164] sm:$0xf]
          %v2748 = vld [vmem:[#allocation5 + $0x18c] sm:$0xf]
          %v2749 = vld [vmem:[#allocation5 + $0x1b4] sm:$0xf]
          %v2750 = vld [vmem:[#allocation5 + $0x1dc] sm:$0xf]
          %v2751 = vld [vmem:[#allocation5 + $0x204] sm:$0xf]
          %v2752 = vld [vmem:[#allocation5 + $0x22c] sm:$0xf]
          %v2753 = vld [vmem:[#allocation5 + $0x254] sm:$0xf]
          %v2754 = vld [vmem:[#allocation5 + $0x27c] sm:$0xf]
          %v2755 = vld [vmem:[#allocation5 + $0x2a4] sm:$0xf]
          %v2756 = vld [vmem:[#allocation5 + $0x2cc] sm:$0xf]
          %v2757 = vld [vmem:[#allocation5 + $0x2f4] sm:$0xf]
          %v2758 = vld [vmem:[#allocation5 + $0x31c] sm:$0xf]
          %v2759 = vld [vmem:[#allocation5 + $0x344] sm:$0xf]
          %v2760 = vld [vmem:[#allocation5 + $0x36c] sm:$0xf]
          %v2761 = vld [vmem:[#allocation5 + $0x394] sm:$0xf]
          %v2762 = vld [vmem:[#allocation5 + $0x3bc] sm:$0xf]
          %v2763 = vld [vmem:[#allocation5 + $0x3e4] sm:$0xf]
          %v2764 = vld [vmem:[#allocation5 + $0x40c] sm:$0xf]
          %v2765 = vld [vmem:[#allocation5 + $0x434] sm:$0xf]
          %v2766 = vld [vmem:[#allocation5 + $0x45c] sm:$0xf]
          %v2767 = vld [vmem:[#allocation5 + $0x484] sm:$0xf]
          %v2768 = vld [vmem:[#allocation5 + $0x4ac] sm:$0xf]
          %v2769 = vld [vmem:[#allocation5 + $0x4d4] sm:$0xf]
          %v2770 = vld [vmem:[#allocation5 + $0x4fc] sm:$0xf]
          %v2771 = vld [vmem:[%s7 + $0x9] sm:$0x1]
          %v2773 = vlaneseq
          %v2774 = vshrl.u32 %v2773, 7
          %v2775 = vsub.s32 0, %v2774
          %v2776 = vrot.slane %v2771, %v2775
          %v2810 = vunpack.c.l.b16 %v2739
          %v2811 = vunpack.c.l.b16 %v2740
          %v2812 = vunpack.c.l.b16 %v2741
          %v2813 = vunpack.c.l.b16 %v2742
          %v2814 = vunpack.c.l.b16 %v2743
          %v2815 = vunpack.c.l.b16 %v2744
          %v2816 = vunpack.c.l.b16 %v2745
          %v2817 = vunpack.c.l.b16 %v2746
          %v2818 = vunpack.c.l.b16 %v2747
          %v2819 = vunpack.c.l.b16 %v2748
          %v2820 = vunpack.c.l.b16 %v2749
          %v2821 = vunpack.c.l.b16 %v2750
          %v2822 = vunpack.c.l.b16 %v2751
          %v2823 = vunpack.c.l.b16 %v2752
          %v2824 = vunpack.c.l.b16 %v2753
          %v2825 = vunpack.c.l.b16 %v2754
          %v2826 = vunpack.c.l.b16 %v2755
          %v2827 = vunpack.c.l.b16 %v2756
          %v2828 = vunpack.c.l.b16 %v2757
          %v2829 = vunpack.c.l.b16 %v2758
          %v2830 = vunpack.c.l.b16 %v2759
          %v2831 = vunpack.c.l.b16 %v2760
          %v2832 = vunpack.c.l.b16 %v2761
          %v2833 = vunpack.c.l.b16 %v2762
          %v2834 = vunpack.c.l.b16 %v2763
          %v2835 = vunpack.c.l.b16 %v2764
          %v2836 = vunpack.c.l.b16 %v2765
          %v2837 = vunpack.c.l.b16 %v2766
          %v2838 = vunpack.c.l.b16 %v2767
          %v2839 = vunpack.c.l.b16 %v2768
          %v2840 = vunpack.c.l.b16 %v2769
          %v2841 = vunpack.c.l.b16 %v2770
          %v2842 = vpack.c.b16 %v2811, %v2810
          %v2843 = vpack.c.b16 %v2813, %v2812
          %v2844 = vpack.c.b16 %v2815, %v2814
          %v2845 = vpack.c.b16 %v2817, %v2816
          %v2846 = vpack.c.b16 %v2819, %v2818
          %v2847 = vpack.c.b16 %v2821, %v2820
          %v2848 = vpack.c.b16 %v2823, %v2822
          %v2849 = vpack.c.b16 %v2825, %v2824
          %v2850 = vpack.c.b16 %v2827, %v2826
          %v2851 = vpack.c.b16 %v2829, %v2828
          %v2852 = vpack.c.b16 %v2831, %v2830
          %v2853 = vpack.c.b16 %v2833, %v2832
          %v2854 = vpack.c.b16 %v2835, %v2834
          %v2855 = vpack.c.b16 %v2837, %v2836
          %v2856 = vpack.c.b16 %v2839, %v2838
          %v2857 = vpack.c.b16 %v2841, %v2840
          %2874 = vmatprep.subr.bf16.mxu0 0
          %2875 = vmatpush1.bf16.msra.mxu0 %v2849
          %2876 = vmatprep.subr.bf16.mxu0 0
          %2877 = vmatpush1.bf16.msra.mxu0 %v2848
          %2878 = vmatprep.subr.bf16.mxu0 0
          %2879 = vmatpush1.bf16.msra.mxu0 %v2847
          %2880 = vmatprep.subr.bf16.mxu0 0
          %2881 = vmatpush1.bf16.msra.mxu0 %v2846
          %2882 = vmatprep.subr.bf16.mxu0 0
          %2883 = vmatpush1.bf16.msra.mxu0 %v2845
          %2884 = vmatprep.subr.bf16.mxu0 0
          %2885 = vmatpush1.bf16.msra.mxu0 %v2844
          %2886 = vmatprep.subr.bf16.mxu0 0
          %2887 = vmatpush1.bf16.msra.mxu0 %v2843
          %2888 = vmatprep.subr.bf16.mxu0 0
          %2889 = vmatpush1.bf16.msra.mxu0 %v2842
          %2890 = vmatprep.subr.bf16.mxu0 0
          %2891 = vmatpush2.bf16.msra.mxu0 %v2857
          %2892 = vmatprep.subr.bf16.mxu0 0
          %2893 = vmatpush2.bf16.msra.mxu0 %v2856
          %2894 = vmatprep.subr.bf16.mxu0 0
          %2895 = vmatpush2.bf16.msra.mxu0 %v2855
          %2896 = vmatprep.subr.bf16.mxu0 0
          %2897 = vmatpush2.bf16.msra.mxu0 %v2854
          %2898 = vmatprep.subr.bf16.mxu0 0
          %2899 = vmatpush2.bf16.msra.mxu0 %v2853
          %2900 = vmatprep.subr.bf16.mxu0 0
          %2901 = vmatpush2.bf16.msra.mxu0 %v2852
          %2902 = vmatprep.subr.bf16.mxu0 0
          %2903 = vmatpush2.bf16.msra.mxu0 %v2851
          %2904 = vmatprep.subr.bf16.mxu0 0
          %2905 = vmatpush2.bf16.msra.mxu0 %v2850
          %2906 = vmatprep.mubr.bf16.mxu0 %v2738
          %2907 = vmatmul.mubr.bf16.gmra.mxu0 %v2737
          %v2908 = vpop.f32.mrf.mxu0
          %v2909 = vadd.f32 %v2776, %v2908
          %v2910 = vpop.f32.mrf.mxu0
          %v2911 = vpop.f32.mrf.mxu0
          %v2912 = vpop.f32.mrf.mxu0
          %2913 = vdwg.mxu0
          %2914 = vmax.xlane.f32.xlu0 %v2909
          %v2915 = vpop.xlane.xlu0 %2914
          %v2916 = vsub.f32 %v2909, %v2915
          %v2917 = vmul.f32 %v2916, 1.442695
          %v2918 = vpow.pop %v2917
          %2919 = vadd.xlane.f32.xlu0 %v2918
          %v2920 = vpop.xlane.xlu0 %2919
          %v2921 = vlog2.pop %v2920
          %v2922 = vmul.f32 %v2921, 0.6931472
          %v2923 = vsub.f32 %v2916, %v2922
          %s2924 = scalar_lea.vmem %s553, %s590 [#allocation7]
          %2925 = vst [vmem:[%s2924] sm:$0xff] %v2923
          %s2926 = scalar_lea.vmem %s559, %s590 [#allocation8]
          %2927 = vst [vmem:[%s2926] sm:$0xff] %v794
        $region160: #{attn_decoder_decode.1} parent=138 // loop_footer
          %s585 = sadd.s32 1, %s581
        $region161: #{attn_decoder_decode.1} parent=138 // loop_footer_branch
          %580 = sbr.rel target = $region157
        $region162: #{attn_decoder_decode.1} parent=138 // loop_exit
          _
        %2928 = vst [vmem:[%s571] sm:$0xff] %v586
        %2929 = vst [vmem:[%s571 + $0x8] sm:$0xff] %v587
        %2930 = vst [vmem:[%s571 + $0x10] sm:$0xff] %v588
        %2931 = vst [vmem:[%s571 + $0x18] sm:$0xff] %v589
        %s2932 = sand.u32 %s214, 1
        %s2933 = sand.u32 %s214, 1
        %s2934 = smul.addr %s2933, 32
        %s2935 = scalar_lea.vmem [#allocation7], %s2934
        %s2936 = sand.u32 %s240, 1
        %s2937 = sand.u32 %s240, 1
        %s2938 = smul.addr %s2937, 32
        %s2939 = scalar_lea.vmem [#allocation8], %s2938
        %p2940 = scmp.lt.s32.totalorder %s23, 1
        %s2941 = scalar_select %p2940, %s23, 1
        %s2942 = smul.addr %s2941, 4
        %s2943 = smul.addr %s2942, 8
        %s2944 = scalar_lea.vmem %s10, %s2943
        // Predicated region
        $region163: #{attn_decoder_decode.1} parent=138 // pred_check
          %p2945 = pneg %p224
        $region164: #{attn_decoder_decode.1} parent=138 // pred_check_branch
          %2947 = sbr.rel (%p2945) target = $region166
        $region165: #{attn_decoder_decode.1} parent=138 // pred_region
          %s2948 = smul.addr %s23, 8
          %s2949 = scalar_lea.vmem %s8, %s2948
          // Predicated region
          $region167: #{attn_decoder_decode.1} parent=165 // pred_check
            _
          $region168: #{attn_decoder_decode.1} parent=165 // pred_check_branch
            %2951 = sbr.rel (0) target = $region170
          $region169: #{attn_decoder_decode.1} parent=165 // pred_region
            // Predicated region
            $region171: #{attn_decoder_decode.1} parent=169 // pred_check
              _
            $region172: #{attn_decoder_decode.1} parent=169 // pred_check_branch
              %2953 = sbr.rel (0) target = $region174
            $region173: #{attn_decoder_decode.1} parent=169 // pred_region
              // Predicated region
              $region186: #{attn_decoder_decode.1} parent=173 // pred_check
                _
              $region187: #{attn_decoder_decode.1} parent=173 // pred_check_branch
                %2975 = sbr.rel (0) target = $region189
              $region188: #{attn_decoder_decode.1} parent=173 // pred_region
                loop: start=0, step=1, limit=1
                $region190: #{attn_decoder_decode.1} parent=188 // loop_pre_header
                  _
                $region191: #{attn_decoder_decode.1} parent=188 // loop_header
                  %s2977 = sphi 0, %s2981
                  %p2978 = scmp.ge.s32.totalorder %s2977, 1
                  %s2982 = sphi %s2935, %s2935
                  %s2983 = sphi %s2949, %s2949
                $region192: #{attn_decoder_decode.1} parent=188 // loop_header_branch
                  %2980 = sbr.rel (%p2978) target = $region196
                $region193: #{attn_decoder_decode.1} parent=188 // loop_body
                  %v2984 = vld [vmem:[%s2982] sm:$0xff]
                  %2985 = vst [vmem:[%s2983] sm:$0xff] %v2984
                  %v2986 = vld [vmem:[%s2982 + $0x8] sm:$0xff]
                  %2987 = vst [vmem:[%s2983 + $0x10] sm:$0xff] %v2986
                  %v2988 = vld [vmem:[%s2982 + $0x10] sm:$0xff]
                  %2989 = vst [vmem:[%s2983 + $0x20] sm:$0xff] %v2988
                  %v2990 = vld [vmem:[%s2982 + $0x18] sm:$0xff]
                  %2991 = vst [vmem:[%s2983 + $0x30] sm:$0xff] %v2990
                $region194: #{attn_decoder_decode.1} parent=188 // loop_footer
                  %s2981 = sadd.s32 1, %s2977
                $region195: #{attn_decoder_decode.1} parent=188 // loop_footer_branch
                  %2976 = sbr.rel target = $region191
                $region196: #{attn_decoder_decode.1} parent=188 // loop_exit
                  _
              $region189: #{attn_decoder_decode.1} parent=173 // pred_fallthru
                _
              // Predicated region
              $region197: #{attn_decoder_decode.1} parent=173 // pred_check
                _
              $region198: #{attn_decoder_decode.1} parent=173 // pred_check_branch
                %2993 = sbr.rel target = $region200
              $region199: #{attn_decoder_decode.1} parent=173 // pred_region
                _
              $region200: #{attn_decoder_decode.1} parent=173 // pred_fallthru
                _
            $region174: #{attn_decoder_decode.1} parent=169 // pred_fallthru
              _
            // Predicated region
            $region175: #{attn_decoder_decode.1} parent=169 // pred_check
              _
            $region176: #{attn_decoder_decode.1} parent=169 // pred_check_branch
              %2955 = sbr.rel target = $region178
            $region177: #{attn_decoder_decode.1} parent=169 // pred_region
              %s2957 = ssub.s32 256, 1
              loop: start=0, step=1, limit=1
              $region179: #{attn_decoder_decode.1} parent=177 // loop_pre_header
                _
              $region180: #{attn_decoder_decode.1} parent=177 // loop_header
                %s2959 = sphi 0, %s2963
                %p2960 = scmp.ge.s32.totalorder %s2959, 1
                %s2964 = sphi %s2935, %s2935
                %s2965 = sphi %s2949, %s2949
              $region181: #{attn_decoder_decode.1} parent=177 // loop_header_branch
                %2962 = sbr.rel (%p2960) target = $region185
              $region182: #{attn_decoder_decode.1} parent=177 // loop_body
                %v2966 = vld [vmem:[%s2964] sm:%s2957]
                %2967 = vst [vmem:[%s2965] sm:%s2957] %v2966
                %v2968 = vld [vmem:[%s2964 + $0x8] sm:%s2957]
                %2969 = vst [vmem:[%s2965 + $0x10] sm:%s2957] %v2968
                %v2970 = vld [vmem:[%s2964 + $0x10] sm:%s2957]
                %2971 = vst [vmem:[%s2965 + $0x20] sm:%s2957] %v2970
                %v2972 = vld [vmem:[%s2964 + $0x18] sm:%s2957]
                %2973 = vst [vmem:[%s2965 + $0x30] sm:%s2957] %v2972
              $region183: #{attn_decoder_decode.1} parent=177 // loop_footer
                %s2963 = sadd.s32 1, %s2959
              $region184: #{attn_decoder_decode.1} parent=177 // loop_footer_branch
                %2958 = sbr.rel target = $region180
              $region185: #{attn_decoder_decode.1} parent=177 // loop_exit
                _
            $region178: #{attn_decoder_decode.1} parent=169 // pred_fallthru
              _
          $region170: #{attn_decoder_decode.1} parent=165 // pred_fallthru
            _
          %2994 = vnop
        $region166: #{attn_decoder_decode.1} parent=138 // pred_fallthru
          _
        // Predicated region
        $region201: #{attn_decoder_decode.1} parent=138 // pred_check
          %p2995 = pneg %p250
        $region202: #{attn_decoder_decode.1} parent=138 // pred_check_branch
          %2997 = sbr.rel (%p2995) target = $region204
        $region203: #{attn_decoder_decode.1} parent=138 // pred_region
          %s2998 = smul.addr %s23, 8
          %s2999 = scalar_lea.vmem %s9, %s2998
          // Predicated region
          $region205: #{attn_decoder_decode.1} parent=203 // pred_check
            _
          $region206: #{attn_decoder_decode.1} parent=203 // pred_check_branch
            %3001 = sbr.rel (0) target = $region208
          $region207: #{attn_decoder_decode.1} parent=203 // pred_region
            // Predicated region
            $region209: #{attn_decoder_decode.1} parent=207 // pred_check
              _
            $region210: #{attn_decoder_decode.1} parent=207 // pred_check_branch
              %3003 = sbr.rel (0) target = $region212
            $region211: #{attn_decoder_decode.1} parent=207 // pred_region
              // Predicated region
              $region224: #{attn_decoder_decode.1} parent=211 // pred_check
                _
              $region225: #{attn_decoder_decode.1} parent=211 // pred_check_branch
                %3025 = sbr.rel (0) target = $region227
              $region226: #{attn_decoder_decode.1} parent=211 // pred_region
                loop: start=0, step=1, limit=1
                $region228: #{attn_decoder_decode.1} parent=226 // loop_pre_header
                  _
                $region229: #{attn_decoder_decode.1} parent=226 // loop_header
                  %s3027 = sphi 0, %s3031
                  %p3028 = scmp.ge.s32.totalorder %s3027, 1
                  %s3032 = sphi %s2939, %s2939
                  %s3033 = sphi %s2999, %s2999
                $region230: #{attn_decoder_decode.1} parent=226 // loop_header_branch
                  %3030 = sbr.rel (%p3028) target = $region234
                $region231: #{attn_decoder_decode.1} parent=226 // loop_body
                  %v3034 = vld [vmem:[%s3032] sm:$0xff]
                  %3035 = vst [vmem:[%s3033] sm:$0xff] %v3034
                  %v3036 = vld [vmem:[%s3032 + $0x8] sm:$0xff]
                  %3037 = vst [vmem:[%s3033 + $0x10] sm:$0xff] %v3036
                  %v3038 = vld [vmem:[%s3032 + $0x10] sm:$0xff]
                  %3039 = vst [vmem:[%s3033 + $0x20] sm:$0xff] %v3038
                  %v3040 = vld [vmem:[%s3032 + $0x18] sm:$0xff]
                  %3041 = vst [vmem:[%s3033 + $0x30] sm:$0xff] %v3040
                $region232: #{attn_decoder_decode.1} parent=226 // loop_footer
                  %s3031 = sadd.s32 1, %s3027
                $region233: #{attn_decoder_decode.1} parent=226 // loop_footer_branch
                  %3026 = sbr.rel target = $region229
                $region234: #{attn_decoder_decode.1} parent=226 // loop_exit
                  _
              $region227: #{attn_decoder_decode.1} parent=211 // pred_fallthru
                _
              // Predicated region
              $region235: #{attn_decoder_decode.1} parent=211 // pred_check
                _
              $region236: #{attn_decoder_decode.1} parent=211 // pred_check_branch
                %3043 = sbr.rel target = $region238
              $region237: #{attn_decoder_decode.1} parent=211 // pred_region
                _
              $region238: #{attn_decoder_decode.1} parent=211 // pred_fallthru
                _
            $region212: #{attn_decoder_decode.1} parent=207 // pred_fallthru
              _
            // Predicated region
            $region213: #{attn_decoder_decode.1} parent=207 // pred_check
              _
            $region214: #{attn_decoder_decode.1} parent=207 // pred_check_branch
              %3005 = sbr.rel target = $region216
            $region215: #{attn_decoder_decode.1} parent=207 // pred_region
              %s3007 = ssub.s32 256, 1
              loop: start=0, step=1, limit=1
              $region217: #{attn_decoder_decode.1} parent=215 // loop_pre_header
                _
              $region218: #{attn_decoder_decode.1} parent=215 // loop_header
                %s3009 = sphi 0, %s3013
                %p3010 = scmp.ge.s32.totalorder %s3009, 1
                %s3014 = sphi %s2939, %s2939
                %s3015 = sphi %s2999, %s2999
              $region219: #{attn_decoder_decode.1} parent=215 // loop_header_branch
                %3012 = sbr.rel (%p3010) target = $region223
              $region220: #{attn_decoder_decode.1} parent=215 // loop_body
                %v3016 = vld [vmem:[%s3014] sm:%s3007]
                %3017 = vst [vmem:[%s3015] sm:%s3007] %v3016
                %v3018 = vld [vmem:[%s3014 + $0x8] sm:%s3007]
                %3019 = vst [vmem:[%s3015 + $0x10] sm:%s3007] %v3018
                %v3020 = vld [vmem:[%s3014 + $0x10] sm:%s3007]
                %3021 = vst [vmem:[%s3015 + $0x20] sm:%s3007] %v3020
                %v3022 = vld [vmem:[%s3014 + $0x18] sm:%s3007]
                %3023 = vst [vmem:[%s3015 + $0x30] sm:%s3007] %v3022
              $region221: #{attn_decoder_decode.1} parent=215 // loop_footer
                %s3013 = sadd.s32 1, %s3009
              $region222: #{attn_decoder_decode.1} parent=215 // loop_footer_branch
                %3008 = sbr.rel target = $region218
              $region223: #{attn_decoder_decode.1} parent=215 // loop_exit
                _
            $region216: #{attn_decoder_decode.1} parent=207 // pred_fallthru
              _
          $region208: #{attn_decoder_decode.1} parent=203 // pred_fallthru
            _
          %3044 = vnop
        $region204: #{attn_decoder_decode.1} parent=138 // pred_fallthru
          _
        // Predicated region
        $region239: #{attn_decoder_decode.1} parent=138 // pred_check
          %p3045 = pneg %p276
        $region240: #{attn_decoder_decode.1} parent=138 // pred_check_branch
          %3047 = sbr.rel (%p3045) target = $region242
        $region241: #{attn_decoder_decode.1} parent=138 // pred_region
          _
        $region242: #{attn_decoder_decode.1} parent=138 // pred_fallthru
          _
      $region139: #{attn_decoder_decode.1} parent=5 // pred_fallthru
        _
      %p3048 = scmp.le.s32.totalorder 2, %s18
      // Predicated region
      $region243: #{attn_decoder_decode.1} parent=5 // pred_check
        %p3049 = pneg %p3048
      $region244: #{attn_decoder_decode.1} parent=5 // pred_check_branch
        %3051 = sbr.rel (%p3049) target = $region246
      $region245: #{attn_decoder_decode.1} parent=5 // pred_region
        %s3052 = ssub.s32 %s18, 2
        // Predicated region
        $region247: #{attn_decoder_decode.1} parent=245 // pred_check
          %p3053 = pneg %p230
        $region248: #{attn_decoder_decode.1} parent=245 // pred_check_branch
          %3055 = sbr.rel (%p3053) target = $region250
        $region249: #{attn_decoder_decode.1} parent=245 // pred_region
          %s3056 = sand.u32 %s215, 1
          %s3057 = sand.u32 %s215, 1
          %s3058 = smul.addr %s3057, 32
          %s3059 = scalar_lea.vmem [#allocation7], %s3058
        $region250: #{attn_decoder_decode.1} parent=245 // pred_fallthru
          _
        // Predicated region
        $region251: #{attn_decoder_decode.1} parent=245 // pred_check
          %p3060 = pneg %p256
        $region252: #{attn_decoder_decode.1} parent=245 // pred_check_branch
          %3062 = sbr.rel (%p3060) target = $region254
        $region253: #{attn_decoder_decode.1} parent=245 // pred_region
          %s3063 = sand.u32 %s241, 1
          %s3064 = sand.u32 %s241, 1
          %s3065 = smul.addr %s3064, 32
          %s3066 = scalar_lea.vmem [#allocation8], %s3065
        $region254: #{attn_decoder_decode.1} parent=245 // pred_fallthru
          _
        // Predicated region
        $region255: #{attn_decoder_decode.1} parent=245 // pred_check
          %p3067 = pneg %p282
        $region256: #{attn_decoder_decode.1} parent=245 // pred_check_branch
          %3069 = sbr.rel (%p3067) target = $region258
        $region257: #{attn_decoder_decode.1} parent=245 // pred_region
          %p3070 = scmp.lt.s32.totalorder %s24, 1
          %s3071 = scalar_select %p3070, %s24, 1
          %s3072 = smul.addr %s3071, 4
          %s3073 = smul.addr %s3072, 8
          %s3074 = scalar_lea.vmem %s10, %s3073
        $region258: #{attn_decoder_decode.1} parent=245 // pred_fallthru
          _
      $region246: #{attn_decoder_decode.1} parent=5 // pred_fallthru
        _
    $region6: #{attn_decoder_decode.1} parent=1 // loop_footer
      %s22 = sadd.s32 1, %s18
    $region7: #{attn_decoder_decode.1} parent=1 // loop_footer_branch
      %17 = sbr.rel target = $region3
    $region8: #{attn_decoder_decode.1} parent=1 // loop_exit
      _
    %3075 = vsyncpa [#allocation6], 1
    %s3076 = scalar_lea.sflag [#allocation6], 1
    %3077 = vsyncpa %s3076, 1

</llo_original>
